<compile_context>
chip_gen: v5e
topology: v5e:2x2
jax: 0.10.0
libtpu: 0.0.40
codegen_flags: <defaults>
</compile_context>

<pallas_src>
import functools

import jax
import jax.numpy as jnp
from jax.experimental import pallas as pl
from jax.experimental.pallas import tpu as pltpu


def _decoder_kernel(enc_ref, embd_ref,
                    wih1p_ref, wih1a_ref, whh1_ref, bias1_ref,
                    wih2_ref, whh2_ref, bias2_ref,
                    wq_ref, bq_ref, wk_ref, bk_ref, wv_ref, bv_ref,
                    w1_ref, b1_ref, ln_g_ref, ln_b_ref, w2_ref, b2_ref,
                    out_ref,
                    keys_s, vals_s, h1_s, c1_s, h2_s, c2_s, attn_s, prev_s,
                    *, hidden_dim, vocab_size, vpad):
    f32 = jnp.float32
    bf16 = jnp.bfloat16
    H = hidden_dim
    Hh = H // 2
    V = vocab_size
    Bb, T_enc, D_enc = enc_ref.shape
    t = pl.program_id(1)

    # ---------------- per-batch-block init (decode step t == 0) ----------------
    @pl.when(t == 0)
    def _init():
        enc2 = enc_ref[...].reshape(Bb * T_enc, D_enc)                     # bf16
        keys_s[...] = (jnp.dot(enc2, wk_ref[...], preferred_element_type=f32)
                       + bk_ref[...]).reshape(Bb, T_enc, Hh)
        vals_s[...] = (jnp.dot(enc2, wv_ref[...], preferred_element_type=f32)
                       + bv_ref[...]).reshape(Bb, T_enc, Hh)
        h1_s[...] = jnp.zeros_like(h1_s)
        c1_s[...] = jnp.zeros_like(c1_s)
        h2_s[...] = jnp.zeros_like(h2_s)
        c2_s[...] = jnp.zeros_like(c2_s)
        attn_s[...] = jnp.zeros_like(attn_s)
        prev_s[...] = jnp.zeros_like(prev_s)          # prev_output = 0 (<sos> assumed)

    # --------- embedding of previous token (dropout == identity in eval) -------
    col_emb = jax.lax.broadcasted_iota(jnp.int32, (Bb, V + 2), 1)
    one_hot = (col_emb == prev_s[...]).astype(bf16)                        # (Bb, V+2)
    pout = jnp.dot(one_hot, embd_ref[...], preferred_element_type=f32)     # (Bb, Hh)

    def lstm_cell(x_gates, h_prev, c_prev, whh, bias_row):
        # PyTorch gate order: i, f, g, o ; elementwise math stays f32 (v5e-safe).
        gates = (x_gates
                 + jnp.dot(h_prev.astype(bf16), whh, preferred_element_type=f32)
                 + bias_row)                                   # (1,4H) row broadcast
        i = jax.nn.sigmoid(gates[:, 0 * H:1 * H])
        f = jax.nn.sigmoid(gates[:, 1 * H:2 * H])
        g = jnp.tanh(gates[:, 2 * H:3 * H])
        o = jax.nn.sigmoid(gates[:, 3 * H:4 * H])
        c_new = f * c_prev + i * g
        h_new = o * jnp.tanh(c_new)
        return h_new, c_new

    # --- 2-layer LSTM on cat([pout, attn]); split matmul avoids the concat ----
    attn_prev = attn_s[...]
    x1 = (jnp.dot(pout.astype(bf16), wih1p_ref[...], preferred_element_type=f32)
          + jnp.dot(attn_prev.astype(bf16), wih1a_ref[...], preferred_element_type=f32))
    h1, c1 = lstm_cell(x1, h1_s[...], c1_s[...], whh1_ref[...], bias1_ref[...])
    x2 = jnp.dot(h1.astype(bf16), wih2_ref[...], preferred_element_type=f32)
    h2, c2 = lstm_cell(x2, h2_s[...], c2_s[...], whh2_ref[...], bias2_ref[...])

    # --- attention over encoder time axis (VPU multiply + XLU reduce; no M=1 MXU)
    q = (jnp.dot(h2.astype(bf16), wq_ref[...], preferred_element_type=f32)
         + bq_ref[...])                                                    # (Bb, Hh)
    s = jnp.sum(q[:, None, :] * keys_s[...], axis=-1)                      # (Bb, T_enc)
    s = s - jnp.max(s, axis=-1, keepdims=True)
    e = jnp.exp(s)
    w = e / jnp.sum(e, axis=-1, keepdims=True)
    ctx = jnp.sum(w[:, :, None] * vals_s[...], axis=1)                     # (Bb, Hh)

    # --- MLP head: Linear -> LayerNorm -> ReLU -> (Dropout) -> Linear ----------
    z = (jnp.dot(h2.astype(bf16), w1_ref[...], preferred_element_type=f32)
         + b1_ref[...])                                                    # (Bb, 2V)
    mu = jnp.mean(z, axis=-1, keepdims=True)
    var = jnp.mean((z - mu) * (z - mu), axis=-1, keepdims=True)
    zn = (z - mu) * jax.lax.rsqrt(var + 1e-5) * ln_g_ref[...] + ln_b_ref[...]
    zr = jnp.maximum(zn, 0.0)
    logits = (jnp.dot(zr.astype(bf16), w2_ref[...], preferred_element_type=f32)
              + b2_ref[...])                                               # (Bb, Vpad)

    # --- lane-dense bf16 store of this step's logits tile ----------------------
    out_ref[...] = logits.astype(out_ref.dtype)

    # --- greedy feedback: argmax(softmax(logits)) == argmax(logits) ------------
    # (padded columns carry a -1e9 bias so they are never selected)
    ids_vp = jax.lax.broadcasted_iota(jnp.int32, (Bb, vpad), 1)
    mx = jnp.max(logits, axis=-1, keepdims=True)
    amax = jnp.min(jnp.where(logits == mx, ids_vp, jnp.int32(2 ** 30)),
                   axis=-1, keepdims=True)                                 # (Bb, 1)
    prev_s[...] = amax
    h1_s[...] = h1
    c1_s[...] = c1
    h2_s[...] = h2
    c2_s[...] = c2
    attn_s[...] = ctx


def init_params(key, input_dim, hidden_dim, vocab_size):
    H, Hh, V = hidden_dim, hidden_dim // 2, vocab_size

    def nrm(k, shape, scale=0.1):
        return scale * jax.random.normal(k, shape, jnp.float32)

    ks = jax.random.split(key, 19)
    p = {}
    p["embd"] = nrm(ks[0], (V + 2, Hh))                       # nn.Embedding(V+2, H//2)
    # nn.LSTM(input_size=H, hidden_size=H, num_layers=2); weights pre-transposed.
    p["wih1"] = nrm(ks[1], (H, 4 * H)); p["whh1"] = nrm(ks[2], (H, 4 * H))
    p["bih1"] = nrm(ks[3], (1, 4 * H)); p["bhh1"] = nrm(ks[4], (1, 4 * H))
    p["wih2"] = nrm(ks[5], (H, 4 * H)); p["whh2"] = nrm(ks[6], (H, 4 * H))
    p["bih2"] = nrm(ks[7], (1, 4 * H)); p["bhh2"] = nrm(ks[8], (1, 4 * H))
    # Attention(hidden_dim, hidden_dim // 2) — assumed q/k/v projections.
    p["wq"] = nrm(ks[9], (H, Hh));          p["bq"] = nrm(ks[10], (1, Hh))
    p["wk"] = nrm(ks[11], (input_dim, Hh)); p["bk"] = nrm(ks[12], (1, Hh))
    p["wv"] = nrm(ks[13], (input_dim, Hh)); p["bv"] = nrm(ks[14], (1, Hh))
    # MLP head: Linear(H, 2V) -> LayerNorm(2V) -> ReLU -> Dropout -> Linear(2V, V)
    p["w1"] = nrm(ks[15], (H, 2 * V)); p["b1"] = nrm(ks[16], (1, 2 * V))
    p["ln_g"] = jnp.ones((1, 2 * V), jnp.float32)
    p["ln_b"] = jnp.zeros((1, 2 * V), jnp.float32)
    p["w2"] = nrm(ks[17], (2 * V, V)); p["b2"] = nrm(ks[18], (1, V))
    return p


def _pick_batch_block(B):
    # As large as possible (<=128) so every matmul's M dim amortizes weight streaming.
    if B <= 128:
        return B
    for d in range(128, 7, -8):
        if B % d == 0:
            return d
    return B


def _tpu_limits():
    """(vmem_capacity_bytes, lane_alignment) — best-effort, safe fallbacks."""
    vmem_cap = 64 * 1024 * 1024
    lane_align = 128
    try:
        info = pltpu.get_tpu_info()
        vmem_cap = int(getattr(info, "vmem_capacity_bytes", vmem_cap))
        gen = getattr(info, "generation", None)
        if gen is not None and gen >= 6:        # v6e/v7x MXUs are 256 lanes wide
            lane_align = 256
    except Exception:
        pass
    return vmem_cap, lane_align


def decoder_forward(enc, params, hidden_dim, vocab_size, pad_length):
    B, T_enc, D_enc = enc.shape
    H, Hh, V = hidden_dim, hidden_dim // 2, vocab_size
    bf16 = jnp.bfloat16
    f32 = jnp.float32

    vmem_cap, lane_align = _tpu_limits()
    Vpad = ((V + lane_align - 1) // lane_align) * lane_align

    Bb = _pick_batch_block(B)
    nb = B // Bb
    T_dec = pad_length

    # ---- wrapper-side weight prep: combine biases, split wih1, pad head, bf16 ----
    wih1 = params["wih1"]
    wih1_p = wih1[:Hh, :].astype(bf16)                 # rows consuming embedded token
    wih1_a = wih1[Hh:, :].astype(bf16)                 # rows consuming attention ctx
    bias1 = (params["bih1"] + params["bhh1"]).astype(f32)
    bias2 = (params["bih2"] + params["bhh2"]).astype(f32)
    w2p = jnp.zeros((2 * V, Vpad), f32).at[:, :V].set(params["w2"]).astype(bf16)
    b2p = jnp.full((1, Vpad), -1e9, f32).at[:, :V].set(params["b2"])

    args = [
        enc.astype(bf16),
        params["embd"].astype(bf16),
        wih1_p, wih1_a, params["whh1"].astype(bf16), bias1,
        params["wih2"].astype(bf16), params["whh2"].astype(bf16), bias2,
        params["wq"].astype(bf16), params["bq"].astype(f32),
        params["wk"].astype(bf16), params["bk"].astype(f32),
        params["wv"].astype(bf16), params["bv"].astype(f32),
        params["w1"].astype(bf16), params["b1"].astype(f32),
        params["ln_g"].astype(f32), params["ln_b"].astype(f32),
        w2p, b2p,
    ]

    buffered_cls = getattr(pl, "Buffered", None)

    def _const_spec(shape, single_buffer):
        n = len(shape)

        def idx(b, t):
            return (0,) * n

        if single_buffer and buffered_cls is not None:
            try:
                return pl.BlockSpec(shape, idx, pipeline_mode=buffered_cls(1))
            except TypeError:
                pass
        return pl.BlockSpec(shape, idx)

    kernel = functools.partial(_decoder_kernel, hidden_dim=H, vocab_size=V, vpad=Vpad)

    scratch_shapes = [
        pltpu.VMEM((Bb, T_enc, Hh), f32),   # attention keys
        pltpu.VMEM((Bb, T_enc, Hh), f32),   # attention values
        pltpu.VMEM((Bb, H), f32),           # h1
        pltpu.VMEM((Bb, H), f32),           # c1
        pltpu.VMEM((Bb, H), f32),           # h2
        pltpu.VMEM((Bb, H), f32),           # c2
        pltpu.VMEM((Bb, Hh), f32),          # attention context
        pltpu.VMEM((Bb, 1), jnp.int32),     # previous greedy token id
    ]

    def build(single_buffer_weights):
        in_specs = [pl.BlockSpec((Bb, T_enc, D_enc), lambda b, t: (b, 0, 0))]
        in_specs += [_const_spec(a.shape, single_buffer_weights) for a in args[1:]]
        out_spec = pl.BlockSpec((Bb, Vpad), lambda b, t: (b, t))

        # VMEM budget from actual per-block buffer sizes, capped per generation.
        w_factor = 1 if single_buffer_weights else 2
        w_bytes = w_factor * sum(int(a.size) * a.dtype.itemsize for a in args[1:])
        need = (w_bytes
                + 2 * Bb * T_enc * D_enc * 2        # enc block (bf16, double-buffered)
                + 2 * Bb * Vpad * 2                  # out tile (bf16, double-buffered)
                + 2 * Bb * T_enc * Hh * 4            # K/V scratch (f32)
                + (4 * Bb * H + Bb * Hh) * 4 + Bb * 4  # recurrent state
                + (8 << 20))                         # Mosaic internal scratch headroom
        vmem_limit = int(min(int(0.82 * vmem_cap), max(need, 32 << 20)))

        return pl.pallas_call(
            kernel,
            out_shape=jax.ShapeDtypeStruct((B, T_dec * Vpad), jnp.bfloat16),
            grid_spec=pltpu.PrefetchScalarGridSpec(
                num_scalar_prefetch=0,
                grid=(nb, T_dec),
                in_specs=in_specs,
                out_specs=out_spec,
                scratch_shapes=scratch_shapes),
            compiler_params=pltpu.CompilerParams(
                dimension_semantics=("parallel", "arbitrary"),
                vmem_limit_bytes=vmem_limit),
        )

    try:
        out = build(True)(*args)
    except Exception:
        # Fallback if this JAX build rejects single-buffered (Buffered(1)) BlockSpecs.
        out = build(False)(*args)

    # (B, T_dec*Vpad) bf16 slab -> (B, T_dec, V) f32, matching torch.stack(dim=1).
    return out.reshape(B, T_dec, Vpad)[:, :, :V].astype(jnp.float32)


if __name__ == "__main__":
    B, T_enc = 2, 8
    input_dim, hidden_dim, vocab_size = 16, 32, 8
    pad_length = 8

    key = jax.random.PRNGKey(0)
    k_enc, k_par = jax.random.split(key)
    enc = jax.random.normal(k_enc, (B, T_enc, input_dim), jnp.float32)
    params = init_params(k_par, input_dim, hidden_dim, vocab_size)

    logits = decoder_forward(enc, params, hidden_dim, vocab_size, pad_length)
    logits = jax.block_until_ready(logits)
    assert logits.shape == (B, pad_length, vocab_size)
    assert bool(jnp.all(jnp.isfinite(logits)))
    print("KERNEL_OK")
</pallas_src>

<mosaic_0001>
module attributes {stable_mosaic.version = 11 : i64} {
  func.func @_decoder_kernel(%arg0: i32, %arg1: i32, %arg2: memref<2x8x16xbf16, #tpu.memory_space<vmem>>, %arg3: memref<10x16xbf16, #tpu.memory_space<vmem>>, %arg4: memref<16x128xbf16, #tpu.memory_space<vmem>>, %arg5: memref<16x128xbf16, #tpu.memory_space<vmem>>, %arg6: memref<32x128xbf16, #tpu.memory_space<vmem>>, %arg7: memref<1x128xf32, #tpu.memory_space<vmem>>, %arg8: memref<32x128xbf16, #tpu.memory_space<vmem>>, %arg9: memref<32x128xbf16, #tpu.memory_space<vmem>>, %arg10: memref<1x128xf32, #tpu.memory_space<vmem>>, %arg11: memref<32x16xbf16, #tpu.memory_space<vmem>>, %arg12: memref<1x16xf32, #tpu.memory_space<vmem>>, %arg13: memref<16x16xbf16, #tpu.memory_space<vmem>>, %arg14: memref<1x16xf32, #tpu.memory_space<vmem>>, %arg15: memref<16x16xbf16, #tpu.memory_space<vmem>>, %arg16: memref<1x16xf32, #tpu.memory_space<vmem>>, %arg17: memref<32x16xbf16, #tpu.memory_space<vmem>>, %arg18: memref<1x16xf32, #tpu.memory_space<vmem>>, %arg19: memref<1x16xf32, #tpu.memory_space<vmem>>, %arg20: memref<1x16xf32, #tpu.memory_space<vmem>>, %arg21: memref<16x128xbf16, #tpu.memory_space<vmem>>, %arg22: memref<1x128xf32, #tpu.memory_space<vmem>>, %arg23: memref<2x128xbf16, #tpu.memory_space<vmem>>, %arg24: memref<2x8x16xf32, #tpu.memory_space<vmem>>, %arg25: memref<2x8x16xf32, #tpu.memory_space<vmem>>, %arg26: memref<2x32xf32, #tpu.memory_space<vmem>>, %arg27: memref<2x32xf32, #tpu.memory_space<vmem>>, %arg28: memref<2x32xf32, #tpu.memory_space<vmem>>, %arg29: memref<2x32xf32, #tpu.memory_space<vmem>>, %arg30: memref<2x16xf32, #tpu.memory_space<vmem>>, %arg31: memref<2x1xi32, #tpu.memory_space<vmem>>) attributes {dimension_semantics = [#tpu.dimension_semantics<parallel>, #tpu.dimension_semantics<arbitrary>], iteration_bounds = array<i64: 1, 8>, scalar_prefetch = 0 : i64, scratch_operands = 8 : i64, tpu.core_type = #tpu.core_type<tc>, window_params = [{transform_indices = @transform_0, window_bounds = array<i64: 2, 8, 16>}, {pipeline_mode = #tpu.pipeline_mode<synchronous>, transform_indices = @transform_1, window_bounds = array<i64: 10, 16>}, {pipeline_mode = #tpu.pipeline_mode<synchronous>, transform_indices = @transform_2, window_bounds = array<i64: 16, 128>}, {pipeline_mode = #tpu.pipeline_mode<synchronous>, transform_indices = @transform_3, window_bounds = array<i64: 16, 128>}, {pipeline_mode = #tpu.pipeline_mode<synchronous>, transform_indices = @transform_4, window_bounds = array<i64: 32, 128>}, {pipeline_mode = #tpu.pipeline_mode<synchronous>, transform_indices = @transform_5, window_bounds = array<i64: 1, 128>}, {pipeline_mode = #tpu.pipeline_mode<synchronous>, transform_indices = @transform_6, window_bounds = array<i64: 32, 128>}, {pipeline_mode = #tpu.pipeline_mode<synchronous>, transform_indices = @transform_7, window_bounds = array<i64: 32, 128>}, {pipeline_mode = #tpu.pipeline_mode<synchronous>, transform_indices = @transform_8, window_bounds = array<i64: 1, 128>}, {pipeline_mode = #tpu.pipeline_mode<synchronous>, transform_indices = @transform_9, window_bounds = array<i64: 32, 16>}, {pipeline_mode = #tpu.pipeline_mode<synchronous>, transform_indices = @transform_10, window_bounds = array<i64: 1, 16>}, {pipeline_mode = #tpu.pipeline_mode<synchronous>, transform_indices = @transform_11, window_bounds = array<i64: 16, 16>}, {pipeline_mode = #tpu.pipeline_mode<synchronous>, transform_indices = @transform_12, window_bounds = array<i64: 1, 16>}, {pipeline_mode = #tpu.pipeline_mode<synchronous>, transform_indices = @transform_13, window_bounds = array<i64: 16, 16>}, {pipeline_mode = #tpu.pipeline_mode<synchronous>, transform_indices = @transform_14, window_bounds = array<i64: 1, 16>}, {pipeline_mode = #tpu.pipeline_mode<synchronous>, transform_indices = @transform_15, window_bounds = array<i64: 32, 16>}, {pipeline_mode = #tpu.pipeline_mode<synchronous>, transform_indices = @transform_16, window_bounds = array<i64: 1, 16>}, {pipeline_mode = #tpu.pipeline_mode<synchronous>, transform_indices = @transform_17, window_bounds = array<i64: 1, 16>}, {pipeline_mode = #tpu.pipeline_mode<synchronous>, transform_indices = @transform_18, window_bounds = array<i64: 1, 16>}, {pipeline_mode = #tpu.pipeline_mode<synchronous>, transform_indices = @transform_19, window_bounds = array<i64: 16, 128>}, {pipeline_mode = #tpu.pipeline_mode<synchronous>, transform_indices = @transform_20, window_bounds = array<i64: 1, 128>}, {transform_indices = @transform_21, window_bounds = array<i64: 2, 128>}]} {
    %c0_i32 = arith.constant 0 : i32
    %0 = arith.cmpi eq, %arg1, %c0_i32 : i32
    %1 = arith.extui %0 : i1 to i32
    %c0_i32_0 = arith.constant 0 : i32
    %2 = arith.cmpi ne, %1, %c0_i32_0 : i32
    scf.if %2 {
      %c0_90 = arith.constant 0 : index
      %c0_91 = arith.constant 0 : index
      %c0_92 = arith.constant 0 : index
      %173 = vector.load %arg2[%c0_90, %c0_91, %c0_92] : memref<2x8x16xbf16, #tpu.memory_space<vmem>>, vector<2x8x16xbf16>
      %174 = vector.shape_cast %173 : vector<2x8x16xbf16> to vector<16x16xbf16>
      %c0_93 = arith.constant 0 : index
      %c0_94 = arith.constant 0 : index
      %175 = vector.load %arg13[%c0_93, %c0_94] : memref<16x16xbf16, #tpu.memory_space<vmem>>, vector<16x16xbf16>
      %cst_95 = arith.constant dense<0.000000e+00> : vector<16x16xf32>
      %176 = tpu.matmul %174, %175, %cst_95 {dimension_numbers = #tpu.dot_dimension_numbers<[1], [0], [0], [1], [0, 0, 1, 1], [], []>} : vector<16x16xbf16>, vector<16x16xbf16>, vector<16x16xf32> -> vector<16x16xf32>
      %c0_96 = arith.constant 0 : index
      %c0_97 = arith.constant 0 : index
      %177 = vector.load %arg14[%c0_96, %c0_97] : memref<1x16xf32, #tpu.memory_space<vmem>>, vector<1x16xf32>
      %178 = vector.broadcast %177 : vector<1x16xf32> to vector<16x16xf32>
      %179 = arith.addf %176, %178 : vector<16x16xf32>
      %180 = vector.shape_cast %179 : vector<16x16xf32> to vector<2x8x16xf32>
      %c0_98 = arith.constant 0 : index
      %c0_99 = arith.constant 0 : index
      %c0_100 = arith.constant 0 : index
      %181 = vector.load %arg24[%c0_98, %c0_99, %c0_100] : memref<2x8x16xf32, #tpu.memory_space<vmem>>, vector<2x8x16xf32>
      tpu.vector_store %arg24[%c0_98, %c0_99, %c0_100], %180 {strides = array<i32>} : memref<2x8x16xf32, #tpu.memory_space<vmem>>, vector<2x8x16xf32>,
      %c0_101 = arith.constant 0 : index
      %c0_102 = arith.constant 0 : index
      %182 = vector.load %arg15[%c0_101, %c0_102] : memref<16x16xbf16, #tpu.memory_space<vmem>>, vector<16x16xbf16>
      %cst_103 = arith.constant dense<0.000000e+00> : vector<16x16xf32>
      %183 = tpu.matmul %174, %182, %cst_103 {dimension_numbers = #tpu.dot_dimension_numbers<[1], [0], [0], [1], [0, 0, 1, 1], [], []>} : vector<16x16xbf16>, vector<16x16xbf16>, vector<16x16xf32> -> vector<16x16xf32>
      %c0_104 = arith.constant 0 : index
      %c0_105 = arith.constant 0 : index
      %184 = vector.load %arg16[%c0_104, %c0_105] : memref<1x16xf32, #tpu.memory_space<vmem>>, vector<1x16xf32>
      %185 = vector.broadcast %184 : vector<1x16xf32> to vector<16x16xf32>
      %186 = arith.addf %183, %185 : vector<16x16xf32>
      %187 = vector.shape_cast %186 : vector<16x16xf32> to vector<2x8x16xf32>
      %c0_106 = arith.constant 0 : index
      %c0_107 = arith.constant 0 : index
      %c0_108 = arith.constant 0 : index
      %188 = vector.load %arg25[%c0_106, %c0_107, %c0_108] : memref<2x8x16xf32, #tpu.memory_space<vmem>>, vector<2x8x16xf32>
      tpu.vector_store %arg25[%c0_106, %c0_107, %c0_108], %187 {strides = array<i32>} : memref<2x8x16xf32, #tpu.memory_space<vmem>>, vector<2x8x16xf32>,
      %cst_109 = arith.constant 0.000000e+00 : f32
      %189 = vector.broadcast %cst_109 : f32 to vector<2x32xf32>
      %c0_110 = arith.constant 0 : index
      %c0_111 = arith.constant 0 : index
      %190 = vector.load %arg26[%c0_110, %c0_111] : memref<2x32xf32, #tpu.memory_space<vmem>>, vector<2x32xf32>
      tpu.vector_store %arg26[%c0_110, %c0_111], %189 {strides = array<i32>} : memref<2x32xf32, #tpu.memory_space<vmem>>, vector<2x32xf32>,
      %cst_112 = arith.constant 0.000000e+00 : f32
      %191 = vector.broadcast %cst_112 : f32 to vector<2x32xf32>
      %c0_113 = arith.constant 0 : index
      %c0_114 = arith.constant 0 : index
      %192 = vector.load %arg27[%c0_113, %c0_114] : memref<2x32xf32, #tpu.memory_space<vmem>>, vector<2x32xf32>
      tpu.vector_store %arg27[%c0_113, %c0_114], %191 {strides = array<i32>} : memref<2x32xf32, #tpu.memory_space<vmem>>, vector<2x32xf32>,
      %cst_115 = arith.constant 0.000000e+00 : f32
      %193 = vector.broadcast %cst_115 : f32 to vector<2x32xf32>
      %c0_116 = arith.constant 0 : index
      %c0_117 = arith.constant 0 : index
      %194 = vector.load %arg28[%c0_116, %c0_117] : memref<2x32xf32, #tpu.memory_space<vmem>>, vector<2x32xf32>
      tpu.vector_store %arg28[%c0_116, %c0_117], %193 {strides = array<i32>} : memref<2x32xf32, #tpu.memory_space<vmem>>, vector<2x32xf32>,
      %cst_118 = arith.constant 0.000000e+00 : f32
      %195 = vector.broadcast %cst_118 : f32 to vector<2x32xf32>
      %c0_119 = arith.constant 0 : index
      %c0_120 = arith.constant 0 : index
      %196 = vector.load %arg29[%c0_119, %c0_120] : memref<2x32xf32, #tpu.memory_space<vmem>>, vector<2x32xf32>
      tpu.vector_store %arg29[%c0_119, %c0_120], %195 {strides = array<i32>} : memref<2x32xf32, #tpu.memory_space<vmem>>, vector<2x32xf32>,
      %cst_121 = arith.constant 0.000000e+00 : f32
      %197 = vector.broadcast %cst_121 : f32 to vector<2x16xf32>
      %c0_122 = arith.constant 0 : index
      %c0_123 = arith.constant 0 : index
      %198 = vector.load %arg30[%c0_122, %c0_123] : memref<2x16xf32, #tpu.memory_space<vmem>>, vector<2x16xf32>
      tpu.vector_store %arg30[%c0_122, %c0_123], %197 {strides = array<i32>} : memref<2x16xf32, #tpu.memory_space<vmem>>, vector<2x16xf32>,
      %c0_i32_124 = arith.constant 0 : i32
      %199 = vector.broadcast %c0_i32_124 : i32 to vector<2x1xi32>
      %c0_125 = arith.constant 0 : index
      %c0_126 = arith.constant 0 : index
      %200 = vector.load %arg31[%c0_125, %c0_126] : memref<2x1xi32, #tpu.memory_space<vmem>>, vector<2x1xi32>
      tpu.vector_store %arg31[%c0_125, %c0_126], %199 {strides = array<i32>} : memref<2x1xi32, #tpu.memory_space<vmem>>, vector<2x1xi32>,
    } else {
    }
    %3 = tpu.iota {dimensions = array<i32: 1>} : vector<2x10xi32>
    %c0 = arith.constant 0 : index
    %c0_1 = arith.constant 0 : index
    %4 = vector.load %arg31[%c0, %c0_1] : memref<2x1xi32, #tpu.memory_space<vmem>>, vector<2x1xi32>
    %5 = vector.broadcast %4 : vector<2x1xi32> to vector<2x10xi32>
    %6 = arith.cmpi eq, %3, %5 : vector<2x10xi32>
    %7 = arith.extui %6 : vector<2x10xi1> to vector<2x10xi32>
    %8 = arith.sitofp %7 : vector<2x10xi32> to vector<2x10xf32>
    %9 = arith.truncf %8 : vector<2x10xf32> to vector<2x10xbf16>
    %c0_2 = arith.constant 0 : index
    %c0_3 = arith.constant 0 : index
    %10 = vector.load %arg3[%c0_2, %c0_3] : memref<10x16xbf16, #tpu.memory_space<vmem>>, vector<10x16xbf16>
    %cst = arith.constant dense<0.000000e+00> : vector<2x16xf32>
    %11 = tpu.matmul %9, %10, %cst {dimension_numbers = #tpu.dot_dimension_numbers<[1], [0], [0], [1], [0, 0, 1, 1], [], []>} : vector<2x10xbf16>, vector<10x16xbf16>, vector<2x16xf32> -> vector<2x16xf32>
    %c0_4 = arith.constant 0 : index
    %c0_5 = arith.constant 0 : index
    %12 = vector.load %arg30[%c0_4, %c0_5] : memref<2x16xf32, #tpu.memory_space<vmem>>, vector<2x16xf32>
    %13 = arith.truncf %11 : vector<2x16xf32> to vector<2x16xbf16>
    %c0_6 = arith.constant 0 : index
    %c0_7 = arith.constant 0 : index
    %14 = vector.load %arg4[%c0_6, %c0_7] : memref<16x128xbf16, #tpu.memory_space<vmem>>, vector<16x128xbf16>
    %cst_8 = arith.constant dense<0.000000e+00> : vector<2x128xf32>
    %15 = tpu.matmul %13, %14, %cst_8 {dimension_numbers = #tpu.dot_dimension_numbers<[1], [0], [0], [1], [0, 0, 1, 1], [], []>} : vector<2x16xbf16>, vector<16x128xbf16>, vector<2x128xf32> -> vector<2x128xf32>
    %16 = arith.truncf %12 : vector<2x16xf32> to vector<2x16xbf16>
    %c0_9 = arith.constant 0 : index
    %c0_10 = arith.constant 0 : index
    %17 = vector.load %arg5[%c0_9, %c0_10] : memref<16x128xbf16, #tpu.memory_space<vmem>>, vector<16x128xbf16>
    %cst_11 = arith.constant dense<0.000000e+00> : vector<2x128xf32>
    %18 = tpu.matmul %16, %17, %cst_11 {dimension_numbers = #tpu.dot_dimension_numbers<[1], [0], [0], [1], [0, 0, 1, 1], [], []>} : vector<2x16xbf16>, vector<16x128xbf16>, vector<2x128xf32> -> vector<2x128xf32>
    %19 = arith.addf %15, %18 : vector<2x128xf32>
    %c0_12 = arith.constant 0 : index
    %c0_13 = arith.constant 0 : index
    %20 = vector.load %arg26[%c0_12, %c0_13] : memref<2x32xf32, #tpu.memory_space<vmem>>, vector<2x32xf32>
    %c0_14 = arith.constant 0 : index
    %c0_15 = arith.constant 0 : index
    %21 = vector.load %arg27[%c0_14, %c0_15] : memref<2x32xf32, #tpu.memory_space<vmem>>, vector<2x32xf32>
    %c0_16 = arith.constant 0 : index
    %c0_17 = arith.constant 0 : index
    %22 = vector.load %arg6[%c0_16, %c0_17] : memref<32x128xbf16, #tpu.memory_space<vmem>>, vector<32x128xbf16>
    %c0_18 = arith.constant 0 : index
    %c0_19 = arith.constant 0 : index
    %23 = vector.load %arg7[%c0_18, %c0_19] : memref<1x128xf32, #tpu.memory_space<vmem>>, vector<1x128xf32>
    %24 = arith.truncf %20 : vector<2x32xf32> to vector<2x32xbf16>
    %cst_20 = arith.constant dense<0.000000e+00> : vector<2x128xf32>
    %25 = tpu.matmul %24, %22, %cst_20 {dimension_numbers = #tpu.dot_dimension_numbers<[1], [0], [0], [1], [0, 0, 1, 1], [], []>} : vector<2x32xbf16>, vector<32x128xbf16>, vector<2x128xf32> -> vector<2x128xf32>
    %26 = arith.addf %19, %25 : vector<2x128xf32>
    %27 = vector.broadcast %23 : vector<1x128xf32> to vector<2x128xf32>
    %28 = arith.addf %26, %27 : vector<2x128xf32>
    %29 = vector.extract_strided_slice %28 {offsets = [0, 0], sizes = [2, 32], strides = [1, 1]} : vector<2x128xf32> to vector<2x32xf32>
    %30 = arith.negf %29 : vector<2x32xf32>
    %31 = math.exp %30 : vector<2x32xf32>
    %cst_21 = arith.constant 1.000000e+00 : f32
    %32 = vector.broadcast %cst_21 : f32 to vector<2x32xf32>
    %33 = arith.addf %32, %31 : vector<2x32xf32>
    %34 = arith.divf %32, %33 : vector<2x32xf32>
    %35 = vector.extract_strided_slice %28 {offsets = [0, 32], sizes = [2, 32], strides = [1, 1]} : vector<2x128xf32> to vector<2x32xf32>
    %36 = arith.negf %35 : vector<2x32xf32>
    %37 = math.exp %36 : vector<2x32xf32>
    %cst_22 = arith.constant 1.000000e+00 : f32
    %38 = vector.broadcast %cst_22 : f32 to vector<2x32xf32>
    %39 = arith.addf %38, %37 : vector<2x32xf32>
    %40 = arith.divf %38, %39 : vector<2x32xf32>
    %41 = vector.extract_strided_slice %28 {offsets = [0, 64], sizes = [2, 32], strides = [1, 1]} : vector<2x128xf32> to vector<2x32xf32>
    %42 = math.tanh %41 : vector<2x32xf32>
    %43 = vector.extract_strided_slice %28 {offsets = [0, 96], sizes = [2, 32], strides = [1, 1]} : vector<2x128xf32> to vector<2x32xf32>
    %44 = arith.negf %43 : vector<2x32xf32>
    %45 = math.exp %44 : vector<2x32xf32>
    %cst_23 = arith.constant 1.000000e+00 : f32
    %46 = vector.broadcast %cst_23 : f32 to vector<2x32xf32>
    %47 = arith.addf %46, %45 : vector<2x32xf32>
    %48 = arith.divf %46, %47 : vector<2x32xf32>
    %49 = arith.mulf %40, %21 : vector<2x32xf32>
    %50 = arith.mulf %34, %42 : vector<2x32xf32>
    %51 = arith.addf %49, %50 : vector<2x32xf32>
    %52 = math.tanh %51 : vector<2x32xf32>
    %53 = arith.mulf %48, %52 : vector<2x32xf32>
    %54 = arith.truncf %53 : vector<2x32xf32> to vector<2x32xbf16>
    %c0_24 = arith.constant 0 : index
    %c0_25 = arith.constant 0 : index
    %55 = vector.load %arg8[%c0_24, %c0_25] : memref<32x128xbf16, #tpu.memory_space<vmem>>, vector<32x128xbf16>
    %cst_26 = arith.constant dense<0.000000e+00> : vector<2x128xf32>
    %56 = tpu.matmul %54, %55, %cst_26 {dimension_numbers = #tpu.dot_dimension_numbers<[1], [0], [0], [1], [0, 0, 1, 1], [], []>} : vector<2x32xbf16>, vector<32x128xbf16>, vector<2x128xf32> -> vector<2x128xf32>
    %c0_27 = arith.constant 0 : index
    %c0_28 = arith.constant 0 : index
    %57 = vector.load %arg28[%c0_27, %c0_28] : memref<2x32xf32, #tpu.memory_space<vmem>>, vector<2x32xf32>
    %c0_29 = arith.constant 0 : index
    %c0_30 = arith.constant 0 : index
    %58 = vector.load %arg29[%c0_29, %c0_30] : memref<2x32xf32, #tpu.memory_space<vmem>>, vector<2x32xf32>
    %c0_31 = arith.constant 0 : index
    %c0_32 = arith.constant 0 : index
    %59 = vector.load %arg9[%c0_31, %c0_32] : memref<32x128xbf16, #tpu.memory_space<vmem>>, vector<32x128xbf16>
    %c0_33 = arith.constant 0 : index
    %c0_34 = arith.constant 0 : index
    %60 = vector.load %arg10[%c0_33, %c0_34] : memref<1x128xf32, #tpu.memory_space<vmem>>, vector<1x128xf32>
    %61 = arith.truncf %57 : vector<2x32xf32> to vector<2x32xbf16>
    %cst_35 = arith.constant dense<0.000000e+00> : vector<2x128xf32>
    %62 = tpu.matmul %61, %59, %cst_35 {dimension_numbers = #tpu.dot_dimension_numbers<[1], [0], [0], [1], [0, 0, 1, 1], [], []>} : vector<2x32xbf16>, vector<32x128xbf16>, vector<2x128xf32> -> vector<2x128xf32>
    %63 = arith.addf %56, %62 : vector<2x128xf32>
    %64 = vector.broadcast %60 : vector<1x128xf32> to vector<2x128xf32>
    %65 = arith.addf %63, %64 : vector<2x128xf32>
    %66 = vector.extract_strided_slice %65 {offsets = [0, 0], sizes = [2, 32], strides = [1, 1]} : vector<2x128xf32> to vector<2x32xf32>
    %67 = arith.negf %66 : vector<2x32xf32>
    %68 = math.exp %67 : vector<2x32xf32>
    %cst_36 = arith.constant 1.000000e+00 : f32
    %69 = vector.broadcast %cst_36 : f32 to vector<2x32xf32>
    %70 = arith.addf %69, %68 : vector<2x32xf32>
    %71 = arith.divf %69, %70 : vector<2x32xf32>
    %72 = vector.extract_strided_slice %65 {offsets = [0, 32], sizes = [2, 32], strides = [1, 1]} : vector<2x128xf32> to vector<2x32xf32>
    %73 = arith.negf %72 : vector<2x32xf32>
    %74 = math.exp %73 : vector<2x32xf32>
    %cst_37 = arith.constant 1.000000e+00 : f32
    %75 = vector.broadcast %cst_37 : f32 to vector<2x32xf32>
    %76 = arith.addf %75, %74 : vector<2x32xf32>
    %77 = arith.divf %75, %76 : vector<2x32xf32>
    %78 = vector.extract_strided_slice %65 {offsets = [0, 64], sizes = [2, 32], strides = [1, 1]} : vector<2x128xf32> to vector<2x32xf32>
    %79 = math.tanh %78 : vector<2x32xf32>
    %80 = vector.extract_strided_slice %65 {offsets = [0, 96], sizes = [2, 32], strides = [1, 1]} : vector<2x128xf32> to vector<2x32xf32>
    %81 = arith.negf %80 : vector<2x32xf32>
    %82 = math.exp %81 : vector<2x32xf32>
    %cst_38 = arith.constant 1.000000e+00 : f32
    %83 = vector.broadcast %cst_38 : f32 to vector<2x32xf32>
    %84 = arith.addf %83, %82 : vector<2x32xf32>
    %85 = arith.divf %83, %84 : vector<2x32xf32>
    %86 = arith.mulf %77, %58 : vector<2x32xf32>
    %87 = arith.mulf %71, %79 : vector<2x32xf32>
    %88 = arith.addf %86, %87 : vector<2x32xf32>
    %89 = math.tanh %88 : vector<2x32xf32>
    %90 = arith.mulf %85, %89 : vector<2x32xf32>
    %91 = arith.truncf %90 : vector<2x32xf32> to vector<2x32xbf16>
    %c0_39 = arith.constant 0 : index
    %c0_40 = arith.constant 0 : index
    %92 = vector.load %arg11[%c0_39, %c0_40] : memref<32x16xbf16, #tpu.memory_space<vmem>>, vector<32x16xbf16>
    %cst_41 = arith.constant dense<0.000000e+00> : vector<2x16xf32>
    %93 = tpu.matmul %91, %92, %cst_41 {dimension_numbers = #tpu.dot_dimension_numbers<[1], [0], [0], [1], [0, 0, 1, 1], [], []>} : vector<2x32xbf16>, vector<32x16xbf16>, vector<2x16xf32> -> vector<2x16xf32>
    %c0_42 = arith.constant 0 : index
    %c0_43 = arith.constant 0 : index
    %94 = vector.load %arg12[%c0_42, %c0_43] : memref<1x16xf32, #tpu.memory_space<vmem>>, vector<1x16xf32>
    %95 = vector.broadcast %94 : vector<1x16xf32> to vector<2x16xf32>
    %96 = arith.addf %93, %95 : vector<2x16xf32>
    %97 = vector.shape_cast %96 : vector<2x16xf32> to vector<2x1x16xf32>
    %c0_44 = arith.constant 0 : index
    %c0_45 = arith.constant 0 : index
    %c0_46 = arith.constant 0 : index
    %98 = vector.load %arg24[%c0_44, %c0_45, %c0_46] : memref<2x8x16xf32, #tpu.memory_space<vmem>>, vector<2x8x16xf32>
    %99 = vector.broadcast %97 : vector<2x1x16xf32> to vector<2x8x16xf32>
    %100 = arith.mulf %99, %98 : vector<2x8x16xf32>
    %cst_47 = arith.constant dense<0.000000e+00> : vector<2x8xf32>
    %101 = vector.multi_reduction <add>, %100, %cst_47 [2] : vector<2x8x16xf32> to vector<2x8xf32>
    %cst_48 = arith.constant dense<0xFF800000> : vector<2xf32>
    %102 = vector.multi_reduction <maximumf>, %101, %cst_48 [1] : vector<2x8xf32> to vector<2xf32>
    %103 = vector.shape_cast %102 : vector<2xf32> to vector<2x1xf32>
    %104 = vector.broadcast %103 : vector<2x1xf32> to vector<2x8xf32>
    %105 = arith.subf %101, %104 : vector<2x8xf32>
    %106 = math.exp %105 : vector<2x8xf32>
    %cst_49 = arith.constant dense<0.000000e+00> : vector<2xf32>
    %107 = vector.multi_reduction <add>, %106, %cst_49 [1] : vector<2x8xf32> to vector<2xf32>
    %108 = vector.shape_cast %107 : vector<2xf32> to vector<2x1xf32>
    %109 = vector.broadcast %108 : vector<2x1xf32> to vector<2x8xf32>
    %110 = arith.divf %106, %109 : vector<2x8xf32>
    %111 = vector.shape_cast %110 : vector<2x8xf32> to vector<2x8x1xf32>
    %c0_50 = arith.constant 0 : index
    %c0_51 = arith.constant 0 : index
    %c0_52 = arith.constant 0 : index
    %112 = vector.load %arg25[%c0_50, %c0_51, %c0_52] : memref<2x8x16xf32, #tpu.memory_space<vmem>>, vector<2x8x16xf32>
    %113 = vector.broadcast %111 : vector<2x8x1xf32> to vector<2x8x16xf32>
    %114 = arith.mulf %113, %112 : vector<2x8x16xf32>
    %cst_53 = arith.constant dense<0.000000e+00> : vector<2x16xf32>
    %115 = vector.multi_reduction <add>, %114, %cst_53 [1] : vector<2x8x16xf32> to vector<2x16xf32>
    %116 = arith.truncf %90 : vector<2x32xf32> to vector<2x32xbf16>
    %c0_54 = arith.constant 0 : index
    %c0_55 = arith.constant 0 : index
    %117 = vector.load %arg17[%c0_54, %c0_55] : memref<32x16xbf16, #tpu.memory_space<vmem>>, vector<32x16xbf16>
    %cst_56 = arith.constant dense<0.000000e+00> : vector<2x16xf32>
    %118 = tpu.matmul %116, %117, %cst_56 {dimension_numbers = #tpu.dot_dimension_numbers<[1], [0], [0], [1], [0, 0, 1, 1], [], []>} : vector<2x32xbf16>, vector<32x16xbf16>, vector<2x16xf32> -> vector<2x16xf32>
    %c0_57 = arith.constant 0 : index
    %c0_58 = arith.constant 0 : index
    %119 = vector.load %arg18[%c0_57, %c0_58] : memref<1x16xf32, #tpu.memory_space<vmem>>, vector<1x16xf32>
    %120 = vector.broadcast %119 : vector<1x16xf32> to vector<2x16xf32>
    %121 = arith.addf %118, %120 : vector<2x16xf32>
    %cst_59 = arith.constant dense<0.000000e+00> : vector<2xf32>
    %122 = vector.multi_reduction <add>, %121, %cst_59 [1] : vector<2x16xf32> to vector<2xf32>
    %123 = vector.shape_cast %122 : vector<2xf32> to vector<2x1xf32>
    %cst_60 = arith.constant 1.600000e+01 : f32
    %124 = vector.broadcast %cst_60 : f32 to vector<2x1xf32>
    %125 = arith.divf %123, %124 : vector<2x1xf32>
    %126 = vector.broadcast %125 : vector<2x1xf32> to vector<2x16xf32>
    %127 = arith.subf %121, %126 : vector<2x16xf32>
    %128 = vector.broadcast %125 : vector<2x1xf32> to vector<2x16xf32>
    %129 = arith.subf %121, %128 : vector<2x16xf32>
    %130 = arith.mulf %127, %129 : vector<2x16xf32>
    %cst_61 = arith.constant dense<0.000000e+00> : vector<2xf32>
    %131 = vector.multi_reduction <add>, %130, %cst_61 [1] : vector<2x16xf32> to vector<2xf32>
    %132 = vector.shape_cast %131 : vector<2xf32> to vector<2x1xf32>
    %cst_62 = arith.constant 1.600000e+01 : f32
    %133 = vector.broadcast %cst_62 : f32 to vector<2x1xf32>
    %134 = arith.divf %132, %133 : vector<2x1xf32>
    %135 = vector.broadcast %125 : vector<2x1xf32> to vector<2x16xf32>
    %136 = arith.subf %121, %135 : vector<2x16xf32>
    %cst_63 = arith.constant 9.99999974E-6 : f32
    %137 = vector.broadcast %cst_63 : f32 to vector<2x1xf32>
    %138 = arith.addf %134, %137 : vector<2x1xf32>
    %139 = math.rsqrt %138 : vector<2x1xf32>
    %140 = vector.broadcast %139 : vector<2x1xf32> to vector<2x16xf32>
    %141 = arith.mulf %136, %140 : vector<2x16xf32>
    %c0_64 = arith.constant 0 : index
    %c0_65 = arith.constant 0 : index
    %142 = vector.load %arg19[%c0_64, %c0_65] : memref<1x16xf32, #tpu.memory_space<vmem>>, vector<1x16xf32>
    %143 = vector.broadcast %142 : vector<1x16xf32> to vector<2x16xf32>
    %144 = arith.mulf %141, %143 : vector<2x16xf32>
    %c0_66 = arith.constant 0 : index
    %c0_67 = arith.constant 0 : index
    %145 = vector.load %arg20[%c0_66, %c0_67] : memref<1x16xf32, #tpu.memory_space<vmem>>, vector<1x16xf32>
    %146 = vector.broadcast %145 : vector<1x16xf32> to vector<2x16xf32>
    %147 = arith.addf %144, %146 : vector<2x16xf32>
    %cst_68 = arith.constant 0.000000e+00 : f32
    %148 = vector.broadcast %cst_68 : f32 to vector<2x16xf32>
    %149 = arith.maximumf %147, %148 : vector<2x16xf32>
    %150 = arith.truncf %149 : vector<2x16xf32> to vector<2x16xbf16>
    %c0_69 = arith.constant 0 : index
    %c0_70 = arith.constant 0 : index
    %151 = vector.load %arg21[%c0_69, %c0_70] : memref<16x128xbf16, #tpu.memory_space<vmem>>, vector<16x128xbf16>
    %cst_71 = arith.constant dense<0.000000e+00> : vector<2x128xf32>
    %152 = tpu.matmul %150, %151, %cst_71 {dimension_numbers = #tpu.dot_dimension_numbers<[1], [0], [0], [1], [0, 0, 1, 1], [], []>} : vector<2x16xbf16>, vector<16x128xbf16>, vector<2x128xf32> -> vector<2x128xf32>
    %c0_72 = arith.constant 0 : index
    %c0_73 = arith.constant 0 : index
    %153 = vector.load %arg22[%c0_72, %c0_73] : memref<1x128xf32, #tpu.memory_space<vmem>>, vector<1x128xf32>
    %154 = vector.broadcast %153 : vector<1x128xf32> to vector<2x128xf32>
    %155 = arith.addf %152, %154 : vector<2x128xf32>
    %156 = arith.truncf %155 : vector<2x128xf32> to vector<2x128xbf16>
    %c0_74 = arith.constant 0 : index
    %c0_75 = arith.constant 0 : index
    %157 = vector.load %arg23[%c0_74, %c0_75] : memref<2x128xbf16, #tpu.memory_space<vmem>>, vector<2x128xbf16>
    tpu.vector_store %arg23[%c0_74, %c0_75], %156 {strides = array<i32>} : memref<2x128xbf16, #tpu.memory_space<vmem>>, vector<2x128xbf16>,
    %158 = tpu.iota {dimensions = array<i32: 1>} : vector<2x128xi32>
    %cst_76 = arith.constant dense<0xFF800000> : vector<2xf32>
    %159 = vector.multi_reduction <maximumf>, %155, %cst_76 [1] : vector<2x128xf32> to vector<2xf32>
    %160 = vector.shape_cast %159 : vector<2xf32> to vector<2x1xf32>
    %161 = vector.broadcast %160 : vector<2x1xf32> to vector<2x128xf32>
    %162 = arith.cmpf oeq, %155, %161 : vector<2x128xf32>
    %c1073741824_i32 = arith.constant 1073741824 : i32
    %163 = vector.broadcast %c1073741824_i32 : i32 to vector<2x128xi32>
    %164 = arith.select %162, %158, %163 : vector<2x128xi1>, vector<2x128xi32>
    %cst_77 = arith.constant dense<2147483647> : vector<2xi32>
    %165 = vector.multi_reduction <minsi>, %164, %cst_77 [1] : vector<2x128xi32> to vector<2xi32>
    %166 = vector.shape_cast %165 : vector<2xi32> to vector<2x1xi32>
    %c0_78 = arith.constant 0 : index
    %c0_79 = arith.constant 0 : index
    %167 = vector.load %arg31[%c0_78, %c0_79] : memref<2x1xi32, #tpu.memory_space<vmem>>, vector<2x1xi32>
    tpu.vector_store %arg31[%c0_78, %c0_79], %166 {strides = array<i32>} : memref<2x1xi32, #tpu.memory_space<vmem>>, vector<2x1xi32>,
    %c0_80 = arith.constant 0 : index
    %c0_81 = arith.constant 0 : index
    %168 = vector.load %arg26[%c0_80, %c0_81] : memref<2x32xf32, #tpu.memory_space<vmem>>, vector<2x32xf32>
    tpu.vector_store %arg26[%c0_80, %c0_81], %53 {strides = array<i32>} : memref<2x32xf32, #tpu.memory_space<vmem>>, vector<2x32xf32>,
    %c0_82 = arith.constant 0 : index
    %c0_83 = arith.constant 0 : index
    %169 = vector.load %arg27[%c0_82, %c0_83] : memref<2x32xf32, #tpu.memory_space<vmem>>, vector<2x32xf32>
    tpu.vector_store %arg27[%c0_82, %c0_83], %51 {strides = array<i32>} : memref<2x32xf32, #tpu.memory_space<vmem>>, vector<2x32xf32>,
    %c0_84 = arith.constant 0 : index
    %c0_85 = arith.constant 0 : index
    %170 = vector.load %arg28[%c0_84, %c0_85] : memref<2x32xf32, #tpu.memory_space<vmem>>, vector<2x32xf32>
    tpu.vector_store %arg28[%c0_84, %c0_85], %90 {strides = array<i32>} : memref<2x32xf32, #tpu.memory_space<vmem>>, vector<2x32xf32>,
    %c0_86 = arith.constant 0 : index
    %c0_87 = arith.constant 0 : index
    %171 = vector.load %arg29[%c0_86, %c0_87] : memref<2x32xf32, #tpu.memory_space<vmem>>, vector<2x32xf32>
    tpu.vector_store %arg29[%c0_86, %c0_87], %88 {strides = array<i32>} : memref<2x32xf32, #tpu.memory_space<vmem>>, vector<2x32xf32>,
    %c0_88 = arith.constant 0 : index
    %c0_89 = arith.constant 0 : index
    %172 = vector.load %arg30[%c0_88, %c0_89] : memref<2x16xf32, #tpu.memory_space<vmem>>, vector<2x16xf32>
    tpu.vector_store %arg30[%c0_88, %c0_89], %115 {strides = array<i32>} : memref<2x16xf32, #tpu.memory_space<vmem>>, vector<2x16xf32>,
    return
  }
  func.func @transform_0(%arg0: i32, %arg1: i32) -> (i32, i32, i32) {
    %c0_i32 = arith.constant 0 : i32
    %c0_i32_0 = arith.constant 0 : i32
    %c0_i32_1 = arith.constant 0 : i32
    return %arg0, %c0_i32, %c0_i32_0 : i32, i32, i32
  }
  func.func @transform_1(%arg0: i32, %arg1: i32) -> (i32, i32) {
    %c0_i32 = arith.constant 0 : i32
    %c0_i32_0 = arith.constant 0 : i32
    %c0_i32_1 = arith.constant 0 : i32
    return %c0_i32, %c0_i32_0 : i32, i32
  }
  func.func @transform_2(%arg0: i32, %arg1: i32) -> (i32, i32) {
    %c0_i32 = arith.constant 0 : i32
    %c0_i32_0 = arith.constant 0 : i32
    %c0_i32_1 = arith.constant 0 : i32
    return %c0_i32, %c0_i32_0 : i32, i32
  }
  func.func @transform_3(%arg0: i32, %arg1: i32) -> (i32, i32) {
    %c0_i32 = arith.constant 0 : i32
    %c0_i32_0 = arith.constant 0 : i32
    %c0_i32_1 = arith.constant 0 : i32
    return %c0_i32, %c0_i32_0 : i32, i32
  }
  func.func @transform_4(%arg0: i32, %arg1: i32) -> (i32, i32) {
    %c0_i32 = arith.constant 0 : i32
    %c0_i32_0 = arith.constant 0 : i32
    %c0_i32_1 = arith.constant 0 : i32
    return %c0_i32, %c0_i32_0 : i32, i32
  }
  func.func @transform_5(%arg0: i32, %arg1: i32) -> (i32, i32) {
    %c0_i32 = arith.constant 0 : i32
    %c0_i32_0 = arith.constant 0 : i32
    %c0_i32_1 = arith.constant 0 : i32
    return %c0_i32, %c0_i32_0 : i32, i32
  }
  func.func @transform_6(%arg0: i32, %arg1: i32) -> (i32, i32) {
    %c0_i32 = arith.constant 0 : i32
    %c0_i32_0 = arith.constant 0 : i32
    %c0_i32_1 = arith.constant 0 : i32
    return %c0_i32, %c0_i32_0 : i32, i32
  }
  func.func @transform_7(%arg0: i32, %arg1: i32) -> (i32, i32) {
    %c0_i32 = arith.constant 0 : i32
    %c0_i32_0 = arith.constant 0 : i32
    %c0_i32_1 = arith.constant 0 : i32
    return %c0_i32, %c0_i32_0 : i32, i32
  }
  func.func @transform_8(%arg0: i32, %arg1: i32) -> (i32, i32) {
    %c0_i32 = arith.constant 0 : i32
    %c0_i32_0 = arith.constant 0 : i32
    %c0_i32_1 = arith.constant 0 : i32
    return %c0_i32, %c0_i32_0 : i32, i32
  }
  func.func @transform_9(%arg0: i32, %arg1: i32) -> (i32, i32) {
    %c0_i32 = arith.constant 0 : i32
    %c0_i32_0 = arith.constant 0 : i32
    %c0_i32_1 = arith.constant 0 : i32
    return %c0_i32, %c0_i32_0 : i32, i32
  }
  func.func @transform_10(%arg0: i32, %arg1: i32) -> (i32, i32) {
    %c0_i32 = arith.constant 0 : i32
    %c0_i32_0 = arith.constant 0 : i32
    %c0_i32_1 = arith.constant 0 : i32
    return %c0_i32, %c0_i32_0 : i32, i32
  }
  func.func @transform_11(%arg0: i32, %arg1: i32) -> (i32, i32) {
    %c0_i32 = arith.constant 0 : i32
    %c0_i32_0 = arith.constant 0 : i32
    %c0_i32_1 = arith.constant 0 : i32
    return %c0_i32, %c0_i32_0 : i32, i32
  }
  func.func @transform_12(%arg0: i32, %arg1: i32) -> (i32, i32) {
    %c0_i32 = arith.constant 0 : i32
    %c0_i32_0 = arith.constant 0 : i32
    %c0_i32_1 = arith.constant 0 : i32
    return %c0_i32, %c0_i32_0 : i32, i32
  }
  func.func @transform_13(%arg0: i32, %arg1: i32) -> (i32, i32) {
    %c0_i32 = arith.constant 0 : i32
    %c0_i32_0 = arith.constant 0 : i32
    %c0_i32_1 = arith.constant 0 : i32
    return %c0_i32, %c0_i32_0 : i32, i32
  }
  func.func @transform_14(%arg0: i32, %arg1: i32) -> (i32, i32) {
    %c0_i32 = arith.constant 0 : i32
    %c0_i32_0 = arith.constant 0 : i32
    %c0_i32_1 = arith.constant 0 : i32
    return %c0_i32, %c0_i32_0 : i32, i32
  }
  func.func @transform_15(%arg0: i32, %arg1: i32) -> (i32, i32) {
    %c0_i32 = arith.constant 0 : i32
    %c0_i32_0 = arith.constant 0 : i32
    %c0_i32_1 = arith.constant 0 : i32
    return %c0_i32, %c0_i32_0 : i32, i32
  }
  func.func @transform_16(%arg0: i32, %arg1: i32) -> (i32, i32) {
    %c0_i32 = arith.constant 0 : i32
    %c0_i32_0 = arith.constant 0 : i32
    %c0_i32_1 = arith.constant 0 : i32
    return %c0_i32, %c0_i32_0 : i32, i32
  }
  func.func @transform_17(%arg0: i32, %arg1: i32) -> (i32, i32) {
    %c0_i32 = arith.constant 0 : i32
    %c0_i32_0 = arith.constant 0 : i32
    %c0_i32_1 = arith.constant 0 : i32
    return %c0_i32, %c0_i32_0 : i32, i32
  }
  func.func @transform_18(%arg0: i32, %arg1: i32) -> (i32, i32) {
    %c0_i32 = arith.constant 0 : i32
    %c0_i32_0 = arith.constant 0 : i32
    %c0_i32_1 = arith.constant 0 : i32
    return %c0_i32, %c0_i32_0 : i32, i32
  }
  func.func @transform_19(%arg0: i32, %arg1: i32) -> (i32, i32) {
    %c0_i32 = arith.constant 0 : i32
    %c0_i32_0 = arith.constant 0 : i32
    %c0_i32_1 = arith.constant 0 : i32
    return %c0_i32, %c0_i32_0 : i32, i32
  }
  func.func @transform_20(%arg0: i32, %arg1: i32) -> (i32, i32) {
    %c0_i32 = arith.constant 0 : i32
    %c0_i32_0 = arith.constant 0 : i32
    %c0_i32_1 = arith.constant 0 : i32
    return %c0_i32, %c0_i32_0 : i32, i32
  }
  func.func @transform_21(%arg0: i32, %arg1: i32) -> (i32, i32) {
    %c0_i32 = arith.constant 0 : i32
    return %arg0, %arg1 : i32, i32
  }
}

module attributes {stable_mosaic.version = 11 : i64} {
  func.func @_decoder_kernel(%arg0: i32, %arg1: i32, %arg2: memref<2x8x16xbf16, #tpu.memory_space<vmem>>, %arg3: memref<10x16xbf16, #tpu.memory_space<vmem>>, %arg4: memref<16x128xbf16, #tpu.memory_space<vmem>>, %arg5: memref<16x128xbf16, #tpu.memory_space<vmem>>, %arg6: memref<32x128xbf16, #tpu.memory_space<vmem>>, %arg7: memref<1x128xf32, #tpu.memory_space<vmem>>, %arg8: memref<32x128xbf16, #tpu.memory_space<vmem>>, %arg9: memref<32x128xbf16, #tpu.memory_space<vmem>>, %arg10: memref<1x128xf32, #tpu.memory_space<vmem>>, %arg11: memref<32x16xbf16, #tpu.memory_space<vmem>>, %arg12: memref<1x16xf32, #tpu.memory_space<vmem>>, %arg13: memref<16x16xbf16, #tpu.memory_space<vmem>>, %arg14: memref<1x16xf32, #tpu.memory_space<vmem>>, %arg15: memref<16x16xbf16, #tpu.memory_space<vmem>>, %arg16: memref<1x16xf32, #tpu.memory_space<vmem>>, %arg17: memref<32x16xbf16, #tpu.memory_space<vmem>>, %arg18: memref<1x16xf32, #tpu.memory_space<vmem>>, %arg19: memref<1x16xf32, #tpu.memory_space<vmem>>, %arg20: memref<1x16xf32, #tpu.memory_space<vmem>>, %arg21: memref<16x128xbf16, #tpu.memory_space<vmem>>, %arg22: memref<1x128xf32, #tpu.memory_space<vmem>>, %arg23: memref<2x128xbf16, #tpu.memory_space<vmem>>, %arg24: memref<2x8x16xf32, #tpu.memory_space<vmem>>, %arg25: memref<2x8x16xf32, #tpu.memory_space<vmem>>, %arg26: memref<2x32xf32, #tpu.memory_space<vmem>>, %arg27: memref<2x32xf32, #tpu.memory_space<vmem>>, %arg28: memref<2x32xf32, #tpu.memory_space<vmem>>, %arg29: memref<2x32xf32, #tpu.memory_space<vmem>>, %arg30: memref<2x16xf32, #tpu.memory_space<vmem>>, %arg31: memref<2x1xi32, #tpu.memory_space<vmem>>) attributes {dimension_semantics = [#tpu.dimension_semantics<parallel>, #tpu.dimension_semantics<arbitrary>], iteration_bounds = array<i64: 1, 8>, scalar_prefetch = 0 : i64, scratch_operands = 8 : i64, tpu.core_type = #tpu.core_type<tc>, window_params = [{transform_indices = @transform_0, window_bounds = array<i64: 2, 8, 16>}, {pipeline_mode = #tpu.pipeline_mode<synchronous>, transform_indices = @transform_1, window_bounds = array<i64: 10, 16>}, {pipeline_mode = #tpu.pipeline_mode<synchronous>, transform_indices = @transform_2, window_bounds = array<i64: 16, 128>}, {pipeline_mode = #tpu.pipeline_mode<synchronous>, transform_indices = @transform_3, window_bounds = array<i64: 16, 128>}, {pipeline_mode = #tpu.pipeline_mode<synchronous>, transform_indices = @transform_4, window_bounds = array<i64: 32, 128>}, {pipeline_mode = #tpu.pipeline_mode<synchronous>, transform_indices = @transform_5, window_bounds = array<i64: 1, 128>}, {pipeline_mode = #tpu.pipeline_mode<synchronous>, transform_indices = @transform_6, window_bounds = array<i64: 32, 128>}, {pipeline_mode = #tpu.pipeline_mode<synchronous>, transform_indices = @transform_7, window_bounds = array<i64: 32, 128>}, {pipeline_mode = #tpu.pipeline_mode<synchronous>, transform_indices = @transform_8, window_bounds = array<i64: 1, 128>}, {pipeline_mode = #tpu.pipeline_mode<synchronous>, transform_indices = @transform_9, window_bounds = array<i64: 32, 16>}, {pipeline_mode = #tpu.pipeline_mode<synchronous>, transform_indices = @transform_10, window_bounds = array<i64: 1, 16>}, {pipeline_mode = #tpu.pipeline_mode<synchronous>, transform_indices = @transform_11, window_bounds = array<i64: 16, 16>}, {pipeline_mode = #tpu.pipeline_mode<synchronous>, transform_indices = @transform_12, window_bounds = array<i64: 1, 16>}, {pipeline_mode = #tpu.pipeline_mode<synchronous>, transform_indices = @transform_13, window_bounds = array<i64: 16, 16>}, {pipeline_mode = #tpu.pipeline_mode<synchronous>, transform_indices = @transform_14, window_bounds = array<i64: 1, 16>}, {pipeline_mode = #tpu.pipeline_mode<synchronous>, transform_indices = @transform_15, window_bounds = array<i64: 32, 16>}, {pipeline_mode = #tpu.pipeline_mode<synchronous>, transform_indices = @transform_16, window_bounds = array<i64: 1, 16>}, {pipeline_mode = #tpu.pipeline_mode<synchronous>, transform_indices = @transform_17, window_bounds = array<i64: 1, 16>}, {pipeline_mode = #tpu.pipeline_mode<synchronous>, transform_indices = @transform_18, window_bounds = array<i64: 1, 16>}, {pipeline_mode = #tpu.pipeline_mode<synchronous>, transform_indices = @transform_19, window_bounds = array<i64: 16, 128>}, {pipeline_mode = #tpu.pipeline_mode<synchronous>, transform_indices = @transform_20, window_bounds = array<i64: 1, 128>}, {transform_indices = @transform_21, window_bounds = array<i64: 2, 128>}]} {
    %c0_i32 = arith.constant 0 : i32
    %0 = arith.cmpi eq, %arg1, %c0_i32 : i32
    %1 = arith.extui %0 : i1 to i32
    %c0_i32_0 = arith.constant 0 : i32
    %2 = arith.cmpi ne, %1, %c0_i32_0 : i32
    scf.if %2 {
      %c0_90 = arith.constant 0 : index
      %c0_91 = arith.constant 0 : index
      %c0_92 = arith.constant 0 : index
      %173 = vector.load %arg2[%c0_90, %c0_91, %c0_92] : memref<2x8x16xbf16, #tpu.memory_space<vmem>>, vector<2x8x16xbf16>
      %174 = vector.shape_cast %173 : vector<2x8x16xbf16> to vector<16x16xbf16>
      %c0_93 = arith.constant 0 : index
      %c0_94 = arith.constant 0 : index
      %175 = vector.load %arg13[%c0_93, %c0_94] : memref<16x16xbf16, #tpu.memory_space<vmem>>, vector<16x16xbf16>
      %cst_95 = arith.constant dense<0.000000e+00> : vector<16x16xf32>
      %176 = tpu.matmul %174, %175, %cst_95 {dimension_numbers = #tpu.dot_dimension_numbers<[1], [0], [0], [1], [0, 0, 1, 1], [], []>} : vector<16x16xbf16>, vector<16x16xbf16>, vector<16x16xf32> -> vector<16x16xf32>
      %c0_96 = arith.constant 0 : index
      %c0_97 = arith.constant 0 : index
      %177 = vector.load %arg14[%c0_96, %c0_97] : memref<1x16xf32, #tpu.memory_space<vmem>>, vector<1x16xf32>
      %178 = vector.broadcast %177 : vector<1x16xf32> to vector<16x16xf32>
      %179 = arith.addf %176, %178 : vector<16x16xf32>
      %180 = vector.shape_cast %179 : vector<16x16xf32> to vector<2x8x16xf32>
      %c0_98 = arith.constant 0 : index
      %c0_99 = arith.constant 0 : index
      %c0_100 = arith.constant 0 : index
      %181 = vector.load %arg24[%c0_98, %c0_99, %c0_100] : memref<2x8x16xf32, #tpu.memory_space<vmem>>, vector<2x8x16xf32>
      tpu.vector_store %arg24[%c0_98, %c0_99, %c0_100], %180 {strides = array<i32>} : memref<2x8x16xf32, #tpu.memory_space<vmem>>, vector<2x8x16xf32>,
      %c0_101 = arith.constant 0 : index
      %c0_102 = arith.constant 0 : index
      %182 = vector.load %arg15[%c0_101, %c0_102] : memref<16x16xbf16, #tpu.memory_space<vmem>>, vector<16x16xbf16>
      %cst_103 = arith.constant dense<0.000000e+00> : vector<16x16xf32>
      %183 = tpu.matmul %174, %182, %cst_103 {dimension_numbers = #tpu.dot_dimension_numbers<[1], [0], [0], [1], [0, 0, 1, 1], [], []>} : vector<16x16xbf16>, vector<16x16xbf16>, vector<16x16xf32> -> vector<16x16xf32>
      %c0_104 = arith.constant 0 : index
      %c0_105 = arith.constant 0 : index
      %184 = vector.load %arg16[%c0_104, %c0_105] : memref<1x16xf32, #tpu.memory_space<vmem>>, vector<1x16xf32>
      %185 = vector.broadcast %184 : vector<1x16xf32> to vector<16x16xf32>
      %186 = arith.addf %183, %185 : vector<16x16xf32>
      %187 = vector.shape_cast %186 : vector<16x16xf32> to vector<2x8x16xf32>
      %c0_106 = arith.constant 0 : index
      %c0_107 = arith.constant 0 : index
      %c0_108 = arith.constant 0 : index
      %188 = vector.load %arg25[%c0_106, %c0_107, %c0_108] : memref<2x8x16xf32, #tpu.memory_space<vmem>>, vector<2x8x16xf32>
      tpu.vector_store %arg25[%c0_106, %c0_107, %c0_108], %187 {strides = array<i32>} : memref<2x8x16xf32, #tpu.memory_space<vmem>>, vector<2x8x16xf32>,
      %cst_109 = arith.constant 0.000000e+00 : f32
      %189 = vector.broadcast %cst_109 : f32 to vector<2x32xf32>
      %c0_110 = arith.constant 0 : index
      %c0_111 = arith.constant 0 : index
      %190 = vector.load %arg26[%c0_110, %c0_111] : memref<2x32xf32, #tpu.memory_space<vmem>>, vector<2x32xf32>
      tpu.vector_store %arg26[%c0_110, %c0_111], %189 {strides = array<i32>} : memref<2x32xf32, #tpu.memory_space<vmem>>, vector<2x32xf32>,
      %cst_112 = arith.constant 0.000000e+00 : f32
      %191 = vector.broadcast %cst_112 : f32 to vector<2x32xf32>
      %c0_113 = arith.constant 0 : index
      %c0_114 = arith.constant 0 : index
      %192 = vector.load %arg27[%c0_113, %c0_114] : memref<2x32xf32, #tpu.memory_space<vmem>>, vector<2x32xf32>
      tpu.vector_store %arg27[%c0_113, %c0_114], %191 {strides = array<i32>} : memref<2x32xf32, #tpu.memory_space<vmem>>, vector<2x32xf32>,
      %cst_115 = arith.constant 0.000000e+00 : f32
      %193 = vector.broadcast %cst_115 : f32 to vector<2x32xf32>
      %c0_116 = arith.constant 0 : index
      %c0_117 = arith.constant 0 : index
      %194 = vector.load %arg28[%c0_116, %c0_117] : memref<2x32xf32, #tpu.memory_space<vmem>>, vector<2x32xf32>
      tpu.vector_store %arg28[%c0_116, %c0_117], %193 {strides = array<i32>} : memref<2x32xf32, #tpu.memory_space<vmem>>, vector<2x32xf32>,
      %cst_118 = arith.constant 0.000000e+00 : f32
      %195 = vector.broadcast %cst_118 : f32 to vector<2x32xf32>
      %c0_119 = arith.constant 0 : index
      %c0_120 = arith.constant 0 : index
      %196 = vector.load %arg29[%c0_119, %c0_120] : memref<2x32xf32, #tpu.memory_space<vmem>>, vector<2x32xf32>
      tpu.vector_store %arg29[%c0_119, %c0_120], %195 {strides = array<i32>} : memref<2x32xf32, #tpu.memory_space<vmem>>, vector<2x32xf32>,
      %cst_121 = arith.constant 0.000000e+00 : f32
      %197 = vector.broadcast %cst_121 : f32 to vector<2x16xf32>
      %c0_122 = arith.constant 0 : index
      %c0_123 = arith.constant 0 : index
      %198 = vector.load %arg30[%c0_122, %c0_123] : memref<2x16xf32, #tpu.memory_space<vmem>>, vector<2x16xf32>
      tpu.vector_store %arg30[%c0_122, %c0_123], %197 {strides = array<i32>} : memref<2x16xf32, #tpu.memory_space<vmem>>, vector<2x16xf32>,
      %c0_i32_124 = arith.constant 0 : i32
      %199 = vector.broadcast %c0_i32_124 : i32 to vector<2x1xi32>
      %c0_125 = arith.constant 0 : index
      %c0_126 = arith.constant 0 : index
      %200 = vector.load %arg31[%c0_125, %c0_126] : memref<2x1xi32, #tpu.memory_space<vmem>>, vector<2x1xi32>
      tpu.vector_store %arg31[%c0_125, %c0_126], %199 {strides = array<i32>} : memref<2x1xi32, #tpu.memory_space<vmem>>, vector<2x1xi32>,
    } else {
    }
    %3 = tpu.iota {dimensions = array<i32: 1>} : vector<2x10xi32>
    %c0 = arith.constant 0 : index
    %c0_1 = arith.constant 0 : index
    %4 = vector.load %arg31[%c0, %c0_1] : memref<2x1xi32, #tpu.memory_space<vmem>>, vector<2x1xi32>
    %5 = vector.broadcast %4 : vector<2x1xi32> to vector<2x10xi32>
    %6 = arith.cmpi eq, %3, %5 : vector<2x10xi32>
    %7 = arith.extui %6 : vector<2x10xi1> to vector<2x10xi32>
    %8 = arith.sitofp %7 : vector<2x10xi32> to vector<2x10xf32>
    %9 = arith.truncf %8 : vector<2x10xf32> to vector<2x10xbf16>
    %c0_2 = arith.constant 0 : index
    %c0_3 = arith.constant 0 : index
    %10 = vector.load %arg3[%c0_2, %c0_3] : memref<10x16xbf16, #tpu.memory_space<vmem>>, vector<10x16xbf16>
    %cst = arith.constant dense<0.000000e+00> : vector<2x16xf32>
    %11 = tpu.matmul %9, %10, %cst {dimension_numbers = #tpu.dot_dimension_numbers<[1], [0], [0], [1], [0, 0, 1, 1], [], []>} : vector<2x10xbf16>, vector<10x16xbf16>, vector<2x16xf32> -> vector<2x16xf32>
    %c0_4 = arith.constant 0 : index
    %c0_5 = arith.constant 0 : index
    %12 = vector.load %arg30[%c0_4, %c0_5] : memref<2x16xf32, #tpu.memory_space<vmem>>, vector<2x16xf32>
    %13 = arith.truncf %11 : vector<2x16xf32> to vector<2x16xbf16>
    %c0_6 = arith.constant 0 : index
    %c0_7 = arith.constant 0 : index
    %14 = vector.load %arg4[%c0_6, %c0_7] : memref<16x128xbf16, #tpu.memory_space<vmem>>, vector<16x128xbf16>
    %cst_8 = arith.constant dense<0.000000e+00> : vector<2x128xf32>
    %15 = tpu.matmul %13, %14, %cst_8 {dimension_numbers = #tpu.dot_dimension_numbers<[1], [0], [0], [1], [0, 0, 1, 1], [], []>} : vector<2x16xbf16>, vector<16x128xbf16>, vector<2x128xf32> -> vector<2x128xf32>
    %16 = arith.truncf %12 : vector<2x16xf32> to vector<2x16xbf16>
    %c0_9 = arith.constant 0 : index
    %c0_10 = arith.constant 0 : index
    %17 = vector.load %arg5[%c0_9, %c0_10] : memref<16x128xbf16, #tpu.memory_space<vmem>>, vector<16x128xbf16>
    %cst_11 = arith.constant dense<0.000000e+00> : vector<2x128xf32>
    %18 = tpu.matmul %16, %17, %cst_11 {dimension_numbers = #tpu.dot_dimension_numbers<[1], [0], [0], [1], [0, 0, 1, 1], [], []>} : vector<2x16xbf16>, vector<16x128xbf16>, vector<2x128xf32> -> vector<2x128xf32>
    %19 = arith.addf %15, %18 : vector<2x128xf32>
    %c0_12 = arith.constant 0 : index
    %c0_13 = arith.constant 0 : index
    %20 = vector.load %arg26[%c0_12, %c0_13] : memref<2x32xf32, #tpu.memory_space<vmem>>, vector<2x32xf32>
    %c0_14 = arith.constant 0 : index
    %c0_15 = arith.constant 0 : index
    %21 = vector.load %arg27[%c0_14, %c0_15] : memref<2x32xf32, #tpu.memory_space<vmem>>, vector<2x32xf32>
    %c0_16 = arith.constant 0 : index
    %c0_17 = arith.constant 0 : index
    %22 = vector.load %arg6[%c0_16, %c0_17] : memref<32x128xbf16, #tpu.memory_space<vmem>>, vector<32x128xbf16>
    %c0_18 = arith.constant 0 : index
    %c0_19 = arith.constant 0 : index
    %23 = vector.load %arg7[%c0_18, %c0_19] : memref<1x128xf32, #tpu.memory_space<vmem>>, vector<1x128xf32>
    %24 = arith.truncf %20 : vector<2x32xf32> to vector<2x32xbf16>
    %cst_20 = arith.constant dense<0.000000e+00> : vector<2x128xf32>
    %25 = tpu.matmul %24, %22, %cst_20 {dimension_numbers = #tpu.dot_dimension_numbers<[1], [0], [0], [1], [0, 0, 1, 1], [], []>} : vector<2x32xbf16>, vector<32x128xbf16>, vector<2x128xf32> -> vector<2x128xf32>
    %26 = arith.addf %19, %25 : vector<2x128xf32>
    %27 = vector.broadcast %23 : vector<1x128xf32> to vector<2x128xf32>
    %28 = arith.addf %26, %27 : vector<2x128xf32>
    %29 = vector.extract_strided_slice %28 {offsets = [0, 0], sizes = [2, 32], strides = [1, 1]} : vector<2x128xf32> to vector<2x32xf32>
    %30 = arith.negf %29 : vector<2x32xf32>
    %31 = math.exp %30 : vector<2x32xf32>
    %cst_21 = arith.constant 1.000000e+00 : f32
    %32 = vector.broadcast %cst_21 : f32 to vector<2x32xf32>
    %33 = arith.addf %32, %31 : vector<2x32xf32>
    %34 = arith.divf %32, %33 : vector<2x32xf32>
    %35 = vector.extract_strided_slice %28 {offsets = [0, 32], sizes = [2, 32], strides = [1, 1]} : vector<2x128xf32> to vector<2x32xf32>
    %36 = arith.negf %35 : vector<2x32xf32>
    %37 = math.exp %36 : vector<2x32xf32>
    %cst_22 = arith.constant 1.000000e+00 : f32
    %38 = vector.broadcast %cst_22 : f32 to vector<2x32xf32>
    %39 = arith.addf %38, %37 : vector<2x32xf32>
    %40 = arith.divf %38, %39 : vector<2x32xf32>
    %41 = vector.extract_strided_slice %28 {offsets = [0, 64], sizes = [2, 32], strides = [1, 1]} : vector<2x128xf32> to vector<2x32xf32>
    %42 = math.tanh %41 : vector<2x32xf32>
    %43 = vector.extract_strided_slice %28 {offsets = [0, 96], sizes = [2, 32], strides = [1, 1]} : vector<2x128xf32> to vector<2x32xf32>
    %44 = arith.negf %43 : vector<2x32xf32>
    %45 = math.exp %44 : vector<2x32xf32>
    %cst_23 = arith.constant 1.000000e+00 : f32
    %46 = vector.broadcast %cst_23 : f32 to vector<2x32xf32>
    %47 = arith.addf %46, %45 : vector<2x32xf32>
    %48 = arith.divf %46, %47 : vector<2x32xf32>
    %49 = arith.mulf %40, %21 : vector<2x32xf32>
    %50 = arith.mulf %34, %42 : vector<2x32xf32>
    %51 = arith.addf %49, %50 : vector<2x32xf32>
    %52 = math.tanh %51 : vector<2x32xf32>
    %53 = arith.mulf %48, %52 : vector<2x32xf32>
    %54 = arith.truncf %53 : vector<2x32xf32> to vector<2x32xbf16>
    %c0_24 = arith.constant 0 : index
    %c0_25 = arith.constant 0 : index
    %55 = vector.load %arg8[%c0_24, %c0_25] : memref<32x128xbf16, #tpu.memory_space<vmem>>, vector<32x128xbf16>
    %cst_26 = arith.constant dense<0.000000e+00> : vector<2x128xf32>
    %56 = tpu.matmul %54, %55, %cst_26 {dimension_numbers = #tpu.dot_dimension_numbers<[1], [0], [0], [1], [0, 0, 1, 1], [], []>} : vector<2x32xbf16>, vector<32x128xbf16>, vector<2x128xf32> -> vector<2x128xf32>
    %c0_27 = arith.constant 0 : index
    %c0_28 = arith.constant 0 : index
    %57 = vector.load %arg28[%c0_27, %c0_28] : memref<2x32xf32, #tpu.memory_space<vmem>>, vector<2x32xf32>
    %c0_29 = arith.constant 0 : index
    %c0_30 = arith.constant 0 : index
    %58 = vector.load %arg29[%c0_29, %c0_30] : memref<2x32xf32, #tpu.memory_space<vmem>>, vector<2x32xf32>
    %c0_31 = arith.constant 0 : index
    %c0_32 = arith.constant 0 : index
    %59 = vector.load %arg9[%c0_31, %c0_32] : memref<32x128xbf16, #tpu.memory_space<vmem>>, vector<32x128xbf16>
    %c0_33 = arith.constant 0 : index
    %c0_34 = arith.constant 0 : index
    %60 = vector.load %arg10[%c0_33, %c0_34] : memref<1x128xf32, #tpu.memory_space<vmem>>, vector<1x128xf32>
    %61 = arith.truncf %57 : vector<2x32xf32> to vector<2x32xbf16>
    %cst_35 = arith.constant dense<0.000000e+00> : vector<2x128xf32>
    %62 = tpu.matmul %61, %59, %cst_35 {dimension_numbers = #tpu.dot_dimension_numbers<[1], [0], [0], [1], [0, 0, 1, 1], [], []>} : vector<2x32xbf16>, vector<32x128xbf16>, vector<2x128xf32> -> vector<2x128xf32>
    %63 = arith.addf %56, %62 : vector<2x128xf32>
    %64 = vector.broadcast %60 : vector<1x128xf32> to vector<2x128xf32>
    %65 = arith.addf %63, %64 : vector<2x128xf32>
    %66 = vector.extract_strided_slice %65 {offsets = [0, 0], sizes = [2, 32], strides = [1, 1]} : vector<2x128xf32> to vector<2x32xf32>
    %67 = arith.negf %66 : vector<2x32xf32>
    %68 = math.exp %67 : vector<2x32xf32>
    %cst_36 = arith.constant 1.000000e+00 : f32
    %69 = vector.broadcast %cst_36 : f32 to vector<2x32xf32>
    %70 = arith.addf %69, %68 : vector<2x32xf32>
    %71 = arith.divf %69, %70 : vector<2x32xf32>
    %72 = vector.extract_strided_slice %65 {offsets = [0, 32], sizes = [2, 32], strides = [1, 1]} : vector<2x128xf32> to vector<2x32xf32>
    %73 = arith.negf %72 : vector<2x32xf32>
    %74 = math.exp %73 : vector<2x32xf32>
    %cst_37 = arith.constant 1.000000e+00 : f32
    %75 = vector.broadcast %cst_37 : f32 to vector<2x32xf32>
    %76 = arith.addf %75, %74 : vector<2x32xf32>
    %77 = arith.divf %75, %76 : vector<2x32xf32>
    %78 = vector.extract_strided_slice %65 {offsets = [0, 64], sizes = [2, 32], strides = [1, 1]} : vector<2x128xf32> to vector<2x32xf32>
    %79 = math.tanh %78 : vector<2x32xf32>
    %80 = vector.extract_strided_slice %65 {offsets = [0, 96], sizes = [2, 32], strides = [1, 1]} : vector<2x128xf32> to vector<2x32xf32>
    %81 = arith.negf %80 : vector<2x32xf32>
    %82 = math.exp %81 : vector<2x32xf32>
    %cst_38 = arith.constant 1.000000e+00 : f32
    %83 = vector.broadcast %cst_38 : f32 to vector<2x32xf32>
    %84 = arith.addf %83, %82 : vector<2x32xf32>
    %85 = arith.divf %83, %84 : vector<2x32xf32>
    %86 = arith.mulf %77, %58 : vector<2x32xf32>
    %87 = arith.mulf %71, %79 : vector<2x32xf32>
    %88 = arith.addf %86, %87 : vector<2x32xf32>
    %89 = math.tanh %88 : vector<2x32xf32>
    %90 = arith.mulf %85, %89 : vector<2x32xf32>
    %91 = arith.truncf %90 : vector<2x32xf32> to vector<2x32xbf16>
    %c0_39 = arith.constant 0 : index
    %c0_40 = arith.constant 0 : index
    %92 = vector.load %arg11[%c0_39, %c0_40] : memref<32x16xbf16, #tpu.memory_space<vmem>>, vector<32x16xbf16>
    %cst_41 = arith.constant dense<0.000000e+00> : vector<2x16xf32>
    %93 = tpu.matmul %91, %92, %cst_41 {dimension_numbers = #tpu.dot_dimension_numbers<[1], [0], [0], [1], [0, 0, 1, 1], [], []>} : vector<2x32xbf16>, vector<32x16xbf16>, vector<2x16xf32> -> vector<2x16xf32>
    %c0_42 = arith.constant 0 : index
    %c0_43 = arith.constant 0 : index
    %94 = vector.load %arg12[%c0_42, %c0_43] : memref<1x16xf32, #tpu.memory_space<vmem>>, vector<1x16xf32>
    %95 = vector.broadcast %94 : vector<1x16xf32> to vector<2x16xf32>
    %96 = arith.addf %93, %95 : vector<2x16xf32>
    %97 = vector.shape_cast %96 : vector<2x16xf32> to vector<2x1x16xf32>
    %c0_44 = arith.constant 0 : index
    %c0_45 = arith.constant 0 : index
    %c0_46 = arith.constant 0 : index
    %98 = vector.load %arg24[%c0_44, %c0_45, %c0_46] : memref<2x8x16xf32, #tpu.memory_space<vmem>>, vector<2x8x16xf32>
    %99 = vector.broadcast %97 : vector<2x1x16xf32> to vector<2x8x16xf32>
    %100 = arith.mulf %99, %98 : vector<2x8x16xf32>
    %cst_47 = arith.constant dense<0.000000e+00> : vector<2x8xf32>
    %101 = vector.multi_reduction <add>, %100, %cst_47 [2] : vector<2x8x16xf32> to vector<2x8xf32>
    %cst_48 = arith.constant dense<0xFF800000> : vector<2xf32>
    %102 = vector.multi_reduction <maximumf>, %101, %cst_48 [1] : vector<2x8xf32> to vector<2xf32>
    %103 = vector.shape_cast %102 : vector<2xf32> to vector<2x1xf32>
    %104 = vector.broadcast %103 : vector<2x1xf32> to vector<2x8xf32>
    %105 = arith.subf %101, %104 : vector<2x8xf32>
    %106 = math.exp %105 : vector<2x8xf32>
    %cst_49 = arith.constant dense<0.000000e+00> : vector<2xf32>
    %107 = vector.multi_reduction <add>, %106, %cst_49 [1] : vector<2x8xf32> to vector<2xf32>
    %108 = vector.shape_cast %107 : vector<2xf32> to vector<2x1xf32>
    %109 = vector.broadcast %108 : vector<2x1xf32> to vector<2x8xf32>
    %110 = arith.divf %106, %109 : vector<2x8xf32>
    %111 = vector.shape_cast %110 : vector<2x8xf32> to vector<2x8x1xf32>
    %c0_50 = arith.constant 0 : index
    %c0_51 = arith.constant 0 : index
    %c0_52 = arith.constant 0 : index
    %112 = vector.load %arg25[%c0_50, %c0_51, %c0_52] : memref<2x8x16xf32, #tpu.memory_space<vmem>>, vector<2x8x16xf32>
    %113 = vector.broadcast %111 : vector<2x8x1xf32> to vector<2x8x16xf32>
    %114 = arith.mulf %113, %112 : vector<2x8x16xf32>
    %cst_53 = arith.constant dense<0.000000e+00> : vector<2x16xf32>
    %115 = vector.multi_reduction <add>, %114, %cst_53 [1] : vector<2x8x16xf32> to vector<2x16xf32>
    %116 = arith.truncf %90 : vector<2x32xf32> to vector<2x32xbf16>
    %c0_54 = arith.constant 0 : index
    %c0_55 = arith.constant 0 : index
    %117 = vector.load %arg17[%c0_54, %c0_55] : memref<32x16xbf16, #tpu.memory_space<vmem>>, vector<32x16xbf16>
    %cst_56 = arith.constant dense<0.000000e+00> : vector<2x16xf32>
    %118 = tpu.matmul %116, %117, %cst_56 {dimension_numbers = #tpu.dot_dimension_numbers<[1], [0], [0], [1], [0, 0, 1, 1], [], []>} : vector<2x32xbf16>, vector<32x16xbf16>, vector<2x16xf32> -> vector<2x16xf32>
    %c0_57 = arith.constant 0 : index
    %c0_58 = arith.constant 0 : index
    %119 = vector.load %arg18[%c0_57, %c0_58] : memref<1x16xf32, #tpu.memory_space<vmem>>, vector<1x16xf32>
    %120 = vector.broadcast %119 : vector<1x16xf32> to vector<2x16xf32>
    %121 = arith.addf %118, %120 : vector<2x16xf32>
    %cst_59 = arith.constant dense<0.000000e+00> : vector<2xf32>
    %122 = vector.multi_reduction <add>, %121, %cst_59 [1] : vector<2x16xf32> to vector<2xf32>
    %123 = vector.shape_cast %122 : vector<2xf32> to vector<2x1xf32>
    %cst_60 = arith.constant 1.600000e+01 : f32
    %124 = vector.broadcast %cst_60 : f32 to vector<2x1xf32>
    %125 = arith.divf %123, %124 : vector<2x1xf32>
    %126 = vector.broadcast %125 : vector<2x1xf32> to vector<2x16xf32>
    %127 = arith.subf %121, %126 : vector<2x16xf32>
    %128 = vector.broadcast %125 : vector<2x1xf32> to vector<2x16xf32>
    %129 = arith.subf %121, %128 : vector<2x16xf32>
    %130 = arith.mulf %127, %129 : vector<2x16xf32>
    %cst_61 = arith.constant dense<0.000000e+00> : vector<2xf32>
    %131 = vector.multi_reduction <add>, %130, %cst_61 [1] : vector<2x16xf32> to vector<2xf32>
    %132 = vector.shape_cast %131 : vector<2xf32> to vector<2x1xf32>
    %cst_62 = arith.constant 1.600000e+01 : f32
    %133 = vector.broadcast %cst_62 : f32 to vector<2x1xf32>
    %134 = arith.divf %132, %133 : vector<2x1xf32>
    %135 = vector.broadcast %125 : vector<2x1xf32> to vector<2x16xf32>
    %136 = arith.subf %121, %135 : vector<2x16xf32>
    %cst_63 = arith.constant 9.99999974E-6 : f32
    %137 = vector.broadcast %cst_63 : f32 to vector<2x1xf32>
    %138 = arith.addf %134, %137 : vector<2x1xf32>
    %139 = math.rsqrt %138 : vector<2x1xf32>
    %140 = vector.broadcast %139 : vector<2x1xf32> to vector<2x16xf32>
    %141 = arith.mulf %136, %140 : vector<2x16xf32>
    %c0_64 = arith.constant 0 : index
    %c0_65 = arith.constant 0 : index
    %142 = vector.load %arg19[%c0_64, %c0_65] : memref<1x16xf32, #tpu.memory_space<vmem>>, vector<1x16xf32>
    %143 = vector.broadcast %142 : vector<1x16xf32> to vector<2x16xf32>
    %144 = arith.mulf %141, %143 : vector<2x16xf32>
    %c0_66 = arith.constant 0 : index
    %c0_67 = arith.constant 0 : index
    %145 = vector.load %arg20[%c0_66, %c0_67] : memref<1x16xf32, #tpu.memory_space<vmem>>, vector<1x16xf32>
    %146 = vector.broadcast %145 : vector<1x16xf32> to vector<2x16xf32>
    %147 = arith.addf %144, %146 : vector<2x16xf32>
    %cst_68 = arith.constant 0.000000e+00 : f32
    %148 = vector.broadcast %cst_68 : f32 to vector<2x16xf32>
    %149 = arith.maximumf %147, %148 : vector<2x16xf32>
    %150 = arith.truncf %149 : vector<2x16xf32> to vector<2x16xbf16>
    %c0_69 = arith.constant 0 : index
    %c0_70 = arith.constant 0 : index
    %151 = vector.load %arg21[%c0_69, %c0_70] : memref<16x128xbf16, #tpu.memory_space<vmem>>, vector<16x128xbf16>
    %cst_71 = arith.constant dense<0.000000e+00> : vector<2x128xf32>
    %152 = tpu.matmul %150, %151, %cst_71 {dimension_numbers = #tpu.dot_dimension_numbers<[1], [0], [0], [1], [0, 0, 1, 1], [], []>} : vector<2x16xbf16>, vector<16x128xbf16>, vector<2x128xf32> -> vector<2x128xf32>
    %c0_72 = arith.constant 0 : index
    %c0_73 = arith.constant 0 : index
    %153 = vector.load %arg22[%c0_72, %c0_73] : memref<1x128xf32, #tpu.memory_space<vmem>>, vector<1x128xf32>
    %154 = vector.broadcast %153 : vector<1x128xf32> to vector<2x128xf32>
    %155 = arith.addf %152, %154 : vector<2x128xf32>
    %156 = arith.truncf %155 : vector<2x128xf32> to vector<2x128xbf16>
    %c0_74 = arith.constant 0 : index
    %c0_75 = arith.constant 0 : index
    %157 = vector.load %arg23[%c0_74, %c0_75] : memref<2x128xbf16, #tpu.memory_space<vmem>>, vector<2x128xbf16>
    tpu.vector_store %arg23[%c0_74, %c0_75], %156 {strides = array<i32>} : memref<2x128xbf16, #tpu.memory_space<vmem>>, vector<2x128xbf16>,
    %158 = tpu.iota {dimensions = array<i32: 1>} : vector<2x128xi32>
    %cst_76 = arith.constant dense<0xFF800000> : vector<2xf32>
    %159 = vector.multi_reduction <maximumf>, %155, %cst_76 [1] : vector<2x128xf32> to vector<2xf32>
    %160 = vector.shape_cast %159 : vector<2xf32> to vector<2x1xf32>
    %161 = vector.broadcast %160 : vector<2x1xf32> to vector<2x128xf32>
    %162 = arith.cmpf oeq, %155, %161 : vector<2x128xf32>
    %c1073741824_i32 = arith.constant 1073741824 : i32
    %163 = vector.broadcast %c1073741824_i32 : i32 to vector<2x128xi32>
    %164 = arith.select %162, %158, %163 : vector<2x128xi1>, vector<2x128xi32>
    %cst_77 = arith.constant dense<2147483647> : vector<2xi32>
    %165 = vector.multi_reduction <minsi>, %164, %cst_77 [1] : vector<2x128xi32> to vector<2xi32>
    %166 = vector.shape_cast %165 : vector<2xi32> to vector<2x1xi32>
    %c0_78 = arith.constant 0 : index
    %c0_79 = arith.constant 0 : index
    %167 = vector.load %arg31[%c0_78, %c0_79] : memref<2x1xi32, #tpu.memory_space<vmem>>, vector<2x1xi32>
    tpu.vector_store %arg31[%c0_78, %c0_79], %166 {strides = array<i32>} : memref<2x1xi32, #tpu.memory_space<vmem>>, vector<2x1xi32>,
    %c0_80 = arith.constant 0 : index
    %c0_81 = arith.constant 0 : index
    %168 = vector.load %arg26[%c0_80, %c0_81] : memref<2x32xf32, #tpu.memory_space<vmem>>, vector<2x32xf32>
    tpu.vector_store %arg26[%c0_80, %c0_81], %53 {strides = array<i32>} : memref<2x32xf32, #tpu.memory_space<vmem>>, vector<2x32xf32>,
    %c0_82 = arith.constant 0 : index
    %c0_83 = arith.constant 0 : index
    %169 = vector.load %arg27[%c0_82, %c0_83] : memref<2x32xf32, #tpu.memory_space<vmem>>, vector<2x32xf32>
    tpu.vector_store %arg27[%c0_82, %c0_83], %51 {strides = array<i32>} : memref<2x32xf32, #tpu.memory_space<vmem>>, vector<2x32xf32>,
    %c0_84 = arith.constant 0 : index
    %c0_85 = arith.constant 0 : index
    %170 = vector.load %arg28[%c0_84, %c0_85] : memref<2x32xf32, #tpu.memory_space<vmem>>, vector<2x32xf32>
    tpu.vector_store %arg28[%c0_84, %c0_85], %90 {strides = array<i32>} : memref<2x32xf32, #tpu.memory_space<vmem>>, vector<2x32xf32>,
    %c0_86 = arith.constant 0 : index
    %c0_87 = arith.constant 0 : index
    %171 = vector.load %arg29[%c0_86, %c0_87] : memref<2x32xf32, #tpu.memory_space<vmem>>, vector<2x32xf32>
    tpu.vector_store %arg29[%c0_86, %c0_87], %88 {strides = array<i32>} : memref<2x32xf32, #tpu.memory_space<vmem>>, vector<2x32xf32>,
    %c0_88 = arith.constant 0 : index
    %c0_89 = arith.constant 0 : index
    %172 = vector.load %arg30[%c0_88, %c0_89] : memref<2x16xf32, #tpu.memory_space<vmem>>, vector<2x16xf32>
    tpu.vector_store %arg30[%c0_88, %c0_89], %115 {strides = array<i32>} : memref<2x16xf32, #tpu.memory_space<vmem>>, vector<2x16xf32>,
    return
  }
  func.func @transform_0(%arg0: i32, %arg1: i32) -> (i32, i32, i32) {
    %c0_i32 = arith.constant 0 : i32
    %c0_i32_0 = arith.constant 0 : i32
    %c0_i32_1 = arith.constant 0 : i32
    return %arg0, %c0_i32, %c0_i32_0 : i32, i32, i32
  }
  func.func @transform_1(%arg0: i32, %arg1: i32) -> (i32, i32) {
    %c0_i32 = arith.constant 0 : i32
    %c0_i32_0 = arith.constant 0 : i32
    %c0_i32_1 = arith.constant 0 : i32
    return %c0_i32, %c0_i32_0 : i32, i32
  }
  func.func @transform_2(%arg0: i32, %arg1: i32) -> (i32, i32) {
    %c0_i32 = arith.constant 0 : i32
    %c0_i32_0 = arith.constant 0 : i32
    %c0_i32_1 = arith.constant 0 : i32
    return %c0_i32, %c0_i32_0 : i32, i32
  }
  func.func @transform_3(%arg0: i32, %arg1: i32) -> (i32, i32) {
    %c0_i32 = arith.constant 0 : i32
    %c0_i32_0 = arith.constant 0 : i32
    %c0_i32_1 = arith.constant 0 : i32
    return %c0_i32, %c0_i32_0 : i32, i32
  }
  func.func @transform_4(%arg0: i32, %arg1: i32) -> (i32, i32) {
    %c0_i32 = arith.constant 0 : i32
    %c0_i32_0 = arith.constant 0 : i32
    %c0_i32_1 = arith.constant 0 : i32
    return %c0_i32, %c0_i32_0 : i32, i32
  }
  func.func @transform_5(%arg0: i32, %arg1: i32) -> (i32, i32) {
    %c0_i32 = arith.constant 0 : i32
    %c0_i32_0 = arith.constant 0 : i32
    %c0_i32_1 = arith.constant 0 : i32
    return %c0_i32, %c0_i32_0 : i32, i32
  }
  func.func @transform_6(%arg0: i32, %arg1: i32) -> (i32, i32) {
    %c0_i32 = arith.constant 0 : i32
    %c0_i32_0 = arith.constant 0 : i32
    %c0_i32_1 = arith.constant 0 : i32
    return %c0_i32, %c0_i32_0 : i32, i32
  }
  func.func @transform_7(%arg0: i32, %arg1: i32) -> (i32, i32) {
    %c0_i32 = arith.constant 0 : i32
    %c0_i32_0 = arith.constant 0 : i32
    %c0_i32_1 = arith.constant 0 : i32
    return %c0_i32, %c0_i32_0 : i32, i32
  }
  func.func @transform_8(%arg0: i32, %arg1: i32) -> (i32, i32) {
    %c0_i32 = arith.constant 0 : i32
    %c0_i32_0 = arith.constant 0 : i32
    %c0_i32_1 = arith.constant 0 : i32
    return %c0_i32, %c0_i32_0 : i32, i32
  }
  func.func @transform_9(%arg0: i32, %arg1: i32) -> (i32, i32) {
    %c0_i32 = arith.constant 0 : i32
    %c0_i32_0 = arith.constant 0 : i32
    %c0_i32_1 = arith.constant 0 : i32
    return %c0_i32, %c0_i32_0 : i32, i32
  }
  func.func @transform_10(%arg0: i32, %arg1: i32) -> (i32, i32) {
    %c0_i32 = arith.constant 0 : i32
    %c0_i32_0 = arith.constant 0 : i32
    %c0_i32_1 = arith.constant 0 : i32
    return %c0_i32, %c0_i32_0 : i32, i32
  }
  func.func @transform_11(%arg0: i32, %arg1: i32) -> (i32, i32) {
    %c0_i32 = arith.constant 0 : i32
    %c0_i32_0 = arith.constant 0 : i32
    %c0_i32_1 = arith.constant 0 : i32
    return %c0_i32, %c0_i32_0 : i32, i32
  }
  func.func @transform_12(%arg0: i32, %arg1: i32) -> (i32, i32) {
    %c0_i32 = arith.constant 0 : i32
    %c0_i32_0 = arith.constant 0 : i32
    %c0_i32_1 = arith.constant 0 : i32
    return %c0_i32, %c0_i32_0 : i32, i32
  }
  func.func @transform_13(%arg0: i32, %arg1: i32) -> (i32, i32) {
    %c0_i32 = arith.constant 0 : i32
    %c0_i32_0 = arith.constant 0 : i32
    %c0_i32_1 = arith.constant 0 : i32
    return %c0_i32, %c0_i32_0 : i32, i32
  }
  func.func @transform_14(%arg0: i32, %arg1: i32) -> (i32, i32) {
    %c0_i32 = arith.constant 0 : i32
    %c0_i32_0 = arith.constant 0 : i32
    %c0_i32_1 = arith.constant 0 : i32
    return %c0_i32, %c0_i32_0 : i32, i32
  }
  func.func @transform_15(%arg0: i32, %arg1: i32) -> (i32, i32) {
    %c0_i32 = arith.constant 0 : i32
    %c0_i32_0 = arith.constant 0 : i32
    %c0_i32_1 = arith.constant 0 : i32
    return %c0_i32, %c0_i32_0 : i32, i32
  }
  func.func @transform_16(%arg0: i32, %arg1: i32) -> (i32, i32) {
    %c0_i32 = arith.constant 0 : i32
    %c0_i32_0 = arith.constant 0 : i32
    %c0_i32_1 = arith.constant 0 : i32
    return %c0_i32, %c0_i32_0 : i32, i32
  }
  func.func @transform_17(%arg0: i32, %arg1: i32) -> (i32, i32) {
    %c0_i32 = arith.constant 0 : i32
    %c0_i32_0 = arith.constant 0 : i32
    %c0_i32_1 = arith.constant 0 : i32
    return %c0_i32, %c0_i32_0 : i32, i32
  }
  func.func @transform_18(%arg0: i32, %arg1: i32) -> (i32, i32) {
    %c0_i32 = arith.constant 0 : i32
    %c0_i32_0 = arith.constant 0 : i32
    %c0_i32_1 = arith.constant 0 : i32
    return %c0_i32, %c0_i32_0 : i32, i32
  }
  func.func @transform_19(%arg0: i32, %arg1: i32) -> (i32, i32) {
    %c0_i32 = arith.constant 0 : i32
    %c0_i32_0 = arith.constant 0 : i32
    %c0_i32_1 = arith.constant 0 : i32
    return %c0_i32, %c0_i32_0 : i32, i32
  }
  func.func @transform_20(%arg0: i32, %arg1: i32) -> (i32, i32) {
    %c0_i32 = arith.constant 0 : i32
    %c0_i32_0 = arith.constant 0 : i32
    %c0_i32_1 = arith.constant 0 : i32
    return %c0_i32, %c0_i32_0 : i32, i32
  }
  func.func @transform_21(%arg0: i32, %arg1: i32) -> (i32, i32) {
    %c0_i32 = arith.constant 0 : i32
    return %arg0, %arg1 : i32, i32
  }
}

</mosaic_0001>

<llo_original>
// kernel: tpu_custom_call.1
$region0: #{tpu_custom_call.1}
  #allocation0 [shape = 'u32[]', space=smem, size = 0x4, offset = 0x4, fixed_abs, tag = 'smem constant byte address 0x4 - core index']
  #allocation1 [shape = 'u32[72,128]{1,0:T(1,128)}', space=vmem, size = 0x9000, scoped, tag = 'internal scratch']
  #allocation2 [shape = 'f32[2,8,16]{2,1,0:T(8,128)}', space=vmem, size = 0x2000, scoped, tag = 'scratch operand']
  #allocation3 [shape = 'f32[2,8,16]{2,1,0:T(8,128)}', space=vmem, size = 0x2000, scoped, tag = 'scratch operand']
  #allocation4 [shape = 'f32[2,32]{1,0:T(2,128)}', space=vmem, size = 0x400, scoped, tag = 'scratch operand']
  #allocation5 [shape = 'f32[2,32]{1,0:T(2,128)}', space=vmem, size = 0x400, scoped, tag = 'scratch operand']
  #allocation6 [shape = 'f32[2,32]{1,0:T(2,128)}', space=vmem, size = 0x400, scoped, tag = 'scratch operand']
  #allocation7 [shape = 'f32[2,32]{1,0:T(2,128)}', space=vmem, size = 0x400, scoped, tag = 'scratch operand']
  #allocation8 [shape = 'f32[2,16]{1,0:T(2,128)}', space=vmem, size = 0x400, scoped, tag = 'scratch operand']
  #allocation9 [shape = 's32[2,1]{1,0:T(2,128)}', space=vmem, size = 0x400, scoped, tag = 'scratch operand']
  %s0 = inlined_call_operand.vmem [shape: bf16[2,8,16], index: 0, kind: input, shape index: {}]
  %s1 = inlined_call_operand.hbm [shape: bf16[10,16], index: 1, kind: input, shape index: {}]
  %s2 = inlined_call_operand.hbm [shape: bf16[16,128], index: 2, kind: input, shape index: {}]
  %s3 = inlined_call_operand.hbm [shape: bf16[16,128], index: 3, kind: input, shape index: {}]
  %s4 = inlined_call_operand.vmem [shape: bf16[32,128], index: 4, kind: input, shape index: {}]
  %s5 = inlined_call_operand.hbm [shape: f32[1,128], index: 5, kind: input, shape index: {}]
  %s6 = inlined_call_operand.vmem [shape: bf16[32,128], index: 6, kind: input, shape index: {}]
  %s7 = inlined_call_operand.hbm [shape: bf16[32,128], index: 7, kind: input, shape index: {}]
  %s8 = inlined_call_operand.hbm [shape: f32[1,128], index: 8, kind: input, shape index: {}]
  %s9 = inlined_call_operand.vmem [shape: bf16[32,16], index: 9, kind: input, shape index: {}]
  %s10 = inlined_call_operand.hbm [shape: f32[1,16], index: 10, kind: input, shape index: {}]
  %s11 = inlined_call_operand.hbm [shape: bf16[16,16], index: 11, kind: input, shape index: {}]
  %s12 = inlined_call_operand.hbm [shape: f32[1,16], index: 12, kind: input, shape index: {}]
  %s13 = inlined_call_operand.hbm [shape: bf16[16,16], index: 13, kind: input, shape index: {}]
  %s14 = inlined_call_operand.hbm [shape: f32[1,16], index: 14, kind: input, shape index: {}]
  %s15 = inlined_call_operand.vmem [shape: bf16[32,16], index: 15, kind: input, shape index: {}]
  %s16 = inlined_call_operand.hbm [shape: f32[1,16], index: 16, kind: input, shape index: {}]
  %s17 = inlined_call_operand.hbm [shape: f32[1,16], index: 17, kind: input, shape index: {}]
  %s18 = inlined_call_operand.vmem [shape: f32[1,16], index: 18, kind: input, shape index: {}]
  %s19 = inlined_call_operand.vmem [shape: bf16[16,128], index: 19, kind: input, shape index: {}]
  %s20 = inlined_call_operand.vmem [shape: f32[1,128], index: 20, kind: input, shape index: {}]
  %s21 = inlined_call_operand.hbm [shape: bf16[2,1024], index: 21, kind: output, shape index: {}]
  %s22 = sld [smem:[#allocation0]]
  $region173: #{tpu_custom_call.1} parent=0
    _
  %s24 = ssub.s32 1, %s22
  %s25 = scalar_select 0, %s24, %s22
  $region1: #{tpu_custom_call.1} parent=0
    #allocation10 [shape = 'u8[4096]{0}', space=vmem, size = 0x1000, scoped, tag = 'input window, operand 1, single buffered']
    #allocation11 [shape = 's32[2]{0}', space=sflag, size = 0x8, scoped, tag = 'scoped memory for tpu_custom_call.1']
    #allocation12 [shape = 's32[2]{0}', space=sflag, size = 0x8, scoped, tag = 'scoped memory for tpu_custom_call.1']
    #allocation13 [shape = 'u8[4096]{0}', space=vmem, size = 0x1000, scoped, tag = 'input window, operand 2, single buffered']
    #allocation14 [shape = 's32[1]{0}', space=sflag, size = 0x4, scoped, tag = 'scoped memory for tpu_custom_call.1']
    #allocation15 [shape = 'u8[4096]{0}', space=vmem, size = 0x1000, scoped, tag = 'input window, operand 3, single buffered']
    #allocation16 [shape = 'u8[512]{0}', space=vmem, size = 0x400, scoped, tag = 'input window, operand 5, single buffered']
    #allocation17 [shape = 's32[1]{0}', space=sflag, size = 0x4, scoped, tag = 'scoped memory for tpu_custom_call.1']
    #allocation18 [shape = 'u8[8192]{0}', space=vmem, size = 0x2000, scoped, tag = 'input window, operand 7, single buffered']
    #allocation19 [shape = 'u8[512]{0}', space=vmem, size = 0x400, scoped, tag = 'input window, operand 8, single buffered']
    #allocation20 [shape = 's32[1]{0}', space=sflag, size = 0x4, scoped, tag = 'scoped memory for tpu_custom_call.1']
    #allocation21 [shape = 'u8[512]{0}', space=vmem, size = 0x400, scoped, tag = 'input window, operand 10, single buffered']
    #allocation22 [shape = 'u8[4096]{0}', space=vmem, size = 0x1000, scoped, tag = 'input window, operand 11, single buffered']
    #allocation23 [shape = 's32[1]{0}', space=sflag, size = 0x4, scoped, tag = 'scoped memory for tpu_custom_call.1']
    #allocation24 [shape = 'u8[512]{0}', space=vmem, size = 0x400, scoped, tag = 'input window, operand 12, single buffered']
    #allocation25 [shape = 'u8[4096]{0}', space=vmem, size = 0x1000, scoped, tag = 'input window, operand 13, single buffered']
    #allocation26 [shape = 's32[1]{0}', space=sflag, size = 0x4, scoped, tag = 'scoped memory for tpu_custom_call.1']
    #allocation27 [shape = 'u8[512]{0}', space=vmem, size = 0x400, scoped, tag = 'input window, operand 14, single buffered']
    #allocation28 [shape = 'u8[512]{0}', space=vmem, size = 0x400, scoped, tag = 'input window, operand 16, single buffered']
    #allocation29 [shape = 's32[1]{0}', space=sflag, size = 0x4, scoped, tag = 'scoped memory for tpu_custom_call.1']
    #allocation30 [shape = 'u8[512]{0}', space=vmem, size = 0x400, scoped, tag = 'input window, operand 17, single buffered']
    #allocation31 [shape = 'u8[1024]{0}', space=vmem, size = 0x400, scoped, tag = 'output window, operand 0']
    %26 = vsyncpa [#allocation11], 0
    %27 = vsyncpa [#allocation14], 0
    %28 = vsyncpa [#allocation17], 0
    %29 = vsyncpa [#allocation20], 0
    %30 = vsyncpa [#allocation23], 0
    %31 = vsyncpa [#allocation26], 0
    %32 = vsyncpa [#allocation29], 0
    %33 = vsyncpa [#allocation12], 0
    %s34 = scalar_lea.sflag [#allocation12], 1
    %35 = vsyncpa %s34, 0
    loop: start=0, step=1, limit=10
    $region2: #{tpu_custom_call.1} parent=1 // loop_pre_header
      _
    $region3: #{tpu_custom_call.1} parent=1 // loop_header
      %s37 = sphi 0, %s41
      %p38 = scmp.ge.s32.totalorder %s37, 10
      %s44 = sphi 0, %s56
      %s45 = sphi 0, %s52
      %s46 = sphi 0, %s44
      %s47 = sphi 0, %s45
      %s48 = sphi 0, %s46
      %s49 = sphi 0, %s47
      %s59 = sphi 0, %s61
      %s62 = sphi 0, %s59
      %s63 = sphi 0, %s62
      %s79 = sphi 0, %s63
      %s83 = sphi 0, %s83
      %s85 = sphi 0, %s83
      %s86 = sphi 0, %s85
      %s100 = sphi 0, %s86
      %s104 = sphi 0, %s104
      %s106 = sphi 0, %s104
      %s107 = sphi 0, %s106
      %s121 = sphi 0, %s107
      %s125 = sphi 0, %s125
      %s127 = sphi 0, %s125
      %s128 = sphi 0, %s127
      %s142 = sphi 0, %s128
      %s146 = sphi 0, %s146
      %s148 = sphi 0, %s146
      %s149 = sphi 0, %s148
      %s163 = sphi 0, %s149
      %s167 = sphi 0, %s167
      %s169 = sphi 0, %s167
      %s170 = sphi 0, %s169
      %s184 = sphi 0, %s170
      %s188 = sphi 0, %s188
      %s190 = sphi 0, %s188
      %s191 = sphi 0, %s190
      %s205 = sphi 0, %s191
      %s209 = sphi 0, %s209
      %s211 = sphi 0, %s209
      %s212 = sphi 0, %s211
      %s226 = sphi 0, %s212
      %s230 = sphi 0, %s230
      %s232 = sphi 0, %s230
      %s233 = sphi 0, %s232
      %s247 = sphi 0, %s233
      %s251 = sphi 0, %s251
      %s253 = sphi 0, %s251
      %s254 = sphi 0, %s253
      %s268 = sphi 0, %s254
      %s272 = sphi 0, %s272
      %s274 = sphi 0, %s272
      %s275 = sphi 0, %s274
      %s289 = sphi 0, %s275
      %s293 = sphi 0, %s293
      %s295 = sphi 0, %s293
      %s296 = sphi 0, %s295
      %s310 = sphi 0, %s296
      %s314 = sphi 0, %s314
      %s316 = sphi 0, %s314
      %s317 = sphi 0, %s316
      %s331 = sphi 0, %s317
      %s335 = sphi 0, %s335
      %s337 = sphi 0, %s335
      %s338 = sphi 0, %s337
      %s352 = sphi 0, %s338
      %s356 = sphi 0, %s356
      %s358 = sphi 0, %s356
      %s359 = sphi 0, %s358
      %s373 = sphi 0, %s359
      %s377 = sphi 0, %s377
      %s379 = sphi 0, %s377
      %s380 = sphi 0, %s379
      %s394 = sphi 0, %s380
      %s398 = sphi 0, %s398
      %s400 = sphi 0, %s398
      %s401 = sphi 0, %s400
      %s415 = sphi 0, %s401
      %s419 = sphi 0, %s419
      %s421 = sphi 0, %s419
      %s422 = sphi 0, %s421
      %s436 = sphi 0, %s422
      %s440 = sphi 0, %s440
      %s442 = sphi 0, %s440
      %s443 = sphi 0, %s442
      %s457 = sphi 0, %s443
      %s461 = sphi 0, %s461
      %s463 = sphi 0, %s461
      %s464 = sphi 0, %s463
      %s478 = sphi 0, %s464
      %s482 = sphi 0, %s482
      %s484 = sphi 0, %s482
      %s485 = sphi 0, %s484
      %s499 = sphi 0, %s485
      %s507 = sphi 0, %s509
      %s510 = sphi 0, %s507
      %s511 = sphi 0, %s510
      %s527 = sphi 0, %s511
    $region4: #{tpu_custom_call.1} parent=1 // loop_header_branch
      %40 = sbr.rel (%p38) target = $region8
    $region5: #{tpu_custom_call.1} parent=1 // loop_body
      %s42 = ssub.s32 %s37, 1
      %s43 = ssub.s32 %s37, 2
      %s50 = sadd.s32 1, %s45
      %p51 = scmp.ge.s32.totalorder %s50, 8
      %s52 = scalar_select %p51, 0, %s50
      %s53 = sadd.s32 1, %s44
      %s54 = scalar_select %p51, %s53, %s44
      %p55 = scmp.ge.s32.totalorder %s54, 1
      %s56 = scalar_select %p55, 0, %s54
      %s57 = ssub.s32 %s44, %s56
      %p58 = scmp.eq.s32.totalorder %s57, 0
      %s60 = sadd.s32 %s59, 1
      %s61 = scalar_select %p58, %s59, %s60
      %p64 = pneg %p58
      %p65 = scmp.eq.s32.totalorder %s37, 7
      %p66 = por %p64, %p65
      %p67 = scmp.ne.s32.totalorder %s59, %s62
      %p68 = scmp.eq.s32.totalorder %s37, 0
      %p69 = por %p67, %p68
      %p70 = scmp.ne.s32.totalorder %s59, %s62
      %p71 = scmp.eq.s32.totalorder %s42, 7
      %p72 = por %p70, %p71
      %p73 = scmp.ne.s32.totalorder %s62, %s63
      %p74 = scmp.eq.s32.totalorder %s42, 0
      %p75 = por %p73, %p74
      %p76 = scmp.ne.s32.totalorder %s62, %s63
      %p77 = scmp.eq.s32.totalorder %s43, 7
      %p78 = por %p76, %p77
      %p80 = scmp.ne.s32.totalorder %s63, %s79
      %p81 = scmp.eq.s32.totalorder %s43, 0
      %p82 = por %p80, %p81
      %s84 = sadd.s32 %s83, 1
      %p87 = scmp.eq.s32.totalorder %s37, 7
      %p88 = scmp.ne.s32.totalorder %s83, %s85
      %p89 = scmp.eq.s32.totalorder %s37, 0
      %p90 = por %p88, %p89
      %p91 = scmp.ne.s32.totalorder %s83, %s85
      %p92 = scmp.eq.s32.totalorder %s42, 7
      %p93 = por %p91, %p92
      %p94 = scmp.ne.s32.totalorder %s85, %s86
      %p95 = scmp.eq.s32.totalorder %s42, 0
      %p96 = por %p94, %p95
      %p97 = scmp.ne.s32.totalorder %s85, %s86
      %p98 = scmp.eq.s32.totalorder %s43, 7
      %p99 = por %p97, %p98
      %p101 = scmp.ne.s32.totalorder %s86, %s100
      %p102 = scmp.eq.s32.totalorder %s43, 0
      %p103 = por %p101, %p102
      %s105 = sadd.s32 %s104, 1
      %p108 = scmp.eq.s32.totalorder %s37, 7
      %p109 = scmp.ne.s32.totalorder %s104, %s106
      %p110 = scmp.eq.s32.totalorder %s37, 0
      %p111 = por %p109, %p110
      %p112 = scmp.ne.s32.totalorder %s104, %s106
      %p113 = scmp.eq.s32.totalorder %s42, 7
      %p114 = por %p112, %p113
      %p115 = scmp.ne.s32.totalorder %s106, %s107
      %p116 = scmp.eq.s32.totalorder %s42, 0
      %p117 = por %p115, %p116
      %p118 = scmp.ne.s32.totalorder %s106, %s107
      %p119 = scmp.eq.s32.totalorder %s43, 7
      %p120 = por %p118, %p119
      %p122 = scmp.ne.s32.totalorder %s107, %s121
      %p123 = scmp.eq.s32.totalorder %s43, 0
      %p124 = por %p122, %p123
      %s126 = sadd.s32 %s125, 1
      %p129 = scmp.eq.s32.totalorder %s37, 7
      %p130 = scmp.ne.s32.totalorder %s125, %s127
      %p131 = scmp.eq.s32.totalorder %s37, 0
      %p132 = por %p130, %p131
      %p133 = scmp.ne.s32.totalorder %s125, %s127
      %p134 = scmp.eq.s32.totalorder %s42, 7
      %p135 = por %p133, %p134
      %p136 = scmp.ne.s32.totalorder %s127, %s128
      %p137 = scmp.eq.s32.totalorder %s42, 0
      %p138 = por %p136, %p137
      %p139 = scmp.ne.s32.totalorder %s127, %s128
      %p140 = scmp.eq.s32.totalorder %s43, 7
      %p141 = por %p139, %p140
      %p143 = scmp.ne.s32.totalorder %s128, %s142
      %p144 = scmp.eq.s32.totalorder %s43, 0
      %p145 = por %p143, %p144
      %s147 = sadd.s32 %s146, 1
      %p150 = scmp.eq.s32.totalorder %s37, 7
      %p151 = scmp.ne.s32.totalorder %s146, %s148
      %p152 = scmp.eq.s32.totalorder %s37, 0
      %p153 = por %p151, %p152
      %p154 = scmp.ne.s32.totalorder %s146, %s148
      %p155 = scmp.eq.s32.totalorder %s42, 7
      %p156 = por %p154, %p155
      %p157 = scmp.ne.s32.totalorder %s148, %s149
      %p158 = scmp.eq.s32.totalorder %s42, 0
      %p159 = por %p157, %p158
      %p160 = scmp.ne.s32.totalorder %s148, %s149
      %p161 = scmp.eq.s32.totalorder %s43, 7
      %p162 = por %p160, %p161
      %p164 = scmp.ne.s32.totalorder %s149, %s163
      %p165 = scmp.eq.s32.totalorder %s43, 0
      %p166 = por %p164, %p165
      %s168 = sadd.s32 %s167, 1
      %p171 = scmp.eq.s32.totalorder %s37, 7
      %p172 = scmp.ne.s32.totalorder %s167, %s169
      %p173 = scmp.eq.s32.totalorder %s37, 0
      %p174 = por %p172, %p173
      %p175 = scmp.ne.s32.totalorder %s167, %s169
      %p176 = scmp.eq.s32.totalorder %s42, 7
      %p177 = por %p175, %p176
      %p178 = scmp.ne.s32.totalorder %s169, %s170
      %p179 = scmp.eq.s32.totalorder %s42, 0
      %p180 = por %p178, %p179
      %p181 = scmp.ne.s32.totalorder %s169, %s170
      %p182 = scmp.eq.s32.totalorder %s43, 7
      %p183 = por %p181, %p182
      %p185 = scmp.ne.s32.totalorder %s170, %s184
      %p186 = scmp.eq.s32.totalorder %s43, 0
      %p187 = por %p185, %p186
      %s189 = sadd.s32 %s188, 1
      %p192 = scmp.eq.s32.totalorder %s37, 7
      %p193 = scmp.ne.s32.totalorder %s188, %s190
      %p194 = scmp.eq.s32.totalorder %s37, 0
      %p195 = por %p193, %p194
      %p196 = scmp.ne.s32.totalorder %s188, %s190
      %p197 = scmp.eq.s32.totalorder %s42, 7
      %p198 = por %p196, %p197
      %p199 = scmp.ne.s32.totalorder %s190, %s191
      %p200 = scmp.eq.s32.totalorder %s42, 0
      %p201 = por %p199, %p200
      %p202 = scmp.ne.s32.totalorder %s190, %s191
      %p203 = scmp.eq.s32.totalorder %s43, 7
      %p204 = por %p202, %p203
      %p206 = scmp.ne.s32.totalorder %s191, %s205
      %p207 = scmp.eq.s32.totalorder %s43, 0
      %p208 = por %p206, %p207
      %s210 = sadd.s32 %s209, 1
      %p213 = scmp.eq.s32.totalorder %s37, 7
      %p214 = scmp.ne.s32.totalorder %s209, %s211
      %p215 = scmp.eq.s32.totalorder %s37, 0
      %p216 = por %p214, %p215
      %p217 = scmp.ne.s32.totalorder %s209, %s211
      %p218 = scmp.eq.s32.totalorder %s42, 7
      %p219 = por %p217, %p218
      %p220 = scmp.ne.s32.totalorder %s211, %s212
      %p221 = scmp.eq.s32.totalorder %s42, 0
      %p222 = por %p220, %p221
      %p223 = scmp.ne.s32.totalorder %s211, %s212
      %p224 = scmp.eq.s32.totalorder %s43, 7
      %p225 = por %p223, %p224
      %p227 = scmp.ne.s32.totalorder %s212, %s226
      %p228 = scmp.eq.s32.totalorder %s43, 0
      %p229 = por %p227, %p228
      %s231 = sadd.s32 %s230, 1
      %p234 = scmp.eq.s32.totalorder %s37, 7
      %p235 = scmp.ne.s32.totalorder %s230, %s232
      %p236 = scmp.eq.s32.totalorder %s37, 0
      %p237 = por %p235, %p236
      %p238 = scmp.ne.s32.totalorder %s230, %s232
      %p239 = scmp.eq.s32.totalorder %s42, 7
      %p240 = por %p238, %p239
      %p241 = scmp.ne.s32.totalorder %s232, %s233
      %p242 = scmp.eq.s32.totalorder %s42, 0
      %p243 = por %p241, %p242
      %p244 = scmp.ne.s32.totalorder %s232, %s233
      %p245 = scmp.eq.s32.totalorder %s43, 7
      %p246 = por %p244, %p245
      %p248 = scmp.ne.s32.totalorder %s233, %s247
      %p249 = scmp.eq.s32.totalorder %s43, 0
      %p250 = por %p248, %p249
      %s252 = sadd.s32 %s251, 1
      %p255 = scmp.eq.s32.totalorder %s37, 7
      %p256 = scmp.ne.s32.totalorder %s251, %s253
      %p257 = scmp.eq.s32.totalorder %s37, 0
      %p258 = por %p256, %p257
      %p259 = scmp.ne.s32.totalorder %s251, %s253
      %p260 = scmp.eq.s32.totalorder %s42, 7
      %p261 = por %p259, %p260
      %p262 = scmp.ne.s32.totalorder %s253, %s254
      %p263 = scmp.eq.s32.totalorder %s42, 0
      %p264 = por %p262, %p263
      %p265 = scmp.ne.s32.totalorder %s253, %s254
      %p266 = scmp.eq.s32.totalorder %s43, 7
      %p267 = por %p265, %p266
      %p269 = scmp.ne.s32.totalorder %s254, %s268
      %p270 = scmp.eq.s32.totalorder %s43, 0
      %p271 = por %p269, %p270
      %s273 = sadd.s32 %s272, 1
      %p276 = scmp.eq.s32.totalorder %s37, 7
      %p277 = scmp.ne.s32.totalorder %s272, %s274
      %p278 = scmp.eq.s32.totalorder %s37, 0
      %p279 = por %p277, %p278
      %p280 = scmp.ne.s32.totalorder %s272, %s274
      %p281 = scmp.eq.s32.totalorder %s42, 7
      %p282 = por %p280, %p281
      %p283 = scmp.ne.s32.totalorder %s274, %s275
      %p284 = scmp.eq.s32.totalorder %s42, 0
      %p285 = por %p283, %p284
      %p286 = scmp.ne.s32.totalorder %s274, %s275
      %p287 = scmp.eq.s32.totalorder %s43, 7
      %p288 = por %p286, %p287
      %p290 = scmp.ne.s32.totalorder %s275, %s289
      %p291 = scmp.eq.s32.totalorder %s43, 0
      %p292 = por %p290, %p291
      %s294 = sadd.s32 %s293, 1
      %p297 = scmp.eq.s32.totalorder %s37, 7
      %p298 = scmp.ne.s32.totalorder %s293, %s295
      %p299 = scmp.eq.s32.totalorder %s37, 0
      %p300 = por %p298, %p299
      %p301 = scmp.ne.s32.totalorder %s293, %s295
      %p302 = scmp.eq.s32.totalorder %s42, 7
      %p303 = por %p301, %p302
      %p304 = scmp.ne.s32.totalorder %s295, %s296
      %p305 = scmp.eq.s32.totalorder %s42, 0
      %p306 = por %p304, %p305
      %p307 = scmp.ne.s32.totalorder %s295, %s296
      %p308 = scmp.eq.s32.totalorder %s43, 7
      %p309 = por %p307, %p308
      %p311 = scmp.ne.s32.totalorder %s296, %s310
      %p312 = scmp.eq.s32.totalorder %s43, 0
      %p313 = por %p311, %p312
      %s315 = sadd.s32 %s314, 1
      %p318 = scmp.eq.s32.totalorder %s37, 7
      %p319 = scmp.ne.s32.totalorder %s314, %s316
      %p320 = scmp.eq.s32.totalorder %s37, 0
      %p321 = por %p319, %p320
      %p322 = scmp.ne.s32.totalorder %s314, %s316
      %p323 = scmp.eq.s32.totalorder %s42, 7
      %p324 = por %p322, %p323
      %p325 = scmp.ne.s32.totalorder %s316, %s317
      %p326 = scmp.eq.s32.totalorder %s42, 0
      %p327 = por %p325, %p326
      %p328 = scmp.ne.s32.totalorder %s316, %s317
      %p329 = scmp.eq.s32.totalorder %s43, 7
      %p330 = por %p328, %p329
      %p332 = scmp.ne.s32.totalorder %s317, %s331
      %p333 = scmp.eq.s32.totalorder %s43, 0
      %p334 = por %p332, %p333
      %s336 = sadd.s32 %s335, 1
      %p339 = scmp.eq.s32.totalorder %s37, 7
      %p340 = scmp.ne.s32.totalorder %s335, %s337
      %p341 = scmp.eq.s32.totalorder %s37, 0
      %p342 = por %p340, %p341
      %p343 = scmp.ne.s32.totalorder %s335, %s337
      %p344 = scmp.eq.s32.totalorder %s42, 7
      %p345 = por %p343, %p344
      %p346 = scmp.ne.s32.totalorder %s337, %s338
      %p347 = scmp.eq.s32.totalorder %s42, 0
      %p348 = por %p346, %p347
      %p349 = scmp.ne.s32.totalorder %s337, %s338
      %p350 = scmp.eq.s32.totalorder %s43, 7
      %p351 = por %p349, %p350
      %p353 = scmp.ne.s32.totalorder %s338, %s352
      %p354 = scmp.eq.s32.totalorder %s43, 0
      %p355 = por %p353, %p354
      %s357 = sadd.s32 %s356, 1
      %p360 = scmp.eq.s32.totalorder %s37, 7
      %p361 = scmp.ne.s32.totalorder %s356, %s358
      %p362 = scmp.eq.s32.totalorder %s37, 0
      %p363 = por %p361, %p362
      %p364 = scmp.ne.s32.totalorder %s356, %s358
      %p365 = scmp.eq.s32.totalorder %s42, 7
      %p366 = por %p364, %p365
      %p367 = scmp.ne.s32.totalorder %s358, %s359
      %p368 = scmp.eq.s32.totalorder %s42, 0
      %p369 = por %p367, %p368
      %p370 = scmp.ne.s32.totalorder %s358, %s359
      %p371 = scmp.eq.s32.totalorder %s43, 7
      %p372 = por %p370, %p371
      %p374 = scmp.ne.s32.totalorder %s359, %s373
      %p375 = scmp.eq.s32.totalorder %s43, 0
      %p376 = por %p374, %p375
      %s378 = sadd.s32 %s377, 1
      %p381 = scmp.eq.s32.totalorder %s37, 7
      %p382 = scmp.ne.s32.totalorder %s377, %s379
      %p383 = scmp.eq.s32.totalorder %s37, 0
      %p384 = por %p382, %p383
      %p385 = scmp.ne.s32.totalorder %s377, %s379
      %p386 = scmp.eq.s32.totalorder %s42, 7
      %p387 = por %p385, %p386
      %p388 = scmp.ne.s32.totalorder %s379, %s380
      %p389 = scmp.eq.s32.totalorder %s42, 0
      %p390 = por %p388, %p389
      %p391 = scmp.ne.s32.totalorder %s379, %s380
      %p392 = scmp.eq.s32.totalorder %s43, 7
      %p393 = por %p391, %p392
      %p395 = scmp.ne.s32.totalorder %s380, %s394
      %p396 = scmp.eq.s32.totalorder %s43, 0
      %p397 = por %p395, %p396
      %s399 = sadd.s32 %s398, 1
      %p402 = scmp.eq.s32.totalorder %s37, 7
      %p403 = scmp.ne.s32.totalorder %s398, %s400
      %p404 = scmp.eq.s32.totalorder %s37, 0
      %p405 = por %p403, %p404
      %p406 = scmp.ne.s32.totalorder %s398, %s400
      %p407 = scmp.eq.s32.totalorder %s42, 7
      %p408 = por %p406, %p407
      %p409 = scmp.ne.s32.totalorder %s400, %s401
      %p410 = scmp.eq.s32.totalorder %s42, 0
      %p411 = por %p409, %p410
      %p412 = scmp.ne.s32.totalorder %s400, %s401
      %p413 = scmp.eq.s32.totalorder %s43, 7
      %p414 = por %p412, %p413
      %p416 = scmp.ne.s32.totalorder %s401, %s415
      %p417 = scmp.eq.s32.totalorder %s43, 0
      %p418 = por %p416, %p417
      %s420 = sadd.s32 %s419, 1
      %p423 = scmp.eq.s32.totalorder %s37, 7
      %p424 = scmp.ne.s32.totalorder %s419, %s421
      %p425 = scmp.eq.s32.totalorder %s37, 0
      %p426 = por %p424, %p425
      %p427 = scmp.ne.s32.totalorder %s419, %s421
      %p428 = scmp.eq.s32.totalorder %s42, 7
      %p429 = por %p427, %p428
      %p430 = scmp.ne.s32.totalorder %s421, %s422
      %p431 = scmp.eq.s32.totalorder %s42, 0
      %p432 = por %p430, %p431
      %p433 = scmp.ne.s32.totalorder %s421, %s422
      %p434 = scmp.eq.s32.totalorder %s43, 7
      %p435 = por %p433, %p434
      %p437 = scmp.ne.s32.totalorder %s422, %s436
      %p438 = scmp.eq.s32.totalorder %s43, 0
      %p439 = por %p437, %p438
      %s441 = sadd.s32 %s440, 1
      %p444 = scmp.eq.s32.totalorder %s37, 7
      %p445 = scmp.ne.s32.totalorder %s440, %s442
      %p446 = scmp.eq.s32.totalorder %s37, 0
      %p447 = por %p445, %p446
      %p448 = scmp.ne.s32.totalorder %s440, %s442
      %p449 = scmp.eq.s32.totalorder %s42, 7
      %p450 = por %p448, %p449
      %p451 = scmp.ne.s32.totalorder %s442, %s443
      %p452 = scmp.eq.s32.totalorder %s42, 0
      %p453 = por %p451, %p452
      %p454 = scmp.ne.s32.totalorder %s442, %s443
      %p455 = scmp.eq.s32.totalorder %s43, 7
      %p456 = por %p454, %p455
      %p458 = scmp.ne.s32.totalorder %s443, %s457
      %p459 = scmp.eq.s32.totalorder %s43, 0
      %p460 = por %p458, %p459
      %s462 = sadd.s32 %s461, 1
      %p465 = scmp.eq.s32.totalorder %s37, 7
      %p466 = scmp.ne.s32.totalorder %s461, %s463
      %p467 = scmp.eq.s32.totalorder %s37, 0
      %p468 = por %p466, %p467
      %p469 = scmp.ne.s32.totalorder %s461, %s463
      %p470 = scmp.eq.s32.totalorder %s42, 7
      %p471 = por %p469, %p470
      %p472 = scmp.ne.s32.totalorder %s463, %s464
      %p473 = scmp.eq.s32.totalorder %s42, 0
      %p474 = por %p472, %p473
      %p475 = scmp.ne.s32.totalorder %s463, %s464
      %p476 = scmp.eq.s32.totalorder %s43, 7
      %p477 = por %p475, %p476
      %p479 = scmp.ne.s32.totalorder %s464, %s478
      %p480 = scmp.eq.s32.totalorder %s43, 0
      %p481 = por %p479, %p480
      %s483 = sadd.s32 %s482, 1
      %p486 = scmp.eq.s32.totalorder %s37, 7
      %p487 = scmp.ne.s32.totalorder %s482, %s484
      %p488 = scmp.eq.s32.totalorder %s37, 0
      %p489 = por %p487, %p488
      %p490 = scmp.ne.s32.totalorder %s482, %s484
      %p491 = scmp.eq.s32.totalorder %s42, 7
      %p492 = por %p490, %p491
      %p493 = scmp.ne.s32.totalorder %s484, %s485
      %p494 = scmp.eq.s32.totalorder %s42, 0
      %p495 = por %p493, %p494
      %p496 = scmp.ne.s32.totalorder %s484, %s485
      %p497 = scmp.eq.s32.totalorder %s43, 7
      %p498 = por %p496, %p497
      %p500 = scmp.ne.s32.totalorder %s485, %s499
      %p501 = scmp.eq.s32.totalorder %s43, 0
      %p502 = por %p500, %p501
      %s503 = ssub.s32 %s44, %s56
      %s504 = ssub.s32 %s45, %s52
      %s505 = sor.u32 %s503, %s504
      %p506 = scmp.eq.s32.totalorder %s505, 0
      %s508 = sadd.s32 %s507, 1
      %s509 = scalar_select %p506, %s507, %s508
      %p512 = pneg %p506
      %p513 = scmp.eq.s32.totalorder %s37, 7
      %p514 = por %p512, %p513
      %p515 = scmp.ne.s32.totalorder %s507, %s510
      %p516 = scmp.eq.s32.totalorder %s37, 0
      %p517 = por %p515, %p516
      %p518 = scmp.ne.s32.totalorder %s507, %s510
      %p519 = scmp.eq.s32.totalorder %s42, 7
      %p520 = por %p518, %p519
      %p521 = scmp.ne.s32.totalorder %s510, %s511
      %p522 = scmp.eq.s32.totalorder %s42, 0
      %p523 = por %p521, %p522
      %p524 = scmp.ne.s32.totalorder %s510, %s511
      %p525 = scmp.eq.s32.totalorder %s43, 7
      %p526 = por %p524, %p525
      %p528 = scmp.ne.s32.totalorder %s511, %s527
      %p529 = scmp.eq.s32.totalorder %s43, 0
      %p530 = por %p528, %p529
      %p531 = scmp.le.s32.totalorder 1, %s37
      %p532 = scmp.lt.s32.totalorder %s37, 9
      %p533 = pnand %p531, %p532
      %p534 = pneg %p533
      // Predicated region
      $region9: #{tpu_custom_call.1} parent=5 // pred_check
        _
      $region10: #{tpu_custom_call.1} parent=5 // pred_check_branch
        %536 = sbr.rel (%p533) target = $region12
      $region11: #{tpu_custom_call.1} parent=5 // pred_region
        %s537 = ssub.s32 %s37, 1
        // Predicated region
        $region13: #{tpu_custom_call.1} parent=11 // pred_check
          %p538 = pneg %p75
        $region14: #{tpu_custom_call.1} parent=11 // pred_check_branch
          %540 = sbr.rel (%p538) target = $region16
        $region15: #{tpu_custom_call.1} parent=11 // pred_region
          %s541 = smul.u32 2, %s46
          %p542 = scmp.lt.s32.totalorder %s541, 1
          %s543 = scalar_select %p542, %s541, 1
          %s544 = smul.addr %s543, 4
          %s545 = scalar_lea.vmem %s0, %s544
          %s546 = smul.u32 2, %s46
        $region16: #{tpu_custom_call.1} parent=11 // pred_fallthru
          _
        // Predicated region
        $region17: #{tpu_custom_call.1} parent=11 // pred_check
          %p547 = pneg %p96
        $region18: #{tpu_custom_call.1} parent=11 // pred_check_branch
          %549 = sbr.rel (%p547) target = $region20
        $region19: #{tpu_custom_call.1} parent=11 // pred_region
          %551 = vsyncadd [#allocation11], 0
          %s552 = sshll.u32 %s1, 4
          %s553 = int_to_ptr.hbm [resolvable:$true] %s552
          %s554 = sshll.u32 [#allocation10], 4
          %s555 = int_to_ptr.vmem [resolvable:$true] %s554
          %560 = dma.hbm_to_vmem [thread:$0]  %s553, 128, %s555, [#allocation11], 64, 64, 4
        $region20: #{tpu_custom_call.1} parent=11 // pred_fallthru
          _
        // Predicated region
        $region21: #{tpu_custom_call.1} parent=11 // pred_check
          %p561 = pneg %p117
        $region22: #{tpu_custom_call.1} parent=11 // pred_check_branch
          %563 = sbr.rel (%p561) target = $region24
        $region23: #{tpu_custom_call.1} parent=11 // pred_region
          %565 = vsyncadd [#allocation14], 0
          %s566 = sshll.u32 %s2, 4
          %s567 = int_to_ptr.hbm [resolvable:$true] %s566
          %s568 = sshll.u32 [#allocation13], 4
          %s569 = int_to_ptr.vmem [resolvable:$true] %s568
          %574 = dma.hbm_to_vmem [thread:$0]  %s567, 128, %s569, [#allocation14], 64, 64, 4
        $region24: #{tpu_custom_call.1} parent=11 // pred_fallthru
          _
        // Predicated region
        $region25: #{tpu_custom_call.1} parent=11 // pred_check
          %p575 = pneg %p138
        $region26: #{tpu_custom_call.1} parent=11 // pred_check_branch
          %577 = sbr.rel (%p575) target = $region28
        $region27: #{tpu_custom_call.1} parent=11 // pred_region
          %579 = vsyncadd [#allocation14], 0
          %s580 = sshll.u32 %s3, 4
          %s581 = int_to_ptr.hbm [resolvable:$true] %s580
          %s582 = sshll.u32 [#allocation15], 4
          %s583 = int_to_ptr.vmem [resolvable:$true] %s582
          %588 = dma.hbm_to_vmem [thread:$0]  %s581, 128, %s583, [#allocation14], 64, 64, 4
        $region28: #{tpu_custom_call.1} parent=11 // pred_fallthru
          _
        // Predicated region
        $region29: #{tpu_custom_call.1} parent=11 // pred_check
          %p589 = pneg %p159
        $region30: #{tpu_custom_call.1} parent=11 // pred_check_branch
          %591 = sbr.rel (%p589) target = $region32
        $region31: #{tpu_custom_call.1} parent=11 // pred_region
          _
        $region32: #{tpu_custom_call.1} parent=11 // pred_fallthru
          _
        // Predicated region
        $region33: #{tpu_custom_call.1} parent=11 // pred_check
          %p592 = pneg %p180
        $region34: #{tpu_custom_call.1} parent=11 // pred_check_branch
          %594 = sbr.rel (%p592) target = $region36
        $region35: #{tpu_custom_call.1} parent=11 // pred_region
          %596 = vsyncadd [#allocation17], 0
          %s598 = sshll.u32 %s5, 4
          %s599 = int_to_ptr.hbm [resolvable:$true] %s598
          %s600 = sshll.u32 [#allocation16], 4
          %s601 = int_to_ptr.vmem [resolvable:$true] %s600
          %603 = dma.hbm_to_vmem [thread:$0]  %s599, 16, %s601, [#allocation17]
        $region36: #{tpu_custom_call.1} parent=11 // pred_fallthru
          _
        // Predicated region
        $region37: #{tpu_custom_call.1} parent=11 // pred_check
          %p604 = pneg %p201
        $region38: #{tpu_custom_call.1} parent=11 // pred_check_branch
          %606 = sbr.rel (%p604) target = $region40
        $region39: #{tpu_custom_call.1} parent=11 // pred_region
          _
        $region40: #{tpu_custom_call.1} parent=11 // pred_fallthru
          _
        // Predicated region
        $region41: #{tpu_custom_call.1} parent=11 // pred_check
          %p607 = pneg %p222
        $region42: #{tpu_custom_call.1} parent=11 // pred_check_branch
          %609 = sbr.rel (%p607) target = $region44
        $region43: #{tpu_custom_call.1} parent=11 // pred_region
          %611 = vsyncadd [#allocation17], 0
          %s612 = sshll.u32 %s7, 4
          %s613 = int_to_ptr.hbm [resolvable:$true] %s612
          %s614 = sshll.u32 [#allocation18], 4
          %s615 = int_to_ptr.vmem [resolvable:$true] %s614
          %620 = dma.hbm_to_vmem [thread:$0]  %s613, 256, %s615, [#allocation17], 64, 64, 4
        $region44: #{tpu_custom_call.1} parent=11 // pred_fallthru
          _
        // Predicated region
        $region45: #{tpu_custom_call.1} parent=11 // pred_check
          %p621 = pneg %p243
        $region46: #{tpu_custom_call.1} parent=11 // pred_check_branch
          %623 = sbr.rel (%p621) target = $region48
        $region47: #{tpu_custom_call.1} parent=11 // pred_region
          %625 = vsyncadd [#allocation20], 0
          %s627 = sshll.u32 %s8, 4
          %s628 = int_to_ptr.hbm [resolvable:$true] %s627
          %s629 = sshll.u32 [#allocation19], 4
          %s630 = int_to_ptr.vmem [resolvable:$true] %s629
          %632 = dma.hbm_to_vmem [thread:$0]  %s628, 16, %s630, [#allocation20]
        $region48: #{tpu_custom_call.1} parent=11 // pred_fallthru
          _
        // Predicated region
        $region49: #{tpu_custom_call.1} parent=11 // pred_check
          %p633 = pneg %p264
        $region50: #{tpu_custom_call.1} parent=11 // pred_check_branch
          %635 = sbr.rel (%p633) target = $region52
        $region51: #{tpu_custom_call.1} parent=11 // pred_region
          _
        $region52: #{tpu_custom_call.1} parent=11 // pred_fallthru
          _
        // Predicated region
        $region53: #{tpu_custom_call.1} parent=11 // pred_check
          %p636 = pneg %p285
        $region54: #{tpu_custom_call.1} parent=11 // pred_check_branch
          %638 = sbr.rel (%p636) target = $region56
        $region55: #{tpu_custom_call.1} parent=11 // pred_region
          %640 = vsyncadd [#allocation20], 0
          %s642 = sshll.u32 %s10, 4
          %s643 = int_to_ptr.hbm [resolvable:$true] %s642
          %s644 = sshll.u32 [#allocation21], 4
          %s645 = int_to_ptr.vmem [resolvable:$true] %s644
          %647 = dma.hbm_to_vmem [thread:$0]  %s643, 16, %s645, [#allocation20]
        $region56: #{tpu_custom_call.1} parent=11 // pred_fallthru
          _
        // Predicated region
        $region57: #{tpu_custom_call.1} parent=11 // pred_check
          %p648 = pneg %p306
        $region58: #{tpu_custom_call.1} parent=11 // pred_check_branch
          %650 = sbr.rel (%p648) target = $region60
        $region59: #{tpu_custom_call.1} parent=11 // pred_region
          %652 = vsyncadd [#allocation23], 0
          %s653 = sshll.u32 %s11, 4
          %s654 = int_to_ptr.hbm [resolvable:$true] %s653
          %s655 = sshll.u32 [#allocation22], 4
          %s656 = int_to_ptr.vmem [resolvable:$true] %s655
          %661 = dma.hbm_to_vmem [thread:$0]  %s654, 128, %s656, [#allocation23], 64, 64, 4
        $region60: #{tpu_custom_call.1} parent=11 // pred_fallthru
          _
        // Predicated region
        $region61: #{tpu_custom_call.1} parent=11 // pred_check
          %p662 = pneg %p327
        $region62: #{tpu_custom_call.1} parent=11 // pred_check_branch
          %664 = sbr.rel (%p662) target = $region64
        $region63: #{tpu_custom_call.1} parent=11 // pred_region
          %666 = vsyncadd [#allocation23], 0
          %s668 = sshll.u32 %s12, 4
          %s669 = int_to_ptr.hbm [resolvable:$true] %s668
          %s670 = sshll.u32 [#allocation24], 4
          %s671 = int_to_ptr.vmem [resolvable:$true] %s670
          %673 = dma.hbm_to_vmem [thread:$0]  %s669, 16, %s671, [#allocation23]
        $region64: #{tpu_custom_call.1} parent=11 // pred_fallthru
          _
        // Predicated region
        $region65: #{tpu_custom_call.1} parent=11 // pred_check
          %p674 = pneg %p348
        $region66: #{tpu_custom_call.1} parent=11 // pred_check_branch
          %676 = sbr.rel (%p674) target = $region68
        $region67: #{tpu_custom_call.1} parent=11 // pred_region
          %678 = vsyncadd [#allocation26], 0
          %s679 = sshll.u32 %s13, 4
          %s680 = int_to_ptr.hbm [resolvable:$true] %s679
          %s681 = sshll.u32 [#allocation25], 4
          %s682 = int_to_ptr.vmem [resolvable:$true] %s681
          %687 = dma.hbm_to_vmem [thread:$0]  %s680, 128, %s682, [#allocation26], 64, 64, 4
        $region68: #{tpu_custom_call.1} parent=11 // pred_fallthru
          _
        // Predicated region
        $region69: #{tpu_custom_call.1} parent=11 // pred_check
          %p688 = pneg %p369
        $region70: #{tpu_custom_call.1} parent=11 // pred_check_branch
          %690 = sbr.rel (%p688) target = $region72
        $region71: #{tpu_custom_call.1} parent=11 // pred_region
          %692 = vsyncadd [#allocation26], 0
          %s694 = sshll.u32 %s14, 4
          %s695 = int_to_ptr.hbm [resolvable:$true] %s694
          %s696 = sshll.u32 [#allocation27], 4
          %s697 = int_to_ptr.vmem [resolvable:$true] %s696
          %699 = dma.hbm_to_vmem [thread:$0]  %s695, 16, %s697, [#allocation26]
        $region72: #{tpu_custom_call.1} parent=11 // pred_fallthru
          _
        // Predicated region
        $region73: #{tpu_custom_call.1} parent=11 // pred_check
          %p700 = pneg %p390
        $region74: #{tpu_custom_call.1} parent=11 // pred_check_branch
          %702 = sbr.rel (%p700) target = $region76
        $region75: #{tpu_custom_call.1} parent=11 // pred_region
          _
        $region76: #{tpu_custom_call.1} parent=11 // pred_fallthru
          _
        // Predicated region
        $region77: #{tpu_custom_call.1} parent=11 // pred_check
          %p703 = pneg %p411
        $region78: #{tpu_custom_call.1} parent=11 // pred_check_branch
          %705 = sbr.rel (%p703) target = $region80
        $region79: #{tpu_custom_call.1} parent=11 // pred_region
          %707 = vsyncadd [#allocation29], 0
          %s709 = sshll.u32 %s16, 4
          %s710 = int_to_ptr.hbm [resolvable:$true] %s709
          %s711 = sshll.u32 [#allocation28], 4
          %s712 = int_to_ptr.vmem [resolvable:$true] %s711
          %714 = dma.hbm_to_vmem [thread:$0]  %s710, 16, %s712, [#allocation29]
        $region80: #{tpu_custom_call.1} parent=11 // pred_fallthru
          _
        // Predicated region
        $region81: #{tpu_custom_call.1} parent=11 // pred_check
          %p715 = pneg %p432
        $region82: #{tpu_custom_call.1} parent=11 // pred_check_branch
          %717 = sbr.rel (%p715) target = $region84
        $region83: #{tpu_custom_call.1} parent=11 // pred_region
          %719 = vsyncadd [#allocation29], 0
          %s721 = sshll.u32 %s17, 4
          %s722 = int_to_ptr.hbm [resolvable:$true] %s721
          %s723 = sshll.u32 [#allocation30], 4
          %s724 = int_to_ptr.vmem [resolvable:$true] %s723
          %726 = dma.hbm_to_vmem [thread:$0]  %s722, 16, %s724, [#allocation29]
        $region84: #{tpu_custom_call.1} parent=11 // pred_fallthru
          _
        // Predicated region
        $region85: #{tpu_custom_call.1} parent=11 // pred_check
          %p727 = pneg %p453
        $region86: #{tpu_custom_call.1} parent=11 // pred_check_branch
          %729 = sbr.rel (%p727) target = $region88
        $region87: #{tpu_custom_call.1} parent=11 // pred_region
          _
        $region88: #{tpu_custom_call.1} parent=11 // pred_fallthru
          _
        // Predicated region
        $region89: #{tpu_custom_call.1} parent=11 // pred_check
          %p730 = pneg %p474
        $region90: #{tpu_custom_call.1} parent=11 // pred_check_branch
          %732 = sbr.rel (%p730) target = $region92
        $region91: #{tpu_custom_call.1} parent=11 // pred_region
          _
        $region92: #{tpu_custom_call.1} parent=11 // pred_fallthru
          _
        // Predicated region
        $region93: #{tpu_custom_call.1} parent=11 // pred_check
          %p733 = pneg %p495
        $region94: #{tpu_custom_call.1} parent=11 // pred_check_branch
          %735 = sbr.rel (%p733) target = $region96
        $region95: #{tpu_custom_call.1} parent=11 // pred_region
          _
        $region96: #{tpu_custom_call.1} parent=11 // pred_fallthru
          _
      $region12: #{tpu_custom_call.1} parent=5 // pred_fallthru
        _
      %p736 = scmp.lt.s32.totalorder %s37, 8
      // Predicated region
      $region97: #{tpu_custom_call.1} parent=5 // pred_check
        %p737 = pneg %p736
      $region98: #{tpu_custom_call.1} parent=5 // pred_check_branch
        %739 = sbr.rel (%p737) target = $region100
      $region99: #{tpu_custom_call.1} parent=5 // pred_region
        _
      $region100: #{tpu_custom_call.1} parent=5 // pred_fallthru
        _
      %p740 = scmp.le.s32.totalorder 1, %s37
      %p741 = scmp.lt.s32.totalorder %s37, 9
      %p742 = pnand %p740, %p741
      %p743 = pneg %p742
      // Predicated region
      $region101: #{tpu_custom_call.1} parent=5 // pred_check
        _
      $region102: #{tpu_custom_call.1} parent=5 // pred_check_branch
        %745 = sbr.rel (%p742) target = $region104
      $region103: #{tpu_custom_call.1} parent=5 // pred_region
        %s746 = ssub.s32 %s37, 1
        // Predicated region
        $region105: #{tpu_custom_call.1} parent=103 // pred_check
          %p747 = pneg %p96
        $region106: #{tpu_custom_call.1} parent=103 // pred_check_branch
          %749 = sbr.rel (%p747) target = $region108
        $region107: #{tpu_custom_call.1} parent=103 // pred_region
          %751 = dma.done [#allocation11], 128
        $region108: #{tpu_custom_call.1} parent=103 // pred_fallthru
          _
        // Predicated region
        $region109: #{tpu_custom_call.1} parent=103 // pred_check
          %p752 = pneg %p117
        $region110: #{tpu_custom_call.1} parent=103 // pred_check_branch
          %754 = sbr.rel (%p752) target = $region112
        $region111: #{tpu_custom_call.1} parent=103 // pred_region
          %756 = dma.done [#allocation14], 128
        $region112: #{tpu_custom_call.1} parent=103 // pred_fallthru
          _
        // Predicated region
        $region113: #{tpu_custom_call.1} parent=103 // pred_check
          %p757 = pneg %p138
        $region114: #{tpu_custom_call.1} parent=103 // pred_check_branch
          %759 = sbr.rel (%p757) target = $region116
        $region115: #{tpu_custom_call.1} parent=103 // pred_region
          %761 = dma.done [#allocation14], 128
        $region116: #{tpu_custom_call.1} parent=103 // pred_fallthru
          _
        // Predicated region
        $region117: #{tpu_custom_call.1} parent=103 // pred_check
          %p762 = pneg %p180
        $region118: #{tpu_custom_call.1} parent=103 // pred_check_branch
          %764 = sbr.rel (%p762) target = $region120
        $region119: #{tpu_custom_call.1} parent=103 // pred_region
          %766 = dma.done [#allocation17], 16
        $region120: #{tpu_custom_call.1} parent=103 // pred_fallthru
          _
        // Predicated region
        $region121: #{tpu_custom_call.1} parent=103 // pred_check
          %p767 = pneg %p222
        $region122: #{tpu_custom_call.1} parent=103 // pred_check_branch
          %769 = sbr.rel (%p767) target = $region124
        $region123: #{tpu_custom_call.1} parent=103 // pred_region
          %771 = dma.done [#allocation17], 256
        $region124: #{tpu_custom_call.1} parent=103 // pred_fallthru
          _
        // Predicated region
        $region125: #{tpu_custom_call.1} parent=103 // pred_check
          %p772 = pneg %p243
        $region126: #{tpu_custom_call.1} parent=103 // pred_check_branch
          %774 = sbr.rel (%p772) target = $region128
        $region127: #{tpu_custom_call.1} parent=103 // pred_region
          %776 = dma.done [#allocation20], 16
        $region128: #{tpu_custom_call.1} parent=103 // pred_fallthru
          _
        // Predicated region
        $region129: #{tpu_custom_call.1} parent=103 // pred_check
          %p777 = pneg %p285
        $region130: #{tpu_custom_call.1} parent=103 // pred_check_branch
          %779 = sbr.rel (%p777) target = $region132
        $region131: #{tpu_custom_call.1} parent=103 // pred_region
          %781 = dma.done [#allocation20], 16
        $region132: #{tpu_custom_call.1} parent=103 // pred_fallthru
          _
        // Predicated region
        $region133: #{tpu_custom_call.1} parent=103 // pred_check
          %p782 = pneg %p306
        $region134: #{tpu_custom_call.1} parent=103 // pred_check_branch
          %784 = sbr.rel (%p782) target = $region136
        $region135: #{tpu_custom_call.1} parent=103 // pred_region
          %786 = dma.done [#allocation23], 128
        $region136: #{tpu_custom_call.1} parent=103 // pred_fallthru
          _
        // Predicated region
        $region137: #{tpu_custom_call.1} parent=103 // pred_check
          %p787 = pneg %p327
        $region138: #{tpu_custom_call.1} parent=103 // pred_check_branch
          %789 = sbr.rel (%p787) target = $region140
        $region139: #{tpu_custom_call.1} parent=103 // pred_region
          %791 = dma.done [#allocation23], 16
        $region140: #{tpu_custom_call.1} parent=103 // pred_fallthru
          _
        // Predicated region
        $region141: #{tpu_custom_call.1} parent=103 // pred_check
          %p792 = pneg %p348
        $region142: #{tpu_custom_call.1} parent=103 // pred_check_branch
          %794 = sbr.rel (%p792) target = $region144
        $region143: #{tpu_custom_call.1} parent=103 // pred_region
          %796 = dma.done [#allocation26], 128
        $region144: #{tpu_custom_call.1} parent=103 // pred_fallthru
          _
        // Predicated region
        $region145: #{tpu_custom_call.1} parent=103 // pred_check
          %p797 = pneg %p369
        $region146: #{tpu_custom_call.1} parent=103 // pred_check_branch
          %799 = sbr.rel (%p797) target = $region148
        $region147: #{tpu_custom_call.1} parent=103 // pred_region
          %801 = dma.done [#allocation26], 16
        $region148: #{tpu_custom_call.1} parent=103 // pred_fallthru
          _
        // Predicated region
        $region149: #{tpu_custom_call.1} parent=103 // pred_check
          %p802 = pneg %p411
        $region150: #{tpu_custom_call.1} parent=103 // pred_check_branch
          %804 = sbr.rel (%p802) target = $region152
        $region151: #{tpu_custom_call.1} parent=103 // pred_region
          %806 = dma.done [#allocation29], 16
        $region152: #{tpu_custom_call.1} parent=103 // pred_fallthru
          _
        // Predicated region
        $region153: #{tpu_custom_call.1} parent=103 // pred_check
          %p807 = pneg %p432
        $region154: #{tpu_custom_call.1} parent=103 // pred_check_branch
          %809 = sbr.rel (%p807) target = $region156
        $region155: #{tpu_custom_call.1} parent=103 // pred_region
          %811 = dma.done [#allocation29], 16
        $region156: #{tpu_custom_call.1} parent=103 // pred_fallthru
          _
        %s812 = smul.u32 2, %s46
        %p813 = scmp.lt.s32.totalorder %s812, 1
        %s814 = scalar_select %p813, %s812, 1
        %s815 = smul.addr %s814, 4
        %s816 = scalar_lea.vmem %s0, %s815
        %p817 = pneg %p75
        %p818 = pneg %p72
        %p819 = pneg %p96
        %p820 = pneg %p93
        %p821 = pneg %p117
        %p822 = pneg %p114
        %p823 = pneg %p138
        %p824 = pneg %p135
        %p825 = pneg %p159
        %p826 = pneg %p156
        %p827 = pneg %p180
        %p828 = pneg %p177
        %p829 = pneg %p201
        %p830 = pneg %p198
        %p831 = pneg %p222
        %p832 = pneg %p219
        %p833 = pneg %p243
        %p834 = pneg %p240
        %p835 = pneg %p264
        %p836 = pneg %p261
        %p837 = pneg %p285
        %p838 = pneg %p282
        %p839 = pneg %p306
        %p840 = pneg %p303
        %p841 = pneg %p327
        %p842 = pneg %p324
        %p843 = pneg %p348
        %p844 = pneg %p345
        %p845 = pneg %p369
        %p846 = pneg %p366
        %p847 = pneg %p390
        %p848 = pneg %p387
        %p849 = pneg %p411
        %p850 = pneg %p408
        %p851 = pneg %p432
        %p852 = pneg %p429
        %p853 = pneg %p453
        %p854 = pneg %p450
        %p855 = pneg %p474
        %p856 = pneg %p471
        %p857 = pneg %p495
        %p858 = pneg %p492
        %p859 = pneg %p523
        %p860 = pneg %p520
        %s861 = sand.u32 %s510, 1
        %s862 = scalar_lea.sflag [#allocation12], %s861
        %s863 = sand.u32 %s510, 1
        %s864 = scalar_lea.vmem [#allocation31], %s863
        %s865 = smul.u32 2, %s46
        %p866 = scmp.lt.s32.totalorder %s865, 1
        %s867 = scalar_select %p866, %s865, 1
        %s868 = smul.addr %s867, 4
        %s869 = scalar_lea.vmem %s0, %s868
        %s870 = smul.u32 2, %s46
        %p872 = scmp.eq.s32.totalorder %s47, 0
        // Predicated region
        $region157: #{tpu_custom_call.1} parent=103 // pred_check
          %p873 = pneg %p872
        $region158: #{tpu_custom_call.1} parent=103 // pred_check_branch
          %875 = sbr.rel (%p873) target = $region160
        $region159: #{tpu_custom_call.1} parent=103 // pred_region
          %v876 = vld [vmem:[%s869] sm:$0xf]
          %v877 = vld [vmem:[%s869 + $0x4] sm:$0xf]
          %v878 = vld [vmem:[#allocation22] sm:$0xf]
          %v879 = vld [vmem:[#allocation22 + $0x4] sm:$0xf]
          %v880 = vld [vmem:[#allocation24] sm:$0x1]
          %v882 = vperm.slane %v880, 0
          %v886 = vunpack.c.l.b16 %v876
          %v887 = vunpack.c.l.b16 %v877
          %v888 = vpack.c.b16 %v887, %v886
          %v891 = vunpack.c.l.b16 %v878
          %v892 = vunpack.c.l.b16 %v879
          %v893 = vpack.c.b16 %v892, %v891
          %vm895 = vcmask 130048
          %v897 = vsel %vm895, %v888, 0
          %899 = vmatpush.bf16.msra.mxu0 0
          %900 = vmatpush.bf16.msra.mxu0 0
          %901 = vmatpush.bf16.msra.mxu0 0
          %902 = vmatpush.bf16.msra.mxu0 0
          %903 = vmatpush.bf16.msra.mxu0 0
          %904 = vmatpush.bf16.msra.mxu0 0
          %905 = vmatpush.bf16.msra.mxu0 0
          %906 = vmatpush.bf16.msra.mxu0 %v893
          %907 = vmatmul.bf16.gmra.mxu0 %v897
          %v908 = vpop.f32.mrf.mxu0
          %v909 = vadd.f32 %v882, %v908
          %v910 = vpop.f32.mrf.mxu0
          %v911 = vadd.f32 %v882, %v910
          %912 = vdwg.mxu0
          %913 = vst.msk [vmem:[#allocation2] sm:$0xff] %vm895, %v909
          %914 = vst.msk [vmem:[#allocation2 + $0x8] sm:$0xff] %vm895, %v911
          %v915 = vld [vmem:[#allocation25] sm:$0xf]
          %v916 = vld [vmem:[#allocation25 + $0x4] sm:$0xf]
          %v917 = vld [vmem:[#allocation27] sm:$0x1]
          %v919 = vperm.slane %v917, 0
          %v923 = vunpack.c.l.b16 %v915
          %v924 = vunpack.c.l.b16 %v916
          %v925 = vpack.c.b16 %v924, %v923
          %927 = vmatpush.bf16.msra.mxu0 0
          %928 = vmatpush.bf16.msra.mxu0 0
          %929 = vmatpush.bf16.msra.mxu0 0
          %930 = vmatpush.bf16.msra.mxu0 0
          %931 = vmatpush.bf16.msra.mxu0 0
          %932 = vmatpush.bf16.msra.mxu0 0
          %933 = vmatpush.bf16.msra.mxu0 0
          %934 = vmatpush.bf16.msra.mxu0 %v925
          %935 = vmatmul.bf16.gmra.mxu0 %v897
          %v936 = vpop.f32.mrf.mxu0
          %v937 = vadd.f32 %v919, %v936
          %v938 = vpop.f32.mrf.mxu0
          %v939 = vadd.f32 %v919, %v938
          %940 = vdwg.mxu0
          %941 = vst.msk [vmem:[#allocation3] sm:$0xff] %vm895, %v937
          %942 = vst.msk [vmem:[#allocation3 + $0x8] sm:$0xff] %vm895, %v939
          %vm943 = vcmask 254976
          %944 = vst.msk [vmem:[#allocation4] sm:$0x3] %vm943, 0.0
          %945 = vst.msk [vmem:[#allocation5] sm:$0x3] %vm943, 0.0
          %946 = vst.msk [vmem:[#allocation6] sm:$0x3] %vm943, 0.0
          %947 = vst.msk [vmem:[#allocation7] sm:$0x3] %vm943, 0.0
          %vm948 = vcmask 123904
          %949 = vst.msk [vmem:[#allocation8] sm:$0x3] %vm948, 0.0
          %vm950 = vcmask 1024
          %951 = vst.msk [vmem:[#allocation9] sm:$0x3] %vm950, 0
        $region160: #{tpu_custom_call.1} parent=103 // pred_fallthru
          _
        %v952 = vlaneseq
        %v953 = vand.u32 %v952, 127
        %v954 = vld [vmem:[#allocation9] sm:$0x3]
        %955 = vset.pattern.permute.xlu0 0
        %956 = vperm.xlu0 %955, %v954
        %v957 = vpop.permute.xlu0 %956
        %vm958 = vcmp.eq.s32.totalorder %v953, %v957
        %v959 = vsel %vm958, 1, 0
        %v960 = vcvt.s32.f32 %v959
        %v961 = vpack.c.bf16 %v960, %v960
        %v962 = vld [vmem:[#allocation10] sm:$0xf]
        %v963 = vld [vmem:[#allocation10 + $0x4] sm:$0x1]
        %v966 = vunpack.c.l.b16 %v962
        %v967 = vunpack.c.l.b16 %v963
        %v968 = vpack.c.b16 %v967, %v966
        %vm969 = vcmask 80896
        %v971 = vsel %vm969, %v961, 0
        %vm973 = vcmask 1044480
        %v975 = vsel %vm973, %v968, 0
        %977 = vmatpush.bf16.msra.mxu0 0
        %978 = vmatpush.bf16.msra.mxu0 0
        %979 = vmatpush.bf16.msra.mxu0 0
        %980 = vmatpush.bf16.msra.mxu0 0
        %981 = vmatpush.bf16.msra.mxu0 0
        %982 = vmatpush.bf16.msra.mxu0 0
        %983 = vmatpush.bf16.msra.mxu0 0
        %984 = vmatpush.bf16.msra.mxu0 %v975
        %985 = vmatmul.bf16.gmra.mxu0 %v971
        %v986 = vpop.f32.mrf.mxu0
        %v987 = vadd.f32 0.0, %v986
        %v988 = vpop.f32.mrf.mxu0
        %989 = vdwg.mxu0
        %v990 = vld [vmem:[#allocation8] sm:$0x3]
        %v991 = vpack.c.bf16 %v987, %v987
        %v992 = vld [vmem:[#allocation13] sm:$0xf]
        %v993 = vld [vmem:[#allocation13 + $0x4] sm:$0xf]
        %v994 = vpack.c.bf16 %v990, %v990
        %v995 = vld [vmem:[#allocation15] sm:$0xf]
        %v996 = vld [vmem:[#allocation15 + $0x4] sm:$0xf]
        %v999 = vunpack.c.l.b16 %v995
        %v1000 = vunpack.c.l.b16 %v996
        %v1001 = vpack.c.b16 %v1000, %v999
        %vm1003 = vcmask 130048
        %v1005 = vsel %vm1003, %v994, 0
        %1007 = vmatpush.bf16.msra.mxu0 0
        %1008 = vmatpush.bf16.msra.mxu0 0
        %1009 = vmatpush.bf16.msra.mxu0 0
        %1010 = vmatpush.bf16.msra.mxu0 0
        %1011 = vmatpush.bf16.msra.mxu0 0
        %1012 = vmatpush.bf16.msra.mxu0 0
        %1013 = vmatpush.bf16.msra.mxu0 0
        %1014 = vmatpush.bf16.msra.mxu0 %v1001
        %1015 = vmatmul.bf16.gmra.mxu0 %v1005
        %v1016 = vpop.f32.mrf.mxu0
        %v1017 = vadd.f32 0.0, %v1016
        %v1018 = vpop.f32.mrf.mxu0
        %1019 = vdwg.mxu0
        %v1022 = vunpack.c.l.b16 %v992
        %v1023 = vunpack.c.l.b16 %v993
        %v1024 = vpack.c.b16 %v1023, %v1022
        %v1027 = vsel %vm1003, %v991, 0
        %1029 = vmatpush.bf16.msra.mxu0 0
        %1030 = vmatpush.bf16.msra.mxu0 0
        %1031 = vmatpush.bf16.msra.mxu0 0
        %1032 = vmatpush.bf16.msra.mxu0 0
        %1033 = vmatpush.bf16.msra.mxu0 0
        %1034 = vmatpush.bf16.msra.mxu0 0
        %1035 = vmatpush.bf16.msra.mxu0 0
        %1036 = vmatpush.bf16.msra.mxu0 %v1024
        %1037 = vmatmul.bf16.gmra.mxu0 %v1027
        %v1038 = vpop.f32.mrf.mxu0
        %v1039 = vadd.f32 %v1017, %v1038
        %v1040 = vpop.f32.mrf.mxu0
        %1041 = vdwg.mxu0
        %v1042 = vld [vmem:[#allocation4] sm:$0x3]
        %v1043 = vld [vmem:[#allocation5] sm:$0x3]
        %v1044 = vld [vmem:[%s4] sm:$0xf]
        %v1045 = vld [vmem:[%s4 + $0x4] sm:$0xf]
        %v1046 = vld [vmem:[%s4 + $0x8] sm:$0xf]
        %v1047 = vld [vmem:[%s4 + $0xc] sm:$0xf]
        %v1048 = vld [vmem:[#allocation16] sm:$0x1]
        %v1049 = vpack.c.bf16 %v1042, %v1042
        %v1054 = vunpack.c.l.b16 %v1044
        %v1055 = vunpack.c.l.b16 %v1045
        %v1056 = vunpack.c.l.b16 %v1046
        %v1057 = vunpack.c.l.b16 %v1047
        %v1058 = vpack.c.b16 %v1055, %v1054
        %v1059 = vpack.c.b16 %v1057, %v1056
        %vm1062 = vcmask 261120
        %v1064 = vsel %vm1062, %v1049, 0
        %1066 = vmatpush.bf16.msra.mxu0 0
        %1067 = vmatpush.bf16.msra.mxu0 0
        %1068 = vmatpush.bf16.msra.mxu0 0
        %1069 = vmatpush.bf16.msra.mxu0 0
        %1070 = vmatpush.bf16.msra.mxu0 0
        %1071 = vmatpush.bf16.msra.mxu0 0
        %1072 = vmatpush.bf16.msra.mxu0 %v1059
        %1073 = vmatpush.bf16.msra.mxu0 %v1058
        %1074 = vmatmul.bf16.gmra.mxu0 %v1064
        %v1075 = vpop.f32.mrf.mxu0
        %v1076 = vadd.f32 0.0, %v1075
        %v1077 = vpop.f32.mrf.mxu0
        %1078 = vdwg.mxu0
        %v1079 = vadd.f32 %v1039, %v1076
        %v1081 = vperm.slane %v1048, 0
        %v1083 = vadd.f32 %v1079, %v1081
        %v1084 = vxor.u32 %v1083, 2147483648
        %v1085 = vmul.f32 %v1084, 1.442695
        %v1086 = vpow.pop %v1085
        %v1087 = vadd.f32 %v1086, 1.0
        %v1088 = vrcp.pop %v1087
        %v1089 = vmul.f32 %v1087, %v1088
        %v1090 = vsub.f32 1.0, %v1089
        %v1091 = vmul.f32 %v1088, %v1090
        %v1092 = vadd.f32 %v1088, %v1091
        %vm1093 = vweird.f32 %v1087
        %vm1094 = vweird.f32 %v1088
        %vm1095 = vmor %vm1093, %vm1094
        %v1096 = vsel %vm1095, %v1088, %v1092
        %v1097 = vand.u32 2147483647, %v1087
        %vm1098 = vcmp.eq.f32.partialorder %v1097, 8.507059e+37
        %v1099 = vand.u32 %v1087, 2147483648
        %v1100 = vor.u32 1.1754944e-38, %v1099
        %v1101 = vsel %vm1098, %v1100, %v1096
        %v1102 = vmul.f32 1.0, %v1101
        %v1103 = vtanh.pop %v1083
        %1105 = vrot.lane.b32.xlu0 %v1043, 32
        %v1106 = vpop.permute.xlu0 %1105
        %v1108 = vmul.f32 %v1102, %v1106
        %1110 = vrot.lane.b32.xlu0 %v1103, 64
        %v1111 = vpop.permute.xlu0 %1110
        %v1113 = vmul.f32 %v1102, %v1111
        %1115 = vrot.lane.b32.xlu0 %v1113, 32
        %v1116 = vpop.permute.xlu0 %1115
        %v1118 = vadd.f32 %v1108, %v1116
        %v1119 = vtanh.pop %v1118
        %1121 = vrot.lane.b32.xlu0 %v1119, 64
        %v1122 = vpop.permute.xlu0 %1121
        %v1124 = vmul.f32 %v1102, %v1122
        %v1125 = vpack.c.bf16 %v1124, %v1124
        %v1126 = vld [vmem:[%s6] sm:$0xf]
        %v1127 = vld [vmem:[%s6 + $0x4] sm:$0xf]
        %v1128 = vld [vmem:[%s6 + $0x8] sm:$0xf]
        %v1129 = vld [vmem:[%s6 + $0xc] sm:$0xf]
        %v1130 = vld [vmem:[#allocation6] sm:$0x3]
        %v1131 = vld [vmem:[#allocation7] sm:$0x3]
        %v1132 = vld [vmem:[#allocation18] sm:$0xf]
        %v1133 = vld [vmem:[#allocation18 + $0x4] sm:$0xf]
        %v1134 = vld [vmem:[#allocation18 + $0x8] sm:$0xf]
        %v1135 = vld [vmem:[#allocation18 + $0xc] sm:$0xf]
        %v1136 = vld [vmem:[#allocation19] sm:$0x1]
        %v1137 = vpack.c.bf16 %v1130, %v1130
        %v1142 = vunpack.c.l.b16 %v1132
        %v1143 = vunpack.c.l.b16 %v1133
        %v1144 = vunpack.c.l.b16 %v1134
        %v1145 = vunpack.c.l.b16 %v1135
        %v1146 = vpack.c.b16 %v1143, %v1142
        %v1147 = vpack.c.b16 %v1145, %v1144
        %v1151 = vsel %vm1062, %v1137, 0
        %1153 = vmatpush.bf16.msra.mxu0 0
        %1154 = vmatpush.bf16.msra.mxu0 0
        %1155 = vmatpush.bf16.msra.mxu0 0
        %1156 = vmatpush.bf16.msra.mxu0 0
        %1157 = vmatpush.bf16.msra.mxu0 0
        %1158 = vmatpush.bf16.msra.mxu0 0
        %1159 = vmatpush.bf16.msra.mxu0 %v1147
        %1160 = vmatpush.bf16.msra.mxu0 %v1146
        %1161 = vmatmul.bf16.gmra.mxu0 %v1151
        %v1162 = vpop.f32.mrf.mxu0
        %v1163 = vadd.f32 0.0, %v1162
        %v1164 = vpop.f32.mrf.mxu0
        %1165 = vdwg.mxu0
        %1167 = vrot.lane.b32.xlu0 %v1125, 32
        %v1168 = vpop.permute.xlu0 %1167
        %v1173 = vunpack.c.l.b16 %v1126
        %v1174 = vunpack.c.l.b16 %v1127
        %v1175 = vunpack.c.l.b16 %v1128
        %v1176 = vunpack.c.l.b16 %v1129
        %v1177 = vpack.c.b16 %v1174, %v1173
        %v1178 = vpack.c.b16 %v1176, %v1175
        %v1182 = vsel %vm1062, %v1168, 0
        %1184 = vmatpush.bf16.msra.mxu0 0
        %1185 = vmatpush.bf16.msra.mxu0 0
        %1186 = vmatpush.bf16.msra.mxu0 0
        %1187 = vmatpush.bf16.msra.mxu0 0
        %1188 = vmatpush.bf16.msra.mxu0 0
        %1189 = vmatpush.bf16.msra.mxu0 0
        %1190 = vmatpush.bf16.msra.mxu0 %v1178
        %1191 = vmatpush.bf16.msra.mxu0 %v1177
        %1192 = vmatmul.bf16.gmra.mxu0 %v1182
        %v1193 = vpop.f32.mrf.mxu0
        %v1194 = vadd.f32 %v1163, %v1193
        %v1195 = vpop.f32.mrf.mxu0
        %1196 = vdwg.mxu0
        %v1198 = vperm.slane %v1136, 0
        %v1200 = vadd.f32 %v1194, %v1198
        %v1201 = vxor.u32 %v1200, 2147483648
        %v1202 = vmul.f32 %v1201, 1.442695
        %v1203 = vpow.pop %v1202
        %v1204 = vadd.f32 %v1203, 1.0
        %v1205 = vrcp.pop %v1204
        %v1206 = vmul.f32 %v1204, %v1205
        %v1207 = vsub.f32 1.0, %v1206
        %v1208 = vmul.f32 %v1205, %v1207
        %v1209 = vadd.f32 %v1205, %v1208
        %vm1210 = vweird.f32 %v1204
        %vm1211 = vweird.f32 %v1205
        %vm1212 = vmor %vm1210, %vm1211
        %v1213 = vsel %vm1212, %v1205, %v1209
        %v1214 = vand.u32 2147483647, %v1204
        %vm1215 = vcmp.eq.f32.partialorder %v1214, 8.507059e+37
        %v1216 = vand.u32 %v1204, 2147483648
        %v1217 = vor.u32 1.1754944e-38, %v1216
        %v1218 = vsel %vm1215, %v1217, %v1213
        %v1219 = vmul.f32 1.0, %v1218
        %v1220 = vtanh.pop %v1200
        %1222 = vrot.lane.b32.xlu0 %v1131, 32
        %v1223 = vpop.permute.xlu0 %1222
        %v1225 = vmul.f32 %v1219, %v1223
        %1227 = vrot.lane.b32.xlu0 %v1220, 64
        %v1228 = vpop.permute.xlu0 %1227
        %v1230 = vmul.f32 %v1219, %v1228
        %1232 = vrot.lane.b32.xlu0 %v1230, 32
        %v1233 = vpop.permute.xlu0 %1232
        %v1235 = vadd.f32 %v1225, %v1233
        %v1236 = vtanh.pop %v1235
        %1238 = vrot.lane.b32.xlu0 %v1236, 64
        %v1239 = vpop.permute.xlu0 %1238
        %v1241 = vmul.f32 %v1219, %v1239
        %v1242 = vpack.c.bf16 %v1241, %v1241
        %v1243 = vld [vmem:[%s9] sm:$0xf]
        %v1244 = vld [vmem:[%s9 + $0x4] sm:$0xf]
        %v1245 = vld [vmem:[%s9 + $0x8] sm:$0xf]
        %v1246 = vld [vmem:[%s9 + $0xc] sm:$0xf]
        %v1247 = vld [vmem:[#allocation21] sm:$0x1]
        %v1249 = vperm.slane %v1247, 0
        %1252 = vrot.lane.b32.xlu0 %v1242, 32
        %v1253 = vpop.permute.xlu0 %1252
        %v1258 = vunpack.c.l.b16 %v1243
        %v1259 = vunpack.c.l.b16 %v1244
        %v1260 = vunpack.c.l.b16 %v1245
        %v1261 = vunpack.c.l.b16 %v1246
        %v1262 = vpack.c.b16 %v1259, %v1258
        %v1263 = vpack.c.b16 %v1261, %v1260
        %v1267 = vsel %vm1062, %v1253, 0
        %1269 = vmatpush.bf16.msra.mxu0 0
        %1270 = vmatpush.bf16.msra.mxu0 0
        %1271 = vmatpush.bf16.msra.mxu0 0
        %1272 = vmatpush.bf16.msra.mxu0 0
        %1273 = vmatpush.bf16.msra.mxu0 0
        %1274 = vmatpush.bf16.msra.mxu0 0
        %1275 = vmatpush.bf16.msra.mxu0 %v1263
        %1276 = vmatpush.bf16.msra.mxu0 %v1262
        %1277 = vmatmul.bf16.gmra.mxu0 %v1267
        %v1278 = vpop.f32.mrf.mxu0
        %v1279 = vadd.f32 %v1249, %v1278
        %v1280 = vpop.f32.mrf.mxu0
        %1281 = vdwg.mxu0
        %v1283 = vrot.slane %v1279, 1
        %v1284 = vld [vmem:[#allocation2] sm:$0xff]
        %v1285 = vld [vmem:[#allocation2 + $0x8] sm:$0xff]
        %v1286 = vperm.slane %v1279, 0
        %v1287 = vperm.slane %v1283, 0
        %v1290 = vmul.f32 %v1286, %v1284
        %v1291 = vmul.f32 %v1287, %v1285
        %v1292 = vsel %vm1003, %v1290, 0.0
        %1293 = vadd.xlane.f32.xlu0 %v1292
        %v1294 = vpop.xlane.xlu0 %1293
        %v1295 = vsel %vm1003, %v1291, 0.0
        %1296 = vadd.xlane.f32.xlu0 %v1295
        %v1297 = vpop.xlane.xlu0 %1296
        %v1300 = vperm.slane %v1294, %v953
        %v1301 = vperm.slane %v1297, %v953
        %vm1302 = vcmask 1041409
        %v1303 = vsel %vm1302, %v1301, %v1300
        %vm1305 = vcmask 58368
        %v1306 = vsel %vm1305, %v1303, -inf
        %1307 = vmax.xlane.f32.xlu0 %v1306
        %v1308 = vpop.xlane.xlu0 %1307
        %v1310 = vperm.slane %v1308, 0
        %v1311 = vperm.slane %v1308, 1
        %v1314 = vsub.f32 %v1294, %v1310
        %v1315 = vsub.f32 %v1297, %v1311
        %v1316 = vmul.f32 %v1314, 1.442695
        %v1317 = vpow.pop %v1316
        %v1318 = vmul.f32 %v1315, 1.442695
        %v1319 = vpow.pop %v1318
        %1322 = vset.pattern.permute.xlu0 0
        %1323 = vperm.xlu0 %1322, %v1317
        %v1324 = vpop.permute.xlu0 %1323
        %1325 = vset.pattern.permute.xlu0 0
        %1326 = vperm.xlu0 %1325, %v1319
        %v1327 = vpop.permute.xlu0 %1326
        %v1328 = vperm.slane %v1324, %v953
        %v1329 = vperm.slane %v1327, %v953
        %v1330 = vsel %vm1302, %v1329, %v1328
        %v1332 = vsel %vm1305, %v1330, 0.0
        %1333 = vadd.xlane.f32.xlu0 %v1332
        %v1334 = vpop.xlane.xlu0 %1333
        %v1336 = vperm.slane %v1334, 0
        %v1337 = vperm.slane %v1334, 1
        %v1340 = vrcp.pop %v1336
        %v1341 = vmul.f32 %v1336, %v1340
        %v1342 = vsub.f32 1.0, %v1341
        %v1343 = vmul.f32 %v1340, %v1342
        %v1344 = vadd.f32 %v1340, %v1343
        %vm1345 = vweird.f32 %v1336
        %vm1346 = vweird.f32 %v1340
        %vm1347 = vmor %vm1345, %vm1346
        %v1348 = vsel %vm1347, %v1340, %v1344
        %v1349 = vand.u32 2147483647, %v1336
        %vm1350 = vcmp.eq.f32.partialorder %v1349, 8.507059e+37
        %v1351 = vand.u32 %v1336, 2147483648
        %v1352 = vor.u32 1.1754944e-38, %v1351
        %v1353 = vsel %vm1350, %v1352, %v1348
        %v1354 = vmul.f32 %v1317, %v1353
        %v1355 = vrcp.pop %v1337
        %v1356 = vmul.f32 %v1337, %v1355
        %v1357 = vsub.f32 1.0, %v1356
        %v1358 = vmul.f32 %v1355, %v1357
        %v1359 = vadd.f32 %v1355, %v1358
        %vm1360 = vweird.f32 %v1337
        %vm1361 = vweird.f32 %v1355
        %vm1362 = vmor %vm1360, %vm1361
        %v1363 = vsel %vm1362, %v1355, %v1359
        %v1364 = vand.u32 2147483647, %v1337
        %vm1365 = vcmp.eq.f32.partialorder %v1364, 8.507059e+37
        %v1366 = vand.u32 %v1337, 2147483648
        %v1367 = vor.u32 1.1754944e-38, %v1366
        %v1368 = vsel %vm1365, %v1367, %v1363
        %v1369 = vmul.f32 %v1319, %v1368
        %v1370 = vld [vmem:[#allocation3] sm:$0xff]
        %v1371 = vld [vmem:[#allocation3 + $0x8] sm:$0xff]
        %1373 = vset.pattern.permute.xlu0 0
        %1374 = vperm.xlu0 %1373, %v1354
        %v1375 = vpop.permute.xlu0 %1374
        %1378 = vset.pattern.permute.xlu0 0
        %1379 = vperm.xlu0 %1378, %v1369
        %v1380 = vpop.permute.xlu0 %1379
        %v1382 = vmul.f32 %v1375, %v1370
        %v1383 = vmul.f32 %v1380, %v1371
        %v1384 = vsel %vm1003, %v1382, 0.0
        %v1385 = vrot.slane %v1384, 4
        %v1386 = vadd.f32 %v1384, %v1385
        %v1387 = vrot.slane %v1386, 2
        %v1388 = vadd.f32 %v1386, %v1387
        %v1389 = vrot.slane %v1388, 1
        %v1390 = vadd.f32 %v1388, %v1389
        %v1391 = vsel %vm1003, %v1383, 0.0
        %v1392 = vrot.slane %v1391, 4
        %v1393 = vadd.f32 %v1391, %v1392
        %v1394 = vrot.slane %v1393, 2
        %v1395 = vadd.f32 %v1393, %v1394
        %v1396 = vrot.slane %v1395, 1
        %v1397 = vadd.f32 %v1395, %v1396
        %v1398 = vld [vmem:[%s15] sm:$0xf]
        %v1399 = vld [vmem:[%s15 + $0x4] sm:$0xf]
        %v1400 = vld [vmem:[%s15 + $0x8] sm:$0xf]
        %v1401 = vld [vmem:[%s15 + $0xc] sm:$0xf]
        %v1402 = vld [vmem:[#allocation28] sm:$0x1]
        %v1404 = vperm.slane %v1402, 0
        %v1410 = vunpack.c.l.b16 %v1398
        %v1411 = vunpack.c.l.b16 %v1399
        %v1412 = vunpack.c.l.b16 %v1400
        %v1413 = vunpack.c.l.b16 %v1401
        %v1414 = vpack.c.b16 %v1411, %v1410
        %v1415 = vpack.c.b16 %v1413, %v1412
        %1418 = vmatpush.bf16.msra.mxu0 0
        %1419 = vmatpush.bf16.msra.mxu0 0
        %1420 = vmatpush.bf16.msra.mxu0 0
        %1421 = vmatpush.bf16.msra.mxu0 0
        %1422 = vmatpush.bf16.msra.mxu0 0
        %1423 = vmatpush.bf16.msra.mxu0 0
        %1424 = vmatpush.bf16.msra.mxu0 %v1415
        %1425 = vmatpush.bf16.msra.mxu0 %v1414
        %1426 = vmatmul.bf16.gmra.mxu0 %v1267
        %v1427 = vpop.f32.mrf.mxu0
        %v1428 = vadd.f32 %v1404, %v1427
        %v1429 = vpop.f32.mrf.mxu0
        %1430 = vdwg.mxu0
        %vm1431 = vcmask 123904
        %v1432 = vsel %vm1431, %v1428, 0.0
        %1433 = vadd.xlane.f32.xlu0 %v1432
        %v1434 = vpop.xlane.xlu0 %1433
        %v1435 = vrcp.pop 16.0
        %v1436 = vmul.f32 16.0, %v1435
        %v1437 = vsub.f32 1.0, %v1436
        %v1438 = vmul.f32 %v1435, %v1437
        %v1439 = vadd.f32 %v1435, %v1438
        %vm1440 = vweird.f32 %v1435
        %v1441 = vsel %vm1440, %v1435, %v1439
        %v1442 = vmul.f32 %v1434, %v1441
        %v1443 = vsub.f32 %v1428, %v1442
        %v1444 = vmul.f32 %v1443, %v1443
        %v1445 = vsel %vm1431, %v1444, 0.0
        %1446 = vadd.xlane.f32.xlu0 %v1445
        %v1447 = vpop.xlane.xlu0 %1446
        %v1448 = vmul.f32 %v1447, %v1441
        %v1449 = vadd.f32 %v1448, 1e-05
        %v1450 = vrsqrt.pop %v1449
        %v1451 = vmul.f32 %v1450, %v1449
        %v1452 = vmul.f32 %v1451, %v1450
        %v1453 = vmul.f32 0.5, %v1452
        %v1454 = vsub.f32 1.5, %v1453
        %v1455 = vmul.f32 %v1450, %v1454
        %vm1456 = vweird.f32 %v1449
        %vm1457 = vweird.f32 %v1450
        %vm1458 = vmor %vm1456, %vm1457
        %v1459 = vsel %vm1458, %v1450, %v1455
        %v1460 = vmul.f32 %v1443, %v1459
        %v1461 = vld [vmem:[#allocation30] sm:$0x1]
        %v1463 = vperm.slane %v1461, 0
        %v1465 = vmul.f32 %v1460, %v1463
        %v1466 = vld [vmem:[%s18] sm:$0x1]
        %v1468 = vperm.slane %v1466, 0
        %v1470 = vadd.f32 %v1465, %v1468
        %v1471 = vmax.f32 %v1470, 0.0
        %v1472 = vpack.c.bf16 %v1471, %v1471
        %v1473 = vld [vmem:[%s19] sm:$0xf]
        %v1474 = vld [vmem:[%s19 + $0x4] sm:$0xf]
        %v1475 = vld [vmem:[%s20] sm:$0x1]
        %v1477 = vperm.slane %v1475, 0
        %v1481 = vunpack.c.l.b16 %v1473
        %v1482 = vunpack.c.l.b16 %v1474
        %v1483 = vpack.c.b16 %v1482, %v1481
        %v1486 = vsel %vm1003, %v1472, 0
        %1488 = vmatpush.bf16.msra.mxu0 0
        %1489 = vmatpush.bf16.msra.mxu0 0
        %1490 = vmatpush.bf16.msra.mxu0 0
        %1491 = vmatpush.bf16.msra.mxu0 0
        %1492 = vmatpush.bf16.msra.mxu0 0
        %1493 = vmatpush.bf16.msra.mxu0 0
        %1494 = vmatpush.bf16.msra.mxu0 0
        %1495 = vmatpush.bf16.msra.mxu0 %v1483
        %1496 = vmatmul.bf16.gmra.mxu0 %v1486
        %v1497 = vpop.f32.mrf.mxu0
        %v1498 = vadd.f32 %v1477, %v1497
        %v1499 = vpop.f32.mrf.mxu0
        %1500 = vdwg.mxu0
        %v1501 = vpack.c.bf16 %v1498, %v1498
        %1502 = vst [vmem:[%s864] sm:$0x1] %v1501
        %vm1503 = vcmask 1041408
        %v1504 = vsel %vm1503, %v1498, -inf
        %1505 = vmax.xlane.f32.xlu0 %v1504
        %v1506 = vpop.xlane.xlu0 %1505
        %vm1507 = vcmp.eq.f32.partialorder %v1498, %v1506
        %v1508 = vsel %vm1507, %v953, 1073741824
        %v1509 = vsel %vm1503, %v1508, 2147483647
        %v1510 = vand.u32 %v1509, 65535
        %v1511 = vshra.s32 %v1509, 16
        %v1512 = vcvt.s32.f32 %v1510
        %v1513 = vcvt.s32.f32 %v1511
        %1514 = vmin.xlane.f32.xlu0 %v1513
        %v1515 = vpop.xlane.xlu0 %1514
        %vm1516 = vcmp.eq.f32.partialorder %v1513, %v1515
        %v1517 = vsel %vm1516, %v1512, inf
        %1518 = vmin.xlane.f32.xlu0 %v1517
        %v1519 = vpop.xlane.xlu0 %1518
        %v1520 = vcvt.f32.s32 %v1519
        %v1521 = vcvt.f32.s32 %v1515
        %v1522 = vshll.u32 %v1521, 16
        %v1523 = vadd.s32 %v1522, %v1520
        %vm1524 = vcmask 1024
        %1525 = vst.msk [vmem:[#allocation9] sm:$0x3] %vm1524, %v1523
        %1527 = vrot.lane.b32.xlu0 %v1124, 32
        %v1528 = vpop.permute.xlu0 %1527
        %vm1530 = vcmask 254976
        %1531 = vst.msk [vmem:[#allocation4] sm:$0x3] %vm1530, %v1528
        %1533 = vrot.lane.b32.xlu0 %v1118, 96
        %v1534 = vpop.permute.xlu0 %1533
        %1536 = vst.msk [vmem:[#allocation5] sm:$0x3] %vm1530, %v1534
        %1538 = vrot.lane.b32.xlu0 %v1241, 32
        %v1539 = vpop.permute.xlu0 %1538
        %1541 = vst.msk [vmem:[#allocation6] sm:$0x3] %vm1530, %v1539
        %1543 = vrot.lane.b32.xlu0 %v1235, 96
        %v1544 = vpop.permute.xlu0 %1543
        %1546 = vst.msk [vmem:[#allocation7] sm:$0x3] %vm1530, %v1544
        %v1549 = vsel %vm1302, %v1397, %v1390
        %1551 = vst.msk [vmem:[#allocation8] sm:$0x3] %vm1431, %v1549
        %s1552 = sand.u32 %s510, 1
        %s1553 = scalar_lea.sflag [#allocation12], %s1552
        %s1554 = sand.u32 %s510, 1
        %s1555 = scalar_lea.vmem [#allocation31], %s1554
        // Predicated region
        $region161: #{tpu_custom_call.1} parent=103 // pred_check
          %p1556 = pneg %p520
        $region162: #{tpu_custom_call.1} parent=103 // pred_check_branch
          %1558 = sbr.rel (%p1556) target = $region164
        $region163: #{tpu_custom_call.1} parent=103 // pred_region
          %1560 = vsyncadd %s1553, 0
          %s1561 = smul.addr %s46, 8
          %s1562 = sadd.s32 %s47, %s1561
          %s1563 = scalar_lea.hbm %s21, %s1562
          %s1565 = sshll.u32 %s1555, 4
          %s1566 = int_to_ptr.vmem [resolvable:$true] %s1565
          %s1567 = sshll.u32 %s1563, 4
          %s1568 = int_to_ptr.hbm [resolvable:$true] %s1567
          %1570 = dma.vmem_to_hbm [thread:$0]  %s1566, 16, %s1568, %s1553
        $region164: #{tpu_custom_call.1} parent=103 // pred_fallthru
          _
      $region104: #{tpu_custom_call.1} parent=5 // pred_fallthru
        _
      %p1571 = scmp.le.s32.totalorder 2, %s37
      // Predicated region
      $region165: #{tpu_custom_call.1} parent=5 // pred_check
        %p1572 = pneg %p1571
      $region166: #{tpu_custom_call.1} parent=5 // pred_check_branch
        %1574 = sbr.rel (%p1572) target = $region168
      $region167: #{tpu_custom_call.1} parent=5 // pred_region
        %s1575 = ssub.s32 %s37, 2
        // Predicated region
        $region169: #{tpu_custom_call.1} parent=167 // pred_check
          %p1576 = pneg %p526
        $region170: #{tpu_custom_call.1} parent=167 // pred_check_branch
          %1578 = sbr.rel (%p1576) target = $region172
        $region171: #{tpu_custom_call.1} parent=167 // pred_region
          %s1579 = sand.u32 %s511, 1
          %s1580 = scalar_lea.sflag [#allocation12], %s1579
          %s1581 = sand.u32 %s511, 1
          %s1582 = scalar_lea.vmem [#allocation31], %s1581
          %1584 = dma.done %s1580, 16
        $region172: #{tpu_custom_call.1} parent=167 // pred_fallthru
          _
      $region168: #{tpu_custom_call.1} parent=5 // pred_fallthru
        _
    $region6: #{tpu_custom_call.1} parent=1 // loop_footer
      %s41 = sadd.s32 1, %s37
    $region7: #{tpu_custom_call.1} parent=1 // loop_footer_branch
      %36 = sbr.rel target = $region3
    $region8: #{tpu_custom_call.1} parent=1 // loop_exit
      _
    %1585 = vsyncpa [#allocation11], 1
    %s1586 = scalar_lea.sflag [#allocation11], 1
    %1587 = vsyncpa %s1586, 1
    %1588 = vsyncpa [#allocation14], 1
    %1589 = vsyncpa [#allocation17], 1
    %1590 = vsyncpa [#allocation20], 1
    %1591 = vsyncpa [#allocation23], 1
    %1592 = vsyncpa [#allocation26], 1
    %1593 = vsyncpa [#allocation29], 1
    %1594 = vsyncpa [#allocation12], 1
    %s1595 = scalar_lea.sflag [#allocation12], 1
    %1596 = vsyncpa %s1595, 1

// kernel: tpu_custom_call.1
$region0: #{tpu_custom_call.1}
  #allocation0 [shape = 'u32[]', space=smem, size = 0x4, offset = 0x4, fixed_abs, tag = 'smem constant byte address 0x4 - core index']
  #allocation1 [shape = 'u32[72,128]{1,0:T(1,128)}', space=vmem, size = 0x9000, scoped, tag = 'internal scratch']
  #allocation2 [shape = 'f32[2,8,16]{2,1,0:T(8,128)}', space=vmem, size = 0x2000, scoped, tag = 'scratch operand']
  #allocation3 [shape = 'f32[2,8,16]{2,1,0:T(8,128)}', space=vmem, size = 0x2000, scoped, tag = 'scratch operand']
  #allocation4 [shape = 'f32[2,32]{1,0:T(2,128)}', space=vmem, size = 0x400, scoped, tag = 'scratch operand']
  #allocation5 [shape = 'f32[2,32]{1,0:T(2,128)}', space=vmem, size = 0x400, scoped, tag = 'scratch operand']
  #allocation6 [shape = 'f32[2,32]{1,0:T(2,128)}', space=vmem, size = 0x400, scoped, tag = 'scratch operand']
  #allocation7 [shape = 'f32[2,32]{1,0:T(2,128)}', space=vmem, size = 0x400, scoped, tag = 'scratch operand']
  #allocation8 [shape = 'f32[2,16]{1,0:T(2,128)}', space=vmem, size = 0x400, scoped, tag = 'scratch operand']
  #allocation9 [shape = 's32[2,1]{1,0:T(2,128)}', space=vmem, size = 0x400, scoped, tag = 'scratch operand']
  %s0 = inlined_call_operand.vmem [shape: bf16[2,8,16], index: 0, kind: input, shape index: {}]
  %s1 = inlined_call_operand.hbm [shape: bf16[10,16], index: 1, kind: input, shape index: {}]
  %s2 = inlined_call_operand.hbm [shape: bf16[16,128], index: 2, kind: input, shape index: {}]
  %s3 = inlined_call_operand.hbm [shape: bf16[16,128], index: 3, kind: input, shape index: {}]
  %s4 = inlined_call_operand.vmem [shape: bf16[32,128], index: 4, kind: input, shape index: {}]
  %s5 = inlined_call_operand.hbm [shape: f32[1,128], index: 5, kind: input, shape index: {}]
  %s6 = inlined_call_operand.vmem [shape: bf16[32,128], index: 6, kind: input, shape index: {}]
  %s7 = inlined_call_operand.hbm [shape: bf16[32,128], index: 7, kind: input, shape index: {}]
  %s8 = inlined_call_operand.hbm [shape: f32[1,128], index: 8, kind: input, shape index: {}]
  %s9 = inlined_call_operand.vmem [shape: bf16[32,16], index: 9, kind: input, shape index: {}]
  %s10 = inlined_call_operand.hbm [shape: f32[1,16], index: 10, kind: input, shape index: {}]
  %s11 = inlined_call_operand.hbm [shape: bf16[16,16], index: 11, kind: input, shape index: {}]
  %s12 = inlined_call_operand.hbm [shape: f32[1,16], index: 12, kind: input, shape index: {}]
  %s13 = inlined_call_operand.hbm [shape: bf16[16,16], index: 13, kind: input, shape index: {}]
  %s14 = inlined_call_operand.hbm [shape: f32[1,16], index: 14, kind: input, shape index: {}]
  %s15 = inlined_call_operand.vmem [shape: bf16[32,16], index: 15, kind: input, shape index: {}]
  %s16 = inlined_call_operand.hbm [shape: f32[1,16], index: 16, kind: input, shape index: {}]
  %s17 = inlined_call_operand.hbm [shape: f32[1,16], index: 17, kind: input, shape index: {}]
  %s18 = inlined_call_operand.vmem [shape: f32[1,16], index: 18, kind: input, shape index: {}]
  %s19 = inlined_call_operand.vmem [shape: bf16[16,128], index: 19, kind: input, shape index: {}]
  %s20 = inlined_call_operand.vmem [shape: f32[1,128], index: 20, kind: input, shape index: {}]
  %s21 = inlined_call_operand.hbm [shape: bf16[2,1024], index: 21, kind: output, shape index: {}]
  %s22 = sld [smem:[#allocation0]]
  $region173: #{tpu_custom_call.1} parent=0
    _
  %s24 = ssub.s32 1, %s22
  %s25 = scalar_select 0, %s24, %s22
  $region1: #{tpu_custom_call.1} parent=0
    #allocation10 [shape = 'u8[4096]{0}', space=vmem, size = 0x1000, scoped, tag = 'input window, operand 1, single buffered']
    #allocation11 [shape = 's32[2]{0}', space=sflag, size = 0x8, scoped, tag = 'scoped memory for tpu_custom_call.1']
    #allocation12 [shape = 's32[2]{0}', space=sflag, size = 0x8, scoped, tag = 'scoped memory for tpu_custom_call.1']
    #allocation13 [shape = 'u8[4096]{0}', space=vmem, size = 0x1000, scoped, tag = 'input window, operand 2, single buffered']
    #allocation14 [shape = 's32[1]{0}', space=sflag, size = 0x4, scoped, tag = 'scoped memory for tpu_custom_call.1']
    #allocation15 [shape = 'u8[4096]{0}', space=vmem, size = 0x1000, scoped, tag = 'input window, operand 3, single buffered']
    #allocation16 [shape = 'u8[512]{0}', space=vmem, size = 0x400, scoped, tag = 'input window, operand 5, single buffered']
    #allocation17 [shape = 's32[1]{0}', space=sflag, size = 0x4, scoped, tag = 'scoped memory for tpu_custom_call.1']
    #allocation18 [shape = 'u8[8192]{0}', space=vmem, size = 0x2000, scoped, tag = 'input window, operand 7, single buffered']
    #allocation19 [shape = 'u8[512]{0}', space=vmem, size = 0x400, scoped, tag = 'input window, operand 8, single buffered']
    #allocation20 [shape = 's32[1]{0}', space=sflag, size = 0x4, scoped, tag = 'scoped memory for tpu_custom_call.1']
    #allocation21 [shape = 'u8[512]{0}', space=vmem, size = 0x400, scoped, tag = 'input window, operand 10, single buffered']
    #allocation22 [shape = 'u8[4096]{0}', space=vmem, size = 0x1000, scoped, tag = 'input window, operand 11, single buffered']
    #allocation23 [shape = 's32[1]{0}', space=sflag, size = 0x4, scoped, tag = 'scoped memory for tpu_custom_call.1']
    #allocation24 [shape = 'u8[512]{0}', space=vmem, size = 0x400, scoped, tag = 'input window, operand 12, single buffered']
    #allocation25 [shape = 'u8[4096]{0}', space=vmem, size = 0x1000, scoped, tag = 'input window, operand 13, single buffered']
    #allocation26 [shape = 's32[1]{0}', space=sflag, size = 0x4, scoped, tag = 'scoped memory for tpu_custom_call.1']
    #allocation27 [shape = 'u8[512]{0}', space=vmem, size = 0x400, scoped, tag = 'input window, operand 14, single buffered']
    #allocation28 [shape = 'u8[512]{0}', space=vmem, size = 0x400, scoped, tag = 'input window, operand 16, single buffered']
    #allocation29 [shape = 's32[1]{0}', space=sflag, size = 0x4, scoped, tag = 'scoped memory for tpu_custom_call.1']
    #allocation30 [shape = 'u8[512]{0}', space=vmem, size = 0x400, scoped, tag = 'input window, operand 17, single buffered']
    #allocation31 [shape = 'u8[1024]{0}', space=vmem, size = 0x400, scoped, tag = 'output window, operand 0']
    %26 = vsyncpa [#allocation11], 0
    %27 = vsyncpa [#allocation14], 0
    %28 = vsyncpa [#allocation17], 0
    %29 = vsyncpa [#allocation20], 0
    %30 = vsyncpa [#allocation23], 0
    %31 = vsyncpa [#allocation26], 0
    %32 = vsyncpa [#allocation29], 0
    %33 = vsyncpa [#allocation12], 0
    %s34 = scalar_lea.sflag [#allocation12], 1
    %35 = vsyncpa %s34, 0
    loop: start=0, step=1, limit=10
    $region2: #{tpu_custom_call.1} parent=1 // loop_pre_header
      _
    $region3: #{tpu_custom_call.1} parent=1 // loop_header
      %s37 = sphi 0, %s41
      %p38 = scmp.ge.s32.totalorder %s37, 10
      %s44 = sphi 0, %s56
      %s45 = sphi 0, %s52
      %s46 = sphi 0, %s44
      %s47 = sphi 0, %s45
      %s48 = sphi 0, %s46
      %s49 = sphi 0, %s47
      %s59 = sphi 0, %s61
      %s62 = sphi 0, %s59
      %s63 = sphi 0, %s62
      %s79 = sphi 0, %s63
      %s83 = sphi 0, %s83
      %s85 = sphi 0, %s83
      %s86 = sphi 0, %s85
      %s100 = sphi 0, %s86
      %s104 = sphi 0, %s104
      %s106 = sphi 0, %s104
      %s107 = sphi 0, %s106
      %s121 = sphi 0, %s107
      %s125 = sphi 0, %s125
      %s127 = sphi 0, %s125
      %s128 = sphi 0, %s127
      %s142 = sphi 0, %s128
      %s146 = sphi 0, %s146
      %s148 = sphi 0, %s146
      %s149 = sphi 0, %s148
      %s163 = sphi 0, %s149
      %s167 = sphi 0, %s167
      %s169 = sphi 0, %s167
      %s170 = sphi 0, %s169
      %s184 = sphi 0, %s170
      %s188 = sphi 0, %s188
      %s190 = sphi 0, %s188
      %s191 = sphi 0, %s190
      %s205 = sphi 0, %s191
      %s209 = sphi 0, %s209
      %s211 = sphi 0, %s209
      %s212 = sphi 0, %s211
      %s226 = sphi 0, %s212
      %s230 = sphi 0, %s230
      %s232 = sphi 0, %s230
      %s233 = sphi 0, %s232
      %s247 = sphi 0, %s233
      %s251 = sphi 0, %s251
      %s253 = sphi 0, %s251
      %s254 = sphi 0, %s253
      %s268 = sphi 0, %s254
      %s272 = sphi 0, %s272
      %s274 = sphi 0, %s272
      %s275 = sphi 0, %s274
      %s289 = sphi 0, %s275
      %s293 = sphi 0, %s293
      %s295 = sphi 0, %s293
      %s296 = sphi 0, %s295
      %s310 = sphi 0, %s296
      %s314 = sphi 0, %s314
      %s316 = sphi 0, %s314
      %s317 = sphi 0, %s316
      %s331 = sphi 0, %s317
      %s335 = sphi 0, %s335
      %s337 = sphi 0, %s335
      %s338 = sphi 0, %s337
      %s352 = sphi 0, %s338
      %s356 = sphi 0, %s356
      %s358 = sphi 0, %s356
      %s359 = sphi 0, %s358
      %s373 = sphi 0, %s359
      %s377 = sphi 0, %s377
      %s379 = sphi 0, %s377
      %s380 = sphi 0, %s379
      %s394 = sphi 0, %s380
      %s398 = sphi 0, %s398
      %s400 = sphi 0, %s398
      %s401 = sphi 0, %s400
      %s415 = sphi 0, %s401
      %s419 = sphi 0, %s419
      %s421 = sphi 0, %s419
      %s422 = sphi 0, %s421
      %s436 = sphi 0, %s422
      %s440 = sphi 0, %s440
      %s442 = sphi 0, %s440
      %s443 = sphi 0, %s442
      %s457 = sphi 0, %s443
      %s461 = sphi 0, %s461
      %s463 = sphi 0, %s461
      %s464 = sphi 0, %s463
      %s478 = sphi 0, %s464
      %s482 = sphi 0, %s482
      %s484 = sphi 0, %s482
      %s485 = sphi 0, %s484
      %s499 = sphi 0, %s485
      %s507 = sphi 0, %s509
      %s510 = sphi 0, %s507
      %s511 = sphi 0, %s510
      %s527 = sphi 0, %s511
    $region4: #{tpu_custom_call.1} parent=1 // loop_header_branch
      %40 = sbr.rel (%p38) target = $region8
    $region5: #{tpu_custom_call.1} parent=1 // loop_body
      %s42 = ssub.s32 %s37, 1
      %s43 = ssub.s32 %s37, 2
      %s50 = sadd.s32 1, %s45
      %p51 = scmp.ge.s32.totalorder %s50, 8
      %s52 = scalar_select %p51, 0, %s50
      %s53 = sadd.s32 1, %s44
      %s54 = scalar_select %p51, %s53, %s44
      %p55 = scmp.ge.s32.totalorder %s54, 1
      %s56 = scalar_select %p55, 0, %s54
      %s57 = ssub.s32 %s44, %s56
      %p58 = scmp.eq.s32.totalorder %s57, 0
      %s60 = sadd.s32 %s59, 1
      %s61 = scalar_select %p58, %s59, %s60
      %p64 = pneg %p58
      %p65 = scmp.eq.s32.totalorder %s37, 7
      %p66 = por %p64, %p65
      %p67 = scmp.ne.s32.totalorder %s59, %s62
      %p68 = scmp.eq.s32.totalorder %s37, 0
      %p69 = por %p67, %p68
      %p70 = scmp.ne.s32.totalorder %s59, %s62
      %p71 = scmp.eq.s32.totalorder %s42, 7
      %p72 = por %p70, %p71
      %p73 = scmp.ne.s32.totalorder %s62, %s63
      %p74 = scmp.eq.s32.totalorder %s42, 0
      %p75 = por %p73, %p74
      %p76 = scmp.ne.s32.totalorder %s62, %s63
      %p77 = scmp.eq.s32.totalorder %s43, 7
      %p78 = por %p76, %p77
      %p80 = scmp.ne.s32.totalorder %s63, %s79
      %p81 = scmp.eq.s32.totalorder %s43, 0
      %p82 = por %p80, %p81
      %s84 = sadd.s32 %s83, 1
      %p87 = scmp.eq.s32.totalorder %s37, 7
      %p88 = scmp.ne.s32.totalorder %s83, %s85
      %p89 = scmp.eq.s32.totalorder %s37, 0
      %p90 = por %p88, %p89
      %p91 = scmp.ne.s32.totalorder %s83, %s85
      %p92 = scmp.eq.s32.totalorder %s42, 7
      %p93 = por %p91, %p92
      %p94 = scmp.ne.s32.totalorder %s85, %s86
      %p95 = scmp.eq.s32.totalorder %s42, 0
      %p96 = por %p94, %p95
      %p97 = scmp.ne.s32.totalorder %s85, %s86
      %p98 = scmp.eq.s32.totalorder %s43, 7
      %p99 = por %p97, %p98
      %p101 = scmp.ne.s32.totalorder %s86, %s100
      %p102 = scmp.eq.s32.totalorder %s43, 0
      %p103 = por %p101, %p102
      %s105 = sadd.s32 %s104, 1
      %p108 = scmp.eq.s32.totalorder %s37, 7
      %p109 = scmp.ne.s32.totalorder %s104, %s106
      %p110 = scmp.eq.s32.totalorder %s37, 0
      %p111 = por %p109, %p110
      %p112 = scmp.ne.s32.totalorder %s104, %s106
      %p113 = scmp.eq.s32.totalorder %s42, 7
      %p114 = por %p112, %p113
      %p115 = scmp.ne.s32.totalorder %s106, %s107
      %p116 = scmp.eq.s32.totalorder %s42, 0
      %p117 = por %p115, %p116
      %p118 = scmp.ne.s32.totalorder %s106, %s107
      %p119 = scmp.eq.s32.totalorder %s43, 7
      %p120 = por %p118, %p119
      %p122 = scmp.ne.s32.totalorder %s107, %s121
      %p123 = scmp.eq.s32.totalorder %s43, 0
      %p124 = por %p122, %p123
      %s126 = sadd.s32 %s125, 1
      %p129 = scmp.eq.s32.totalorder %s37, 7
      %p130 = scmp.ne.s32.totalorder %s125, %s127
      %p131 = scmp.eq.s32.totalorder %s37, 0
      %p132 = por %p130, %p131
      %p133 = scmp.ne.s32.totalorder %s125, %s127
      %p134 = scmp.eq.s32.totalorder %s42, 7
      %p135 = por %p133, %p134
      %p136 = scmp.ne.s32.totalorder %s127, %s128
      %p137 = scmp.eq.s32.totalorder %s42, 0
      %p138 = por %p136, %p137
      %p139 = scmp.ne.s32.totalorder %s127, %s128
      %p140 = scmp.eq.s32.totalorder %s43, 7
      %p141 = por %p139, %p140
      %p143 = scmp.ne.s32.totalorder %s128, %s142
      %p144 = scmp.eq.s32.totalorder %s43, 0
      %p145 = por %p143, %p144
      %s147 = sadd.s32 %s146, 1
      %p150 = scmp.eq.s32.totalorder %s37, 7
      %p151 = scmp.ne.s32.totalorder %s146, %s148
      %p152 = scmp.eq.s32.totalorder %s37, 0
      %p153 = por %p151, %p152
      %p154 = scmp.ne.s32.totalorder %s146, %s148
      %p155 = scmp.eq.s32.totalorder %s42, 7
      %p156 = por %p154, %p155
      %p157 = scmp.ne.s32.totalorder %s148, %s149
      %p158 = scmp.eq.s32.totalorder %s42, 0
      %p159 = por %p157, %p158
      %p160 = scmp.ne.s32.totalorder %s148, %s149
      %p161 = scmp.eq.s32.totalorder %s43, 7
      %p162 = por %p160, %p161
      %p164 = scmp.ne.s32.totalorder %s149, %s163
      %p165 = scmp.eq.s32.totalorder %s43, 0
      %p166 = por %p164, %p165
      %s168 = sadd.s32 %s167, 1
      %p171 = scmp.eq.s32.totalorder %s37, 7
      %p172 = scmp.ne.s32.totalorder %s167, %s169
      %p173 = scmp.eq.s32.totalorder %s37, 0
      %p174 = por %p172, %p173
      %p175 = scmp.ne.s32.totalorder %s167, %s169
      %p176 = scmp.eq.s32.totalorder %s42, 7
      %p177 = por %p175, %p176
      %p178 = scmp.ne.s32.totalorder %s169, %s170
      %p179 = scmp.eq.s32.totalorder %s42, 0
      %p180 = por %p178, %p179
      %p181 = scmp.ne.s32.totalorder %s169, %s170
      %p182 = scmp.eq.s32.totalorder %s43, 7
      %p183 = por %p181, %p182
      %p185 = scmp.ne.s32.totalorder %s170, %s184
      %p186 = scmp.eq.s32.totalorder %s43, 0
      %p187 = por %p185, %p186
      %s189 = sadd.s32 %s188, 1
      %p192 = scmp.eq.s32.totalorder %s37, 7
      %p193 = scmp.ne.s32.totalorder %s188, %s190
      %p194 = scmp.eq.s32.totalorder %s37, 0
      %p195 = por %p193, %p194
      %p196 = scmp.ne.s32.totalorder %s188, %s190
      %p197 = scmp.eq.s32.totalorder %s42, 7
      %p198 = por %p196, %p197
      %p199 = scmp.ne.s32.totalorder %s190, %s191
      %p200 = scmp.eq.s32.totalorder %s42, 0
      %p201 = por %p199, %p200
      %p202 = scmp.ne.s32.totalorder %s190, %s191
      %p203 = scmp.eq.s32.totalorder %s43, 7
      %p204 = por %p202, %p203
      %p206 = scmp.ne.s32.totalorder %s191, %s205
      %p207 = scmp.eq.s32.totalorder %s43, 0
      %p208 = por %p206, %p207
      %s210 = sadd.s32 %s209, 1
      %p213 = scmp.eq.s32.totalorder %s37, 7
      %p214 = scmp.ne.s32.totalorder %s209, %s211
      %p215 = scmp.eq.s32.totalorder %s37, 0
      %p216 = por %p214, %p215
      %p217 = scmp.ne.s32.totalorder %s209, %s211
      %p218 = scmp.eq.s32.totalorder %s42, 7
      %p219 = por %p217, %p218
      %p220 = scmp.ne.s32.totalorder %s211, %s212
      %p221 = scmp.eq.s32.totalorder %s42, 0
      %p222 = por %p220, %p221
      %p223 = scmp.ne.s32.totalorder %s211, %s212
      %p224 = scmp.eq.s32.totalorder %s43, 7
      %p225 = por %p223, %p224
      %p227 = scmp.ne.s32.totalorder %s212, %s226
      %p228 = scmp.eq.s32.totalorder %s43, 0
      %p229 = por %p227, %p228
      %s231 = sadd.s32 %s230, 1
      %p234 = scmp.eq.s32.totalorder %s37, 7
      %p235 = scmp.ne.s32.totalorder %s230, %s232
      %p236 = scmp.eq.s32.totalorder %s37, 0
      %p237 = por %p235, %p236
      %p238 = scmp.ne.s32.totalorder %s230, %s232
      %p239 = scmp.eq.s32.totalorder %s42, 7
      %p240 = por %p238, %p239
      %p241 = scmp.ne.s32.totalorder %s232, %s233
      %p242 = scmp.eq.s32.totalorder %s42, 0
      %p243 = por %p241, %p242
      %p244 = scmp.ne.s32.totalorder %s232, %s233
      %p245 = scmp.eq.s32.totalorder %s43, 7
      %p246 = por %p244, %p245
      %p248 = scmp.ne.s32.totalorder %s233, %s247
      %p249 = scmp.eq.s32.totalorder %s43, 0
      %p250 = por %p248, %p249
      %s252 = sadd.s32 %s251, 1
      %p255 = scmp.eq.s32.totalorder %s37, 7
      %p256 = scmp.ne.s32.totalorder %s251, %s253
      %p257 = scmp.eq.s32.totalorder %s37, 0
      %p258 = por %p256, %p257
      %p259 = scmp.ne.s32.totalorder %s251, %s253
      %p260 = scmp.eq.s32.totalorder %s42, 7
      %p261 = por %p259, %p260
      %p262 = scmp.ne.s32.totalorder %s253, %s254
      %p263 = scmp.eq.s32.totalorder %s42, 0
      %p264 = por %p262, %p263
      %p265 = scmp.ne.s32.totalorder %s253, %s254
      %p266 = scmp.eq.s32.totalorder %s43, 7
      %p267 = por %p265, %p266
      %p269 = scmp.ne.s32.totalorder %s254, %s268
      %p270 = scmp.eq.s32.totalorder %s43, 0
      %p271 = por %p269, %p270
      %s273 = sadd.s32 %s272, 1
      %p276 = scmp.eq.s32.totalorder %s37, 7
      %p277 = scmp.ne.s32.totalorder %s272, %s274
      %p278 = scmp.eq.s32.totalorder %s37, 0
      %p279 = por %p277, %p278
      %p280 = scmp.ne.s32.totalorder %s272, %s274
      %p281 = scmp.eq.s32.totalorder %s42, 7
      %p282 = por %p280, %p281
      %p283 = scmp.ne.s32.totalorder %s274, %s275
      %p284 = scmp.eq.s32.totalorder %s42, 0
      %p285 = por %p283, %p284
      %p286 = scmp.ne.s32.totalorder %s274, %s275
      %p287 = scmp.eq.s32.totalorder %s43, 7
      %p288 = por %p286, %p287
      %p290 = scmp.ne.s32.totalorder %s275, %s289
      %p291 = scmp.eq.s32.totalorder %s43, 0
      %p292 = por %p290, %p291
      %s294 = sadd.s32 %s293, 1
      %p297 = scmp.eq.s32.totalorder %s37, 7
      %p298 = scmp.ne.s32.totalorder %s293, %s295
      %p299 = scmp.eq.s32.totalorder %s37, 0
      %p300 = por %p298, %p299
      %p301 = scmp.ne.s32.totalorder %s293, %s295
      %p302 = scmp.eq.s32.totalorder %s42, 7
      %p303 = por %p301, %p302
      %p304 = scmp.ne.s32.totalorder %s295, %s296
      %p305 = scmp.eq.s32.totalorder %s42, 0
      %p306 = por %p304, %p305
      %p307 = scmp.ne.s32.totalorder %s295, %s296
      %p308 = scmp.eq.s32.totalorder %s43, 7
      %p309 = por %p307, %p308
      %p311 = scmp.ne.s32.totalorder %s296, %s310
      %p312 = scmp.eq.s32.totalorder %s43, 0
      %p313 = por %p311, %p312
      %s315 = sadd.s32 %s314, 1
      %p318 = scmp.eq.s32.totalorder %s37, 7
      %p319 = scmp.ne.s32.totalorder %s314, %s316
      %p320 = scmp.eq.s32.totalorder %s37, 0
      %p321 = por %p319, %p320
      %p322 = scmp.ne.s32.totalorder %s314, %s316
      %p323 = scmp.eq.s32.totalorder %s42, 7
      %p324 = por %p322, %p323
      %p325 = scmp.ne.s32.totalorder %s316, %s317
      %p326 = scmp.eq.s32.totalorder %s42, 0
      %p327 = por %p325, %p326
      %p328 = scmp.ne.s32.totalorder %s316, %s317
      %p329 = scmp.eq.s32.totalorder %s43, 7
      %p330 = por %p328, %p329
      %p332 = scmp.ne.s32.totalorder %s317, %s331
      %p333 = scmp.eq.s32.totalorder %s43, 0
      %p334 = por %p332, %p333
      %s336 = sadd.s32 %s335, 1
      %p339 = scmp.eq.s32.totalorder %s37, 7
      %p340 = scmp.ne.s32.totalorder %s335, %s337
      %p341 = scmp.eq.s32.totalorder %s37, 0
      %p342 = por %p340, %p341
      %p343 = scmp.ne.s32.totalorder %s335, %s337
      %p344 = scmp.eq.s32.totalorder %s42, 7
      %p345 = por %p343, %p344
      %p346 = scmp.ne.s32.totalorder %s337, %s338
      %p347 = scmp.eq.s32.totalorder %s42, 0
      %p348 = por %p346, %p347
      %p349 = scmp.ne.s32.totalorder %s337, %s338
      %p350 = scmp.eq.s32.totalorder %s43, 7
      %p351 = por %p349, %p350
      %p353 = scmp.ne.s32.totalorder %s338, %s352
      %p354 = scmp.eq.s32.totalorder %s43, 0
      %p355 = por %p353, %p354
      %s357 = sadd.s32 %s356, 1
      %p360 = scmp.eq.s32.totalorder %s37, 7
      %p361 = scmp.ne.s32.totalorder %s356, %s358
      %p362 = scmp.eq.s32.totalorder %s37, 0
      %p363 = por %p361, %p362
      %p364 = scmp.ne.s32.totalorder %s356, %s358
      %p365 = scmp.eq.s32.totalorder %s42, 7
      %p366 = por %p364, %p365
      %p367 = scmp.ne.s32.totalorder %s358, %s359
      %p368 = scmp.eq.s32.totalorder %s42, 0
      %p369 = por %p367, %p368
      %p370 = scmp.ne.s32.totalorder %s358, %s359
      %p371 = scmp.eq.s32.totalorder %s43, 7
      %p372 = por %p370, %p371
      %p374 = scmp.ne.s32.totalorder %s359, %s373
      %p375 = scmp.eq.s32.totalorder %s43, 0
      %p376 = por %p374, %p375
      %s378 = sadd.s32 %s377, 1
      %p381 = scmp.eq.s32.totalorder %s37, 7
      %p382 = scmp.ne.s32.totalorder %s377, %s379
      %p383 = scmp.eq.s32.totalorder %s37, 0
      %p384 = por %p382, %p383
      %p385 = scmp.ne.s32.totalorder %s377, %s379
      %p386 = scmp.eq.s32.totalorder %s42, 7
      %p387 = por %p385, %p386
      %p388 = scmp.ne.s32.totalorder %s379, %s380
      %p389 = scmp.eq.s32.totalorder %s42, 0
      %p390 = por %p388, %p389
      %p391 = scmp.ne.s32.totalorder %s379, %s380
      %p392 = scmp.eq.s32.totalorder %s43, 7
      %p393 = por %p391, %p392
      %p395 = scmp.ne.s32.totalorder %s380, %s394
      %p396 = scmp.eq.s32.totalorder %s43, 0
      %p397 = por %p395, %p396
      %s399 = sadd.s32 %s398, 1
      %p402 = scmp.eq.s32.totalorder %s37, 7
      %p403 = scmp.ne.s32.totalorder %s398, %s400
      %p404 = scmp.eq.s32.totalorder %s37, 0
      %p405 = por %p403, %p404
      %p406 = scmp.ne.s32.totalorder %s398, %s400
      %p407 = scmp.eq.s32.totalorder %s42, 7
      %p408 = por %p406, %p407
      %p409 = scmp.ne.s32.totalorder %s400, %s401
      %p410 = scmp.eq.s32.totalorder %s42, 0
      %p411 = por %p409, %p410
      %p412 = scmp.ne.s32.totalorder %s400, %s401
      %p413 = scmp.eq.s32.totalorder %s43, 7
      %p414 = por %p412, %p413
      %p416 = scmp.ne.s32.totalorder %s401, %s415
      %p417 = scmp.eq.s32.totalorder %s43, 0
      %p418 = por %p416, %p417
      %s420 = sadd.s32 %s419, 1
      %p423 = scmp.eq.s32.totalorder %s37, 7
      %p424 = scmp.ne.s32.totalorder %s419, %s421
      %p425 = scmp.eq.s32.totalorder %s37, 0
      %p426 = por %p424, %p425
      %p427 = scmp.ne.s32.totalorder %s419, %s421
      %p428 = scmp.eq.s32.totalorder %s42, 7
      %p429 = por %p427, %p428
      %p430 = scmp.ne.s32.totalorder %s421, %s422
      %p431 = scmp.eq.s32.totalorder %s42, 0
      %p432 = por %p430, %p431
      %p433 = scmp.ne.s32.totalorder %s421, %s422
      %p434 = scmp.eq.s32.totalorder %s43, 7
      %p435 = por %p433, %p434
      %p437 = scmp.ne.s32.totalorder %s422, %s436
      %p438 = scmp.eq.s32.totalorder %s43, 0
      %p439 = por %p437, %p438
      %s441 = sadd.s32 %s440, 1
      %p444 = scmp.eq.s32.totalorder %s37, 7
      %p445 = scmp.ne.s32.totalorder %s440, %s442
      %p446 = scmp.eq.s32.totalorder %s37, 0
      %p447 = por %p445, %p446
      %p448 = scmp.ne.s32.totalorder %s440, %s442
      %p449 = scmp.eq.s32.totalorder %s42, 7
      %p450 = por %p448, %p449
      %p451 = scmp.ne.s32.totalorder %s442, %s443
      %p452 = scmp.eq.s32.totalorder %s42, 0
      %p453 = por %p451, %p452
      %p454 = scmp.ne.s32.totalorder %s442, %s443
      %p455 = scmp.eq.s32.totalorder %s43, 7
      %p456 = por %p454, %p455
      %p458 = scmp.ne.s32.totalorder %s443, %s457
      %p459 = scmp.eq.s32.totalorder %s43, 0
      %p460 = por %p458, %p459
      %s462 = sadd.s32 %s461, 1
      %p465 = scmp.eq.s32.totalorder %s37, 7
      %p466 = scmp.ne.s32.totalorder %s461, %s463
      %p467 = scmp.eq.s32.totalorder %s37, 0
      %p468 = por %p466, %p467
      %p469 = scmp.ne.s32.totalorder %s461, %s463
      %p470 = scmp.eq.s32.totalorder %s42, 7
      %p471 = por %p469, %p470
      %p472 = scmp.ne.s32.totalorder %s463, %s464
      %p473 = scmp.eq.s32.totalorder %s42, 0
      %p474 = por %p472, %p473
      %p475 = scmp.ne.s32.totalorder %s463, %s464
      %p476 = scmp.eq.s32.totalorder %s43, 7
      %p477 = por %p475, %p476
      %p479 = scmp.ne.s32.totalorder %s464, %s478
      %p480 = scmp.eq.s32.totalorder %s43, 0
      %p481 = por %p479, %p480
      %s483 = sadd.s32 %s482, 1
      %p486 = scmp.eq.s32.totalorder %s37, 7
      %p487 = scmp.ne.s32.totalorder %s482, %s484
      %p488 = scmp.eq.s32.totalorder %s37, 0
      %p489 = por %p487, %p488
      %p490 = scmp.ne.s32.totalorder %s482, %s484
      %p491 = scmp.eq.s32.totalorder %s42, 7
      %p492 = por %p490, %p491
      %p493 = scmp.ne.s32.totalorder %s484, %s485
      %p494 = scmp.eq.s32.totalorder %s42, 0
      %p495 = por %p493, %p494
      %p496 = scmp.ne.s32.totalorder %s484, %s485
      %p497 = scmp.eq.s32.totalorder %s43, 7
      %p498 = por %p496, %p497
      %p500 = scmp.ne.s32.totalorder %s485, %s499
      %p501 = scmp.eq.s32.totalorder %s43, 0
      %p502 = por %p500, %p501
      %s503 = ssub.s32 %s44, %s56
      %s504 = ssub.s32 %s45, %s52
      %s505 = sor.u32 %s503, %s504
      %p506 = scmp.eq.s32.totalorder %s505, 0
      %s508 = sadd.s32 %s507, 1
      %s509 = scalar_select %p506, %s507, %s508
      %p512 = pneg %p506
      %p513 = scmp.eq.s32.totalorder %s37, 7
      %p514 = por %p512, %p513
      %p515 = scmp.ne.s32.totalorder %s507, %s510
      %p516 = scmp.eq.s32.totalorder %s37, 0
      %p517 = por %p515, %p516
      %p518 = scmp.ne.s32.totalorder %s507, %s510
      %p519 = scmp.eq.s32.totalorder %s42, 7
      %p520 = por %p518, %p519
      %p521 = scmp.ne.s32.totalorder %s510, %s511
      %p522 = scmp.eq.s32.totalorder %s42, 0
      %p523 = por %p521, %p522
      %p524 = scmp.ne.s32.totalorder %s510, %s511
      %p525 = scmp.eq.s32.totalorder %s43, 7
      %p526 = por %p524, %p525
      %p528 = scmp.ne.s32.totalorder %s511, %s527
      %p529 = scmp.eq.s32.totalorder %s43, 0
      %p530 = por %p528, %p529
      %p531 = scmp.le.s32.totalorder 1, %s37
      %p532 = scmp.lt.s32.totalorder %s37, 9
      %p533 = pnand %p531, %p532
      %p534 = pneg %p533
      // Predicated region
      $region9: #{tpu_custom_call.1} parent=5 // pred_check
        _
      $region10: #{tpu_custom_call.1} parent=5 // pred_check_branch
        %536 = sbr.rel (%p533) target = $region12
      $region11: #{tpu_custom_call.1} parent=5 // pred_region
        %s537 = ssub.s32 %s37, 1
        // Predicated region
        $region13: #{tpu_custom_call.1} parent=11 // pred_check
          %p538 = pneg %p75
        $region14: #{tpu_custom_call.1} parent=11 // pred_check_branch
          %540 = sbr.rel (%p538) target = $region16
        $region15: #{tpu_custom_call.1} parent=11 // pred_region
          %s541 = smul.u32 2, %s46
          %p542 = scmp.lt.s32.totalorder %s541, 1
          %s543 = scalar_select %p542, %s541, 1
          %s544 = smul.addr %s543, 4
          %s545 = scalar_lea.vmem %s0, %s544
          %s546 = smul.u32 2, %s46
        $region16: #{tpu_custom_call.1} parent=11 // pred_fallthru
          _
        // Predicated region
        $region17: #{tpu_custom_call.1} parent=11 // pred_check
          %p547 = pneg %p96
        $region18: #{tpu_custom_call.1} parent=11 // pred_check_branch
          %549 = sbr.rel (%p547) target = $region20
        $region19: #{tpu_custom_call.1} parent=11 // pred_region
          %551 = vsyncadd [#allocation11], 0
          %s552 = sshll.u32 %s1, 4
          %s553 = int_to_ptr.hbm [resolvable:$true] %s552
          %s554 = sshll.u32 [#allocation10], 4
          %s555 = int_to_ptr.vmem [resolvable:$true] %s554
          %560 = dma.hbm_to_vmem [thread:$0]  %s553, 128, %s555, [#allocation11], 64, 64, 4
        $region20: #{tpu_custom_call.1} parent=11 // pred_fallthru
          _
        // Predicated region
        $region21: #{tpu_custom_call.1} parent=11 // pred_check
          %p561 = pneg %p117
        $region22: #{tpu_custom_call.1} parent=11 // pred_check_branch
          %563 = sbr.rel (%p561) target = $region24
        $region23: #{tpu_custom_call.1} parent=11 // pred_region
          %565 = vsyncadd [#allocation14], 0
          %s566 = sshll.u32 %s2, 4
          %s567 = int_to_ptr.hbm [resolvable:$true] %s566
          %s568 = sshll.u32 [#allocation13], 4
          %s569 = int_to_ptr.vmem [resolvable:$true] %s568
          %574 = dma.hbm_to_vmem [thread:$0]  %s567, 128, %s569, [#allocation14], 64, 64, 4
        $region24: #{tpu_custom_call.1} parent=11 // pred_fallthru
          _
        // Predicated region
        $region25: #{tpu_custom_call.1} parent=11 // pred_check
          %p575 = pneg %p138
        $region26: #{tpu_custom_call.1} parent=11 // pred_check_branch
          %577 = sbr.rel (%p575) target = $region28
        $region27: #{tpu_custom_call.1} parent=11 // pred_region
          %579 = vsyncadd [#allocation14], 0
          %s580 = sshll.u32 %s3, 4
          %s581 = int_to_ptr.hbm [resolvable:$true] %s580
          %s582 = sshll.u32 [#allocation15], 4
          %s583 = int_to_ptr.vmem [resolvable:$true] %s582
          %588 = dma.hbm_to_vmem [thread:$0]  %s581, 128, %s583, [#allocation14], 64, 64, 4
        $region28: #{tpu_custom_call.1} parent=11 // pred_fallthru
          _
        // Predicated region
        $region29: #{tpu_custom_call.1} parent=11 // pred_check
          %p589 = pneg %p159
        $region30: #{tpu_custom_call.1} parent=11 // pred_check_branch
          %591 = sbr.rel (%p589) target = $region32
        $region31: #{tpu_custom_call.1} parent=11 // pred_region
          _
        $region32: #{tpu_custom_call.1} parent=11 // pred_fallthru
          _
        // Predicated region
        $region33: #{tpu_custom_call.1} parent=11 // pred_check
          %p592 = pneg %p180
        $region34: #{tpu_custom_call.1} parent=11 // pred_check_branch
          %594 = sbr.rel (%p592) target = $region36
        $region35: #{tpu_custom_call.1} parent=11 // pred_region
          %596 = vsyncadd [#allocation17], 0
          %s598 = sshll.u32 %s5, 4
          %s599 = int_to_ptr.hbm [resolvable:$true] %s598
          %s600 = sshll.u32 [#allocation16], 4
          %s601 = int_to_ptr.vmem [resolvable:$true] %s600
          %603 = dma.hbm_to_vmem [thread:$0]  %s599, 16, %s601, [#allocation17]
        $region36: #{tpu_custom_call.1} parent=11 // pred_fallthru
          _
        // Predicated region
        $region37: #{tpu_custom_call.1} parent=11 // pred_check
          %p604 = pneg %p201
        $region38: #{tpu_custom_call.1} parent=11 // pred_check_branch
          %606 = sbr.rel (%p604) target = $region40
        $region39: #{tpu_custom_call.1} parent=11 // pred_region
          _
        $region40: #{tpu_custom_call.1} parent=11 // pred_fallthru
          _
        // Predicated region
        $region41: #{tpu_custom_call.1} parent=11 // pred_check
          %p607 = pneg %p222
        $region42: #{tpu_custom_call.1} parent=11 // pred_check_branch
          %609 = sbr.rel (%p607) target = $region44
        $region43: #{tpu_custom_call.1} parent=11 // pred_region
          %611 = vsyncadd [#allocation17], 0
          %s612 = sshll.u32 %s7, 4
          %s613 = int_to_ptr.hbm [resolvable:$true] %s612
          %s614 = sshll.u32 [#allocation18], 4
          %s615 = int_to_ptr.vmem [resolvable:$true] %s614
          %620 = dma.hbm_to_vmem [thread:$0]  %s613, 256, %s615, [#allocation17], 64, 64, 4
        $region44: #{tpu_custom_call.1} parent=11 // pred_fallthru
          _
        // Predicated region
        $region45: #{tpu_custom_call.1} parent=11 // pred_check
          %p621 = pneg %p243
        $region46: #{tpu_custom_call.1} parent=11 // pred_check_branch
          %623 = sbr.rel (%p621) target = $region48
        $region47: #{tpu_custom_call.1} parent=11 // pred_region
          %625 = vsyncadd [#allocation20], 0
          %s627 = sshll.u32 %s8, 4
          %s628 = int_to_ptr.hbm [resolvable:$true] %s627
          %s629 = sshll.u32 [#allocation19], 4
          %s630 = int_to_ptr.vmem [resolvable:$true] %s629
          %632 = dma.hbm_to_vmem [thread:$0]  %s628, 16, %s630, [#allocation20]
        $region48: #{tpu_custom_call.1} parent=11 // pred_fallthru
          _
        // Predicated region
        $region49: #{tpu_custom_call.1} parent=11 // pred_check
          %p633 = pneg %p264
        $region50: #{tpu_custom_call.1} parent=11 // pred_check_branch
          %635 = sbr.rel (%p633) target = $region52
        $region51: #{tpu_custom_call.1} parent=11 // pred_region
          _
        $region52: #{tpu_custom_call.1} parent=11 // pred_fallthru
          _
        // Predicated region
        $region53: #{tpu_custom_call.1} parent=11 // pred_check
          %p636 = pneg %p285
        $region54: #{tpu_custom_call.1} parent=11 // pred_check_branch
          %638 = sbr.rel (%p636) target = $region56
        $region55: #{tpu_custom_call.1} parent=11 // pred_region
          %640 = vsyncadd [#allocation20], 0
          %s642 = sshll.u32 %s10, 4
          %s643 = int_to_ptr.hbm [resolvable:$true] %s642
          %s644 = sshll.u32 [#allocation21], 4
          %s645 = int_to_ptr.vmem [resolvable:$true] %s644
          %647 = dma.hbm_to_vmem [thread:$0]  %s643, 16, %s645, [#allocation20]
        $region56: #{tpu_custom_call.1} parent=11 // pred_fallthru
          _
        // Predicated region
        $region57: #{tpu_custom_call.1} parent=11 // pred_check
          %p648 = pneg %p306
        $region58: #{tpu_custom_call.1} parent=11 // pred_check_branch
          %650 = sbr.rel (%p648) target = $region60
        $region59: #{tpu_custom_call.1} parent=11 // pred_region
          %652 = vsyncadd [#allocation23], 0
          %s653 = sshll.u32 %s11, 4
          %s654 = int_to_ptr.hbm [resolvable:$true] %s653
          %s655 = sshll.u32 [#allocation22], 4
          %s656 = int_to_ptr.vmem [resolvable:$true] %s655
          %661 = dma.hbm_to_vmem [thread:$0]  %s654, 128, %s656, [#allocation23], 64, 64, 4
        $region60: #{tpu_custom_call.1} parent=11 // pred_fallthru
          _
        // Predicated region
        $region61: #{tpu_custom_call.1} parent=11 // pred_check
          %p662 = pneg %p327
        $region62: #{tpu_custom_call.1} parent=11 // pred_check_branch
          %664 = sbr.rel (%p662) target = $region64
        $region63: #{tpu_custom_call.1} parent=11 // pred_region
          %666 = vsyncadd [#allocation23], 0
          %s668 = sshll.u32 %s12, 4
          %s669 = int_to_ptr.hbm [resolvable:$true] %s668
          %s670 = sshll.u32 [#allocation24], 4
          %s671 = int_to_ptr.vmem [resolvable:$true] %s670
          %673 = dma.hbm_to_vmem [thread:$0]  %s669, 16, %s671, [#allocation23]
        $region64: #{tpu_custom_call.1} parent=11 // pred_fallthru
          _
        // Predicated region
        $region65: #{tpu_custom_call.1} parent=11 // pred_check
          %p674 = pneg %p348
        $region66: #{tpu_custom_call.1} parent=11 // pred_check_branch
          %676 = sbr.rel (%p674) target = $region68
        $region67: #{tpu_custom_call.1} parent=11 // pred_region
          %678 = vsyncadd [#allocation26], 0
          %s679 = sshll.u32 %s13, 4
          %s680 = int_to_ptr.hbm [resolvable:$true] %s679
          %s681 = sshll.u32 [#allocation25], 4
          %s682 = int_to_ptr.vmem [resolvable:$true] %s681
          %687 = dma.hbm_to_vmem [thread:$0]  %s680, 128, %s682, [#allocation26], 64, 64, 4
        $region68: #{tpu_custom_call.1} parent=11 // pred_fallthru
          _
        // Predicated region
        $region69: #{tpu_custom_call.1} parent=11 // pred_check
          %p688 = pneg %p369
        $region70: #{tpu_custom_call.1} parent=11 // pred_check_branch
          %690 = sbr.rel (%p688) target = $region72
        $region71: #{tpu_custom_call.1} parent=11 // pred_region
          %692 = vsyncadd [#allocation26], 0
          %s694 = sshll.u32 %s14, 4
          %s695 = int_to_ptr.hbm [resolvable:$true] %s694
          %s696 = sshll.u32 [#allocation27], 4
          %s697 = int_to_ptr.vmem [resolvable:$true] %s696
          %699 = dma.hbm_to_vmem [thread:$0]  %s695, 16, %s697, [#allocation26]
        $region72: #{tpu_custom_call.1} parent=11 // pred_fallthru
          _
        // Predicated region
        $region73: #{tpu_custom_call.1} parent=11 // pred_check
          %p700 = pneg %p390
        $region74: #{tpu_custom_call.1} parent=11 // pred_check_branch
          %702 = sbr.rel (%p700) target = $region76
        $region75: #{tpu_custom_call.1} parent=11 // pred_region
          _
        $region76: #{tpu_custom_call.1} parent=11 // pred_fallthru
          _
        // Predicated region
        $region77: #{tpu_custom_call.1} parent=11 // pred_check
          %p703 = pneg %p411
        $region78: #{tpu_custom_call.1} parent=11 // pred_check_branch
          %705 = sbr.rel (%p703) target = $region80
        $region79: #{tpu_custom_call.1} parent=11 // pred_region
          %707 = vsyncadd [#allocation29], 0
          %s709 = sshll.u32 %s16, 4
          %s710 = int_to_ptr.hbm [resolvable:$true] %s709
          %s711 = sshll.u32 [#allocation28], 4
          %s712 = int_to_ptr.vmem [resolvable:$true] %s711
          %714 = dma.hbm_to_vmem [thread:$0]  %s710, 16, %s712, [#allocation29]
        $region80: #{tpu_custom_call.1} parent=11 // pred_fallthru
          _
        // Predicated region
        $region81: #{tpu_custom_call.1} parent=11 // pred_check
          %p715 = pneg %p432
        $region82: #{tpu_custom_call.1} parent=11 // pred_check_branch
          %717 = sbr.rel (%p715) target = $region84
        $region83: #{tpu_custom_call.1} parent=11 // pred_region
          %719 = vsyncadd [#allocation29], 0
          %s721 = sshll.u32 %s17, 4
          %s722 = int_to_ptr.hbm [resolvable:$true] %s721
          %s723 = sshll.u32 [#allocation30], 4
          %s724 = int_to_ptr.vmem [resolvable:$true] %s723
          %726 = dma.hbm_to_vmem [thread:$0]  %s722, 16, %s724, [#allocation29]
        $region84: #{tpu_custom_call.1} parent=11 // pred_fallthru
          _
        // Predicated region
        $region85: #{tpu_custom_call.1} parent=11 // pred_check
          %p727 = pneg %p453
        $region86: #{tpu_custom_call.1} parent=11 // pred_check_branch
          %729 = sbr.rel (%p727) target = $region88
        $region87: #{tpu_custom_call.1} parent=11 // pred_region
          _
        $region88: #{tpu_custom_call.1} parent=11 // pred_fallthru
          _
        // Predicated region
        $region89: #{tpu_custom_call.1} parent=11 // pred_check
          %p730 = pneg %p474
        $region90: #{tpu_custom_call.1} parent=11 // pred_check_branch
          %732 = sbr.rel (%p730) target = $region92
        $region91: #{tpu_custom_call.1} parent=11 // pred_region
          _
        $region92: #{tpu_custom_call.1} parent=11 // pred_fallthru
          _
        // Predicated region
        $region93: #{tpu_custom_call.1} parent=11 // pred_check
          %p733 = pneg %p495
        $region94: #{tpu_custom_call.1} parent=11 // pred_check_branch
          %735 = sbr.rel (%p733) target = $region96
        $region95: #{tpu_custom_call.1} parent=11 // pred_region
          _
        $region96: #{tpu_custom_call.1} parent=11 // pred_fallthru
          _
      $region12: #{tpu_custom_call.1} parent=5 // pred_fallthru
        _
      %p736 = scmp.lt.s32.totalorder %s37, 8
      // Predicated region
      $region97: #{tpu_custom_call.1} parent=5 // pred_check
        %p737 = pneg %p736
      $region98: #{tpu_custom_call.1} parent=5 // pred_check_branch
        %739 = sbr.rel (%p737) target = $region100
      $region99: #{tpu_custom_call.1} parent=5 // pred_region
        _
      $region100: #{tpu_custom_call.1} parent=5 // pred_fallthru
        _
      %p740 = scmp.le.s32.totalorder 1, %s37
      %p741 = scmp.lt.s32.totalorder %s37, 9
      %p742 = pnand %p740, %p741
      %p743 = pneg %p742
      // Predicated region
      $region101: #{tpu_custom_call.1} parent=5 // pred_check
        _
      $region102: #{tpu_custom_call.1} parent=5 // pred_check_branch
        %745 = sbr.rel (%p742) target = $region104
      $region103: #{tpu_custom_call.1} parent=5 // pred_region
        %s746 = ssub.s32 %s37, 1
        // Predicated region
        $region105: #{tpu_custom_call.1} parent=103 // pred_check
          %p747 = pneg %p96
        $region106: #{tpu_custom_call.1} parent=103 // pred_check_branch
          %749 = sbr.rel (%p747) target = $region108
        $region107: #{tpu_custom_call.1} parent=103 // pred_region
          %751 = dma.done [#allocation11], 128
        $region108: #{tpu_custom_call.1} parent=103 // pred_fallthru
          _
        // Predicated region
        $region109: #{tpu_custom_call.1} parent=103 // pred_check
          %p752 = pneg %p117
        $region110: #{tpu_custom_call.1} parent=103 // pred_check_branch
          %754 = sbr.rel (%p752) target = $region112
        $region111: #{tpu_custom_call.1} parent=103 // pred_region
          %756 = dma.done [#allocation14], 128
        $region112: #{tpu_custom_call.1} parent=103 // pred_fallthru
          _
        // Predicated region
        $region113: #{tpu_custom_call.1} parent=103 // pred_check
          %p757 = pneg %p138
        $region114: #{tpu_custom_call.1} parent=103 // pred_check_branch
          %759 = sbr.rel (%p757) target = $region116
        $region115: #{tpu_custom_call.1} parent=103 // pred_region
          %761 = dma.done [#allocation14], 128
        $region116: #{tpu_custom_call.1} parent=103 // pred_fallthru
          _
        // Predicated region
        $region117: #{tpu_custom_call.1} parent=103 // pred_check
          %p762 = pneg %p180
        $region118: #{tpu_custom_call.1} parent=103 // pred_check_branch
          %764 = sbr.rel (%p762) target = $region120
        $region119: #{tpu_custom_call.1} parent=103 // pred_region
          %766 = dma.done [#allocation17], 16
        $region120: #{tpu_custom_call.1} parent=103 // pred_fallthru
          _
        // Predicated region
        $region121: #{tpu_custom_call.1} parent=103 // pred_check
          %p767 = pneg %p222
        $region122: #{tpu_custom_call.1} parent=103 // pred_check_branch
          %769 = sbr.rel (%p767) target = $region124
        $region123: #{tpu_custom_call.1} parent=103 // pred_region
          %771 = dma.done [#allocation17], 256
        $region124: #{tpu_custom_call.1} parent=103 // pred_fallthru
          _
        // Predicated region
        $region125: #{tpu_custom_call.1} parent=103 // pred_check
          %p772 = pneg %p243
        $region126: #{tpu_custom_call.1} parent=103 // pred_check_branch
          %774 = sbr.rel (%p772) target = $region128
        $region127: #{tpu_custom_call.1} parent=103 // pred_region
          %776 = dma.done [#allocation20], 16
        $region128: #{tpu_custom_call.1} parent=103 // pred_fallthru
          _
        // Predicated region
        $region129: #{tpu_custom_call.1} parent=103 // pred_check
          %p777 = pneg %p285
        $region130: #{tpu_custom_call.1} parent=103 // pred_check_branch
          %779 = sbr.rel (%p777) target = $region132
        $region131: #{tpu_custom_call.1} parent=103 // pred_region
          %781 = dma.done [#allocation20], 16
        $region132: #{tpu_custom_call.1} parent=103 // pred_fallthru
          _
        // Predicated region
        $region133: #{tpu_custom_call.1} parent=103 // pred_check
          %p782 = pneg %p306
        $region134: #{tpu_custom_call.1} parent=103 // pred_check_branch
          %784 = sbr.rel (%p782) target = $region136
        $region135: #{tpu_custom_call.1} parent=103 // pred_region
          %786 = dma.done [#allocation23], 128
        $region136: #{tpu_custom_call.1} parent=103 // pred_fallthru
          _
        // Predicated region
        $region137: #{tpu_custom_call.1} parent=103 // pred_check
          %p787 = pneg %p327
        $region138: #{tpu_custom_call.1} parent=103 // pred_check_branch
          %789 = sbr.rel (%p787) target = $region140
        $region139: #{tpu_custom_call.1} parent=103 // pred_region
          %791 = dma.done [#allocation23], 16
        $region140: #{tpu_custom_call.1} parent=103 // pred_fallthru
          _
        // Predicated region
        $region141: #{tpu_custom_call.1} parent=103 // pred_check
          %p792 = pneg %p348
        $region142: #{tpu_custom_call.1} parent=103 // pred_check_branch
          %794 = sbr.rel (%p792) target = $region144
        $region143: #{tpu_custom_call.1} parent=103 // pred_region
          %796 = dma.done [#allocation26], 128
        $region144: #{tpu_custom_call.1} parent=103 // pred_fallthru
          _
        // Predicated region
        $region145: #{tpu_custom_call.1} parent=103 // pred_check
          %p797 = pneg %p369
        $region146: #{tpu_custom_call.1} parent=103 // pred_check_branch
          %799 = sbr.rel (%p797) target = $region148
        $region147: #{tpu_custom_call.1} parent=103 // pred_region
          %801 = dma.done [#allocation26], 16
        $region148: #{tpu_custom_call.1} parent=103 // pred_fallthru
          _
        // Predicated region
        $region149: #{tpu_custom_call.1} parent=103 // pred_check
          %p802 = pneg %p411
        $region150: #{tpu_custom_call.1} parent=103 // pred_check_branch
          %804 = sbr.rel (%p802) target = $region152
        $region151: #{tpu_custom_call.1} parent=103 // pred_region
          %806 = dma.done [#allocation29], 16
        $region152: #{tpu_custom_call.1} parent=103 // pred_fallthru
          _
        // Predicated region
        $region153: #{tpu_custom_call.1} parent=103 // pred_check
          %p807 = pneg %p432
        $region154: #{tpu_custom_call.1} parent=103 // pred_check_branch
          %809 = sbr.rel (%p807) target = $region156
        $region155: #{tpu_custom_call.1} parent=103 // pred_region
          %811 = dma.done [#allocation29], 16
        $region156: #{tpu_custom_call.1} parent=103 // pred_fallthru
          _
        %s812 = smul.u32 2, %s46
        %p813 = scmp.lt.s32.totalorder %s812, 1
        %s814 = scalar_select %p813, %s812, 1
        %s815 = smul.addr %s814, 4
        %s816 = scalar_lea.vmem %s0, %s815
        %p817 = pneg %p75
        %p818 = pneg %p72
        %p819 = pneg %p96
        %p820 = pneg %p93
        %p821 = pneg %p117
        %p822 = pneg %p114
        %p823 = pneg %p138
        %p824 = pneg %p135
        %p825 = pneg %p159
        %p826 = pneg %p156
        %p827 = pneg %p180
        %p828 = pneg %p177
        %p829 = pneg %p201
        %p830 = pneg %p198
        %p831 = pneg %p222
        %p832 = pneg %p219
        %p833 = pneg %p243
        %p834 = pneg %p240
        %p835 = pneg %p264
        %p836 = pneg %p261
        %p837 = pneg %p285
        %p838 = pneg %p282
        %p839 = pneg %p306
        %p840 = pneg %p303
        %p841 = pneg %p327
        %p842 = pneg %p324
        %p843 = pneg %p348
        %p844 = pneg %p345
        %p845 = pneg %p369
        %p846 = pneg %p366
        %p847 = pneg %p390
        %p848 = pneg %p387
        %p849 = pneg %p411
        %p850 = pneg %p408
        %p851 = pneg %p432
        %p852 = pneg %p429
        %p853 = pneg %p453
        %p854 = pneg %p450
        %p855 = pneg %p474
        %p856 = pneg %p471
        %p857 = pneg %p495
        %p858 = pneg %p492
        %p859 = pneg %p523
        %p860 = pneg %p520
        %s861 = sand.u32 %s510, 1
        %s862 = scalar_lea.sflag [#allocation12], %s861
        %s863 = sand.u32 %s510, 1
        %s864 = scalar_lea.vmem [#allocation31], %s863
        %s865 = smul.u32 2, %s46
        %p866 = scmp.lt.s32.totalorder %s865, 1
        %s867 = scalar_select %p866, %s865, 1
        %s868 = smul.addr %s867, 4
        %s869 = scalar_lea.vmem %s0, %s868
        %s870 = smul.u32 2, %s46
        %p872 = scmp.eq.s32.totalorder %s47, 0
        // Predicated region
        $region157: #{tpu_custom_call.1} parent=103 // pred_check
          %p873 = pneg %p872
        $region158: #{tpu_custom_call.1} parent=103 // pred_check_branch
          %875 = sbr.rel (%p873) target = $region160
        $region159: #{tpu_custom_call.1} parent=103 // pred_region
          %v876 = vld [vmem:[%s869] sm:$0xf]
          %v877 = vld [vmem:[%s869 + $0x4] sm:$0xf]
          %v878 = vld [vmem:[#allocation22] sm:$0xf]
          %v879 = vld [vmem:[#allocation22 + $0x4] sm:$0xf]
          %v880 = vld [vmem:[#allocation24] sm:$0x1]
          %v882 = vperm.slane %v880, 0
          %v886 = vunpack.c.l.b16 %v876
          %v887 = vunpack.c.l.b16 %v877
          %v888 = vpack.c.b16 %v887, %v886
          %v891 = vunpack.c.l.b16 %v878
          %v892 = vunpack.c.l.b16 %v879
          %v893 = vpack.c.b16 %v892, %v891
          %vm895 = vcmask 130048
          %v897 = vsel %vm895, %v888, 0
          %899 = vmatpush.bf16.msra.mxu0 0
          %900 = vmatpush.bf16.msra.mxu0 0
          %901 = vmatpush.bf16.msra.mxu0 0
          %902 = vmatpush.bf16.msra.mxu0 0
          %903 = vmatpush.bf16.msra.mxu0 0
          %904 = vmatpush.bf16.msra.mxu0 0
          %905 = vmatpush.bf16.msra.mxu0 0
          %906 = vmatpush.bf16.msra.mxu0 %v893
          %907 = vmatmul.bf16.gmra.mxu0 %v897
          %v908 = vpop.f32.mrf.mxu0
          %v909 = vadd.f32 %v882, %v908
          %v910 = vpop.f32.mrf.mxu0
          %v911 = vadd.f32 %v882, %v910
          %912 = vdwg.mxu0
          %913 = vst.msk [vmem:[#allocation2] sm:$0xff] %vm895, %v909
          %914 = vst.msk [vmem:[#allocation2 + $0x8] sm:$0xff] %vm895, %v911
          %v915 = vld [vmem:[#allocation25] sm:$0xf]
          %v916 = vld [vmem:[#allocation25 + $0x4] sm:$0xf]
          %v917 = vld [vmem:[#allocation27] sm:$0x1]
          %v919 = vperm.slane %v917, 0
          %v923 = vunpack.c.l.b16 %v915
          %v924 = vunpack.c.l.b16 %v916
          %v925 = vpack.c.b16 %v924, %v923
          %927 = vmatpush.bf16.msra.mxu0 0
          %928 = vmatpush.bf16.msra.mxu0 0
          %929 = vmatpush.bf16.msra.mxu0 0
          %930 = vmatpush.bf16.msra.mxu0 0
          %931 = vmatpush.bf16.msra.mxu0 0
          %932 = vmatpush.bf16.msra.mxu0 0
          %933 = vmatpush.bf16.msra.mxu0 0
          %934 = vmatpush.bf16.msra.mxu0 %v925
          %935 = vmatmul.bf16.gmra.mxu0 %v897
          %v936 = vpop.f32.mrf.mxu0
          %v937 = vadd.f32 %v919, %v936
          %v938 = vpop.f32.mrf.mxu0
          %v939 = vadd.f32 %v919, %v938
          %940 = vdwg.mxu0
          %941 = vst.msk [vmem:[#allocation3] sm:$0xff] %vm895, %v937
          %942 = vst.msk [vmem:[#allocation3 + $0x8] sm:$0xff] %vm895, %v939
          %vm943 = vcmask 254976
          %944 = vst.msk [vmem:[#allocation4] sm:$0x3] %vm943, 0.0
          %945 = vst.msk [vmem:[#allocation5] sm:$0x3] %vm943, 0.0
          %946 = vst.msk [vmem:[#allocation6] sm:$0x3] %vm943, 0.0
          %947 = vst.msk [vmem:[#allocation7] sm:$0x3] %vm943, 0.0
          %vm948 = vcmask 123904
          %949 = vst.msk [vmem:[#allocation8] sm:$0x3] %vm948, 0.0
          %vm950 = vcmask 1024
          %951 = vst.msk [vmem:[#allocation9] sm:$0x3] %vm950, 0
        $region160: #{tpu_custom_call.1} parent=103 // pred_fallthru
          _
        %v952 = vlaneseq
        %v953 = vand.u32 %v952, 127
        %v954 = vld [vmem:[#allocation9] sm:$0x3]
        %955 = vset.pattern.permute.xlu0 0
        %956 = vperm.xlu0 %955, %v954
        %v957 = vpop.permute.xlu0 %956
        %vm958 = vcmp.eq.s32.totalorder %v953, %v957
        %v959 = vsel %vm958, 1, 0
        %v960 = vcvt.s32.f32 %v959
        %v961 = vpack.c.bf16 %v960, %v960
        %v962 = vld [vmem:[#allocation10] sm:$0xf]
        %v963 = vld [vmem:[#allocation10 + $0x4] sm:$0x1]
        %v966 = vunpack.c.l.b16 %v962
        %v967 = vunpack.c.l.b16 %v963
        %v968 = vpack.c.b16 %v967, %v966
        %vm969 = vcmask 80896
        %v971 = vsel %vm969, %v961, 0
        %vm973 = vcmask 1044480
        %v975 = vsel %vm973, %v968, 0
        %977 = vmatpush.bf16.msra.mxu0 0
        %978 = vmatpush.bf16.msra.mxu0 0
        %979 = vmatpush.bf16.msra.mxu0 0
        %980 = vmatpush.bf16.msra.mxu0 0
        %981 = vmatpush.bf16.msra.mxu0 0
        %982 = vmatpush.bf16.msra.mxu0 0
        %983 = vmatpush.bf16.msra.mxu0 0
        %984 = vmatpush.bf16.msra.mxu0 %v975
        %985 = vmatmul.bf16.gmra.mxu0 %v971
        %v986 = vpop.f32.mrf.mxu0
        %v987 = vadd.f32 0.0, %v986
        %v988 = vpop.f32.mrf.mxu0
        %989 = vdwg.mxu0
        %v990 = vld [vmem:[#allocation8] sm:$0x3]
        %v991 = vpack.c.bf16 %v987, %v987
        %v992 = vld [vmem:[#allocation13] sm:$0xf]
        %v993 = vld [vmem:[#allocation13 + $0x4] sm:$0xf]
        %v994 = vpack.c.bf16 %v990, %v990
        %v995 = vld [vmem:[#allocation15] sm:$0xf]
        %v996 = vld [vmem:[#allocation15 + $0x4] sm:$0xf]
        %v999 = vunpack.c.l.b16 %v995
        %v1000 = vunpack.c.l.b16 %v996
        %v1001 = vpack.c.b16 %v1000, %v999
        %vm1003 = vcmask 130048
        %v1005 = vsel %vm1003, %v994, 0
        %1007 = vmatpush.bf16.msra.mxu0 0
        %1008 = vmatpush.bf16.msra.mxu0 0
        %1009 = vmatpush.bf16.msra.mxu0 0
        %1010 = vmatpush.bf16.msra.mxu0 0
        %1011 = vmatpush.bf16.msra.mxu0 0
        %1012 = vmatpush.bf16.msra.mxu0 0
        %1013 = vmatpush.bf16.msra.mxu0 0
        %1014 = vmatpush.bf16.msra.mxu0 %v1001
        %1015 = vmatmul.bf16.gmra.mxu0 %v1005
        %v1016 = vpop.f32.mrf.mxu0
        %v1017 = vadd.f32 0.0, %v1016
        %v1018 = vpop.f32.mrf.mxu0
        %1019 = vdwg.mxu0
        %v1022 = vunpack.c.l.b16 %v992
        %v1023 = vunpack.c.l.b16 %v993
        %v1024 = vpack.c.b16 %v1023, %v1022
        %v1027 = vsel %vm1003, %v991, 0
        %1029 = vmatpush.bf16.msra.mxu0 0
        %1030 = vmatpush.bf16.msra.mxu0 0
        %1031 = vmatpush.bf16.msra.mxu0 0
        %1032 = vmatpush.bf16.msra.mxu0 0
        %1033 = vmatpush.bf16.msra.mxu0 0
        %1034 = vmatpush.bf16.msra.mxu0 0
        %1035 = vmatpush.bf16.msra.mxu0 0
        %1036 = vmatpush.bf16.msra.mxu0 %v1024
        %1037 = vmatmul.bf16.gmra.mxu0 %v1027
        %v1038 = vpop.f32.mrf.mxu0
        %v1039 = vadd.f32 %v1017, %v1038
        %v1040 = vpop.f32.mrf.mxu0
        %1041 = vdwg.mxu0
        %v1042 = vld [vmem:[#allocation4] sm:$0x3]
        %v1043 = vld [vmem:[#allocation5] sm:$0x3]
        %v1044 = vld [vmem:[%s4] sm:$0xf]
        %v1045 = vld [vmem:[%s4 + $0x4] sm:$0xf]
        %v1046 = vld [vmem:[%s4 + $0x8] sm:$0xf]
        %v1047 = vld [vmem:[%s4 + $0xc] sm:$0xf]
        %v1048 = vld [vmem:[#allocation16] sm:$0x1]
        %v1049 = vpack.c.bf16 %v1042, %v1042
        %v1054 = vunpack.c.l.b16 %v1044
        %v1055 = vunpack.c.l.b16 %v1045
        %v1056 = vunpack.c.l.b16 %v1046
        %v1057 = vunpack.c.l.b16 %v1047
        %v1058 = vpack.c.b16 %v1055, %v1054
        %v1059 = vpack.c.b16 %v1057, %v1056
        %vm1062 = vcmask 261120
        %v1064 = vsel %vm1062, %v1049, 0
        %1066 = vmatpush.bf16.msra.mxu0 0
        %1067 = vmatpush.bf16.msra.mxu0 0
        %1068 = vmatpush.bf16.msra.mxu0 0
        %1069 = vmatpush.bf16.msra.mxu0 0
        %1070 = vmatpush.bf16.msra.mxu0 0
        %1071 = vmatpush.bf16.msra.mxu0 0
        %1072 = vmatpush.bf16.msra.mxu0 %v1059
        %1073 = vmatpush.bf16.msra.mxu0 %v1058
        %1074 = vmatmul.bf16.gmra.mxu0 %v1064
        %v1075 = vpop.f32.mrf.mxu0
        %v1076 = vadd.f32 0.0, %v1075
        %v1077 = vpop.f32.mrf.mxu0
        %1078 = vdwg.mxu0
        %v1079 = vadd.f32 %v1039, %v1076
        %v1081 = vperm.slane %v1048, 0
        %v1083 = vadd.f32 %v1079, %v1081
        %v1084 = vxor.u32 %v1083, 2147483648
        %v1085 = vmul.f32 %v1084, 1.442695
        %v1086 = vpow.pop %v1085
        %v1087 = vadd.f32 %v1086, 1.0
        %v1088 = vrcp.pop %v1087
        %v1089 = vmul.f32 %v1087, %v1088
        %v1090 = vsub.f32 1.0, %v1089
        %v1091 = vmul.f32 %v1088, %v1090
        %v1092 = vadd.f32 %v1088, %v1091
        %vm1093 = vweird.f32 %v1087
        %vm1094 = vweird.f32 %v1088
        %vm1095 = vmor %vm1093, %vm1094
        %v1096 = vsel %vm1095, %v1088, %v1092
        %v1097 = vand.u32 2147483647, %v1087
        %vm1098 = vcmp.eq.f32.partialorder %v1097, 8.507059e+37
        %v1099 = vand.u32 %v1087, 2147483648
        %v1100 = vor.u32 1.1754944e-38, %v1099
        %v1101 = vsel %vm1098, %v1100, %v1096
        %v1102 = vmul.f32 1.0, %v1101
        %v1103 = vtanh.pop %v1083
        %1105 = vrot.lane.b32.xlu0 %v1043, 32
        %v1106 = vpop.permute.xlu0 %1105
        %v1108 = vmul.f32 %v1102, %v1106
        %1110 = vrot.lane.b32.xlu0 %v1103, 64
        %v1111 = vpop.permute.xlu0 %1110
        %v1113 = vmul.f32 %v1102, %v1111
        %1115 = vrot.lane.b32.xlu0 %v1113, 32
        %v1116 = vpop.permute.xlu0 %1115
        %v1118 = vadd.f32 %v1108, %v1116
        %v1119 = vtanh.pop %v1118
        %1121 = vrot.lane.b32.xlu0 %v1119, 64
        %v1122 = vpop.permute.xlu0 %1121
        %v1124 = vmul.f32 %v1102, %v1122
        %v1125 = vpack.c.bf16 %v1124, %v1124
        %v1126 = vld [vmem:[%s6] sm:$0xf]
        %v1127 = vld [vmem:[%s6 + $0x4] sm:$0xf]
        %v1128 = vld [vmem:[%s6 + $0x8] sm:$0xf]
        %v1129 = vld [vmem:[%s6 + $0xc] sm:$0xf]
        %v1130 = vld [vmem:[#allocation6] sm:$0x3]
        %v1131 = vld [vmem:[#allocation7] sm:$0x3]
        %v1132 = vld [vmem:[#allocation18] sm:$0xf]
        %v1133 = vld [vmem:[#allocation18 + $0x4] sm:$0xf]
        %v1134 = vld [vmem:[#allocation18 + $0x8] sm:$0xf]
        %v1135 = vld [vmem:[#allocation18 + $0xc] sm:$0xf]
        %v1136 = vld [vmem:[#allocation19] sm:$0x1]
        %v1137 = vpack.c.bf16 %v1130, %v1130
        %v1142 = vunpack.c.l.b16 %v1132
        %v1143 = vunpack.c.l.b16 %v1133
        %v1144 = vunpack.c.l.b16 %v1134
        %v1145 = vunpack.c.l.b16 %v1135
        %v1146 = vpack.c.b16 %v1143, %v1142
        %v1147 = vpack.c.b16 %v1145, %v1144
        %v1151 = vsel %vm1062, %v1137, 0
        %1153 = vmatpush.bf16.msra.mxu0 0
        %1154 = vmatpush.bf16.msra.mxu0 0
        %1155 = vmatpush.bf16.msra.mxu0 0
        %1156 = vmatpush.bf16.msra.mxu0 0
        %1157 = vmatpush.bf16.msra.mxu0 0
        %1158 = vmatpush.bf16.msra.mxu0 0
        %1159 = vmatpush.bf16.msra.mxu0 %v1147
        %1160 = vmatpush.bf16.msra.mxu0 %v1146
        %1161 = vmatmul.bf16.gmra.mxu0 %v1151
        %v1162 = vpop.f32.mrf.mxu0
        %v1163 = vadd.f32 0.0, %v1162
        %v1164 = vpop.f32.mrf.mxu0
        %1165 = vdwg.mxu0
        %1167 = vrot.lane.b32.xlu0 %v1125, 32
        %v1168 = vpop.permute.xlu0 %1167
        %v1173 = vunpack.c.l.b16 %v1126
        %v1174 = vunpack.c.l.b16 %v1127
        %v1175 = vunpack.c.l.b16 %v1128
        %v1176 = vunpack.c.l.b16 %v1129
        %v1177 = vpack.c.b16 %v1174, %v1173
        %v1178 = vpack.c.b16 %v1176, %v1175
        %v1182 = vsel %vm1062, %v1168, 0
        %1184 = vmatpush.bf16.msra.mxu0 0
        %1185 = vmatpush.bf16.msra.mxu0 0
        %1186 = vmatpush.bf16.msra.mxu0 0
        %1187 = vmatpush.bf16.msra.mxu0 0
        %1188 = vmatpush.bf16.msra.mxu0 0
        %1189 = vmatpush.bf16.msra.mxu0 0
        %1190 = vmatpush.bf16.msra.mxu0 %v1178
        %1191 = vmatpush.bf16.msra.mxu0 %v1177
        %1192 = vmatmul.bf16.gmra.mxu0 %v1182
        %v1193 = vpop.f32.mrf.mxu0
        %v1194 = vadd.f32 %v1163, %v1193
        %v1195 = vpop.f32.mrf.mxu0
        %1196 = vdwg.mxu0
        %v1198 = vperm.slane %v1136, 0
        %v1200 = vadd.f32 %v1194, %v1198
        %v1201 = vxor.u32 %v1200, 2147483648
        %v1202 = vmul.f32 %v1201, 1.442695
        %v1203 = vpow.pop %v1202
        %v1204 = vadd.f32 %v1203, 1.0
        %v1205 = vrcp.pop %v1204
        %v1206 = vmul.f32 %v1204, %v1205
        %v1207 = vsub.f32 1.0, %v1206
        %v1208 = vmul.f32 %v1205, %v1207
        %v1209 = vadd.f32 %v1205, %v1208
        %vm1210 = vweird.f32 %v1204
        %vm1211 = vweird.f32 %v1205
        %vm1212 = vmor %vm1210, %vm1211
        %v1213 = vsel %vm1212, %v1205, %v1209
        %v1214 = vand.u32 2147483647, %v1204
        %vm1215 = vcmp.eq.f32.partialorder %v1214, 8.507059e+37
        %v1216 = vand.u32 %v1204, 2147483648
        %v1217 = vor.u32 1.1754944e-38, %v1216
        %v1218 = vsel %vm1215, %v1217, %v1213
        %v1219 = vmul.f32 1.0, %v1218
        %v1220 = vtanh.pop %v1200
        %1222 = vrot.lane.b32.xlu0 %v1131, 32
        %v1223 = vpop.permute.xlu0 %1222
        %v1225 = vmul.f32 %v1219, %v1223
        %1227 = vrot.lane.b32.xlu0 %v1220, 64
        %v1228 = vpop.permute.xlu0 %1227
        %v1230 = vmul.f32 %v1219, %v1228
        %1232 = vrot.lane.b32.xlu0 %v1230, 32
        %v1233 = vpop.permute.xlu0 %1232
        %v1235 = vadd.f32 %v1225, %v1233
        %v1236 = vtanh.pop %v1235
        %1238 = vrot.lane.b32.xlu0 %v1236, 64
        %v1239 = vpop.permute.xlu0 %1238
        %v1241 = vmul.f32 %v1219, %v1239
        %v1242 = vpack.c.bf16 %v1241, %v1241
        %v1243 = vld [vmem:[%s9] sm:$0xf]
        %v1244 = vld [vmem:[%s9 + $0x4] sm:$0xf]
        %v1245 = vld [vmem:[%s9 + $0x8] sm:$0xf]
        %v1246 = vld [vmem:[%s9 + $0xc] sm:$0xf]
        %v1247 = vld [vmem:[#allocation21] sm:$0x1]
        %v1249 = vperm.slane %v1247, 0
        %1252 = vrot.lane.b32.xlu0 %v1242, 32
        %v1253 = vpop.permute.xlu0 %1252
        %v1258 = vunpack.c.l.b16 %v1243
        %v1259 = vunpack.c.l.b16 %v1244
        %v1260 = vunpack.c.l.b16 %v1245
        %v1261 = vunpack.c.l.b16 %v1246
        %v1262 = vpack.c.b16 %v1259, %v1258
        %v1263 = vpack.c.b16 %v1261, %v1260
        %v1267 = vsel %vm1062, %v1253, 0
        %1269 = vmatpush.bf16.msra.mxu0 0
        %1270 = vmatpush.bf16.msra.mxu0 0
        %1271 = vmatpush.bf16.msra.mxu0 0
        %1272 = vmatpush.bf16.msra.mxu0 0
        %1273 = vmatpush.bf16.msra.mxu0 0
        %1274 = vmatpush.bf16.msra.mxu0 0
        %1275 = vmatpush.bf16.msra.mxu0 %v1263
        %1276 = vmatpush.bf16.msra.mxu0 %v1262
        %1277 = vmatmul.bf16.gmra.mxu0 %v1267
        %v1278 = vpop.f32.mrf.mxu0
        %v1279 = vadd.f32 %v1249, %v1278
        %v1280 = vpop.f32.mrf.mxu0
        %1281 = vdwg.mxu0
        %v1283 = vrot.slane %v1279, 1
        %v1284 = vld [vmem:[#allocation2] sm:$0xff]
        %v1285 = vld [vmem:[#allocation2 + $0x8] sm:$0xff]
        %v1286 = vperm.slane %v1279, 0
        %v1287 = vperm.slane %v1283, 0
        %v1290 = vmul.f32 %v1286, %v1284
        %v1291 = vmul.f32 %v1287, %v1285
        %v1292 = vsel %vm1003, %v1290, 0.0
        %1293 = vadd.xlane.f32.xlu0 %v1292
        %v1294 = vpop.xlane.xlu0 %1293
        %v1295 = vsel %vm1003, %v1291, 0.0
        %1296 = vadd.xlane.f32.xlu0 %v1295
        %v1297 = vpop.xlane.xlu0 %1296
        %v1300 = vperm.slane %v1294, %v953
        %v1301 = vperm.slane %v1297, %v953
        %vm1302 = vcmask 1041409
        %v1303 = vsel %vm1302, %v1301, %v1300
        %vm1305 = vcmask 58368
        %v1306 = vsel %vm1305, %v1303, -inf
        %1307 = vmax.xlane.f32.xlu0 %v1306
        %v1308 = vpop.xlane.xlu0 %1307
        %v1310 = vperm.slane %v1308, 0
        %v1311 = vperm.slane %v1308, 1
        %v1314 = vsub.f32 %v1294, %v1310
        %v1315 = vsub.f32 %v1297, %v1311
        %v1316 = vmul.f32 %v1314, 1.442695
        %v1317 = vpow.pop %v1316
        %v1318 = vmul.f32 %v1315, 1.442695
        %v1319 = vpow.pop %v1318
        %1322 = vset.pattern.permute.xlu0 0
        %1323 = vperm.xlu0 %1322, %v1317
        %v1324 = vpop.permute.xlu0 %1323
        %1325 = vset.pattern.permute.xlu0 0
        %1326 = vperm.xlu0 %1325, %v1319
        %v1327 = vpop.permute.xlu0 %1326
        %v1328 = vperm.slane %v1324, %v953
        %v1329 = vperm.slane %v1327, %v953
        %v1330 = vsel %vm1302, %v1329, %v1328
        %v1332 = vsel %vm1305, %v1330, 0.0
        %1333 = vadd.xlane.f32.xlu0 %v1332
        %v1334 = vpop.xlane.xlu0 %1333
        %v1336 = vperm.slane %v1334, 0
        %v1337 = vperm.slane %v1334, 1
        %v1340 = vrcp.pop %v1336
        %v1341 = vmul.f32 %v1336, %v1340
        %v1342 = vsub.f32 1.0, %v1341
        %v1343 = vmul.f32 %v1340, %v1342
        %v1344 = vadd.f32 %v1340, %v1343
        %vm1345 = vweird.f32 %v1336
        %vm1346 = vweird.f32 %v1340
        %vm1347 = vmor %vm1345, %vm1346
        %v1348 = vsel %vm1347, %v1340, %v1344
        %v1349 = vand.u32 2147483647, %v1336
        %vm1350 = vcmp.eq.f32.partialorder %v1349, 8.507059e+37
        %v1351 = vand.u32 %v1336, 2147483648
        %v1352 = vor.u32 1.1754944e-38, %v1351
        %v1353 = vsel %vm1350, %v1352, %v1348
        %v1354 = vmul.f32 %v1317, %v1353
        %v1355 = vrcp.pop %v1337
        %v1356 = vmul.f32 %v1337, %v1355
        %v1357 = vsub.f32 1.0, %v1356
        %v1358 = vmul.f32 %v1355, %v1357
        %v1359 = vadd.f32 %v1355, %v1358
        %vm1360 = vweird.f32 %v1337
        %vm1361 = vweird.f32 %v1355
        %vm1362 = vmor %vm1360, %vm1361
        %v1363 = vsel %vm1362, %v1355, %v1359
        %v1364 = vand.u32 2147483647, %v1337
        %vm1365 = vcmp.eq.f32.partialorder %v1364, 8.507059e+37
        %v1366 = vand.u32 %v1337, 2147483648
        %v1367 = vor.u32 1.1754944e-38, %v1366
        %v1368 = vsel %vm1365, %v1367, %v1363
        %v1369 = vmul.f32 %v1319, %v1368
        %v1370 = vld [vmem:[#allocation3] sm:$0xff]
        %v1371 = vld [vmem:[#allocation3 + $0x8] sm:$0xff]
        %1373 = vset.pattern.permute.xlu0 0
        %1374 = vperm.xlu0 %1373, %v1354
        %v1375 = vpop.permute.xlu0 %1374
        %1378 = vset.pattern.permute.xlu0 0
        %1379 = vperm.xlu0 %1378, %v1369
        %v1380 = vpop.permute.xlu0 %1379
        %v1382 = vmul.f32 %v1375, %v1370
        %v1383 = vmul.f32 %v1380, %v1371
        %v1384 = vsel %vm1003, %v1382, 0.0
        %v1385 = vrot.slane %v1384, 4
        %v1386 = vadd.f32 %v1384, %v1385
        %v1387 = vrot.slane %v1386, 2
        %v1388 = vadd.f32 %v1386, %v1387
        %v1389 = vrot.slane %v1388, 1
        %v1390 = vadd.f32 %v1388, %v1389
        %v1391 = vsel %vm1003, %v1383, 0.0
        %v1392 = vrot.slane %v1391, 4
        %v1393 = vadd.f32 %v1391, %v1392
        %v1394 = vrot.slane %v1393, 2
        %v1395 = vadd.f32 %v1393, %v1394
        %v1396 = vrot.slane %v1395, 1
        %v1397 = vadd.f32 %v1395, %v1396
        %v1398 = vld [vmem:[%s15] sm:$0xf]
        %v1399 = vld [vmem:[%s15 + $0x4] sm:$0xf]
        %v1400 = vld [vmem:[%s15 + $0x8] sm:$0xf]
        %v1401 = vld [vmem:[%s15 + $0xc] sm:$0xf]
        %v1402 = vld [vmem:[#allocation28] sm:$0x1]
        %v1404 = vperm.slane %v1402, 0
        %v1410 = vunpack.c.l.b16 %v1398
        %v1411 = vunpack.c.l.b16 %v1399
        %v1412 = vunpack.c.l.b16 %v1400
        %v1413 = vunpack.c.l.b16 %v1401
        %v1414 = vpack.c.b16 %v1411, %v1410
        %v1415 = vpack.c.b16 %v1413, %v1412
        %1418 = vmatpush.bf16.msra.mxu0 0
        %1419 = vmatpush.bf16.msra.mxu0 0
        %1420 = vmatpush.bf16.msra.mxu0 0
        %1421 = vmatpush.bf16.msra.mxu0 0
        %1422 = vmatpush.bf16.msra.mxu0 0
        %1423 = vmatpush.bf16.msra.mxu0 0
        %1424 = vmatpush.bf16.msra.mxu0 %v1415
        %1425 = vmatpush.bf16.msra.mxu0 %v1414
        %1426 = vmatmul.bf16.gmra.mxu0 %v1267
        %v1427 = vpop.f32.mrf.mxu0
        %v1428 = vadd.f32 %v1404, %v1427
        %v1429 = vpop.f32.mrf.mxu0
        %1430 = vdwg.mxu0
        %vm1431 = vcmask 123904
        %v1432 = vsel %vm1431, %v1428, 0.0
        %1433 = vadd.xlane.f32.xlu0 %v1432
        %v1434 = vpop.xlane.xlu0 %1433
        %v1435 = vrcp.pop 16.0
        %v1436 = vmul.f32 16.0, %v1435
        %v1437 = vsub.f32 1.0, %v1436
        %v1438 = vmul.f32 %v1435, %v1437
        %v1439 = vadd.f32 %v1435, %v1438
        %vm1440 = vweird.f32 %v1435
        %v1441 = vsel %vm1440, %v1435, %v1439
        %v1442 = vmul.f32 %v1434, %v1441
        %v1443 = vsub.f32 %v1428, %v1442
        %v1444 = vmul.f32 %v1443, %v1443
        %v1445 = vsel %vm1431, %v1444, 0.0
        %1446 = vadd.xlane.f32.xlu0 %v1445
        %v1447 = vpop.xlane.xlu0 %1446
        %v1448 = vmul.f32 %v1447, %v1441
        %v1449 = vadd.f32 %v1448, 1e-05
        %v1450 = vrsqrt.pop %v1449
        %v1451 = vmul.f32 %v1450, %v1449
        %v1452 = vmul.f32 %v1451, %v1450
        %v1453 = vmul.f32 0.5, %v1452
        %v1454 = vsub.f32 1.5, %v1453
        %v1455 = vmul.f32 %v1450, %v1454
        %vm1456 = vweird.f32 %v1449
        %vm1457 = vweird.f32 %v1450
        %vm1458 = vmor %vm1456, %vm1457
        %v1459 = vsel %vm1458, %v1450, %v1455
        %v1460 = vmul.f32 %v1443, %v1459
        %v1461 = vld [vmem:[#allocation30] sm:$0x1]
        %v1463 = vperm.slane %v1461, 0
        %v1465 = vmul.f32 %v1460, %v1463
        %v1466 = vld [vmem:[%s18] sm:$0x1]
        %v1468 = vperm.slane %v1466, 0
        %v1470 = vadd.f32 %v1465, %v1468
        %v1471 = vmax.f32 %v1470, 0.0
        %v1472 = vpack.c.bf16 %v1471, %v1471
        %v1473 = vld [vmem:[%s19] sm:$0xf]
        %v1474 = vld [vmem:[%s19 + $0x4] sm:$0xf]
        %v1475 = vld [vmem:[%s20] sm:$0x1]
        %v1477 = vperm.slane %v1475, 0
        %v1481 = vunpack.c.l.b16 %v1473
        %v1482 = vunpack.c.l.b16 %v1474
        %v1483 = vpack.c.b16 %v1482, %v1481
        %v1486 = vsel %vm1003, %v1472, 0
        %1488 = vmatpush.bf16.msra.mxu0 0
        %1489 = vmatpush.bf16.msra.mxu0 0
        %1490 = vmatpush.bf16.msra.mxu0 0
        %1491 = vmatpush.bf16.msra.mxu0 0
        %1492 = vmatpush.bf16.msra.mxu0 0
        %1493 = vmatpush.bf16.msra.mxu0 0
        %1494 = vmatpush.bf16.msra.mxu0 0
        %1495 = vmatpush.bf16.msra.mxu0 %v1483
        %1496 = vmatmul.bf16.gmra.mxu0 %v1486
        %v1497 = vpop.f32.mrf.mxu0
        %v1498 = vadd.f32 %v1477, %v1497
        %v1499 = vpop.f32.mrf.mxu0
        %1500 = vdwg.mxu0
        %v1501 = vpack.c.bf16 %v1498, %v1498
        %1502 = vst [vmem:[%s864] sm:$0x1] %v1501
        %vm1503 = vcmask 1041408
        %v1504 = vsel %vm1503, %v1498, -inf
        %1505 = vmax.xlane.f32.xlu0 %v1504
        %v1506 = vpop.xlane.xlu0 %1505
        %vm1507 = vcmp.eq.f32.partialorder %v1498, %v1506
        %v1508 = vsel %vm1507, %v953, 1073741824
        %v1509 = vsel %vm1503, %v1508, 2147483647
        %v1510 = vand.u32 %v1509, 65535
        %v1511 = vshra.s32 %v1509, 16
        %v1512 = vcvt.s32.f32 %v1510
        %v1513 = vcvt.s32.f32 %v1511
        %1514 = vmin.xlane.f32.xlu0 %v1513
        %v1515 = vpop.xlane.xlu0 %1514
        %vm1516 = vcmp.eq.f32.partialorder %v1513, %v1515
        %v1517 = vsel %vm1516, %v1512, inf
        %1518 = vmin.xlane.f32.xlu0 %v1517
        %v1519 = vpop.xlane.xlu0 %1518
        %v1520 = vcvt.f32.s32 %v1519
        %v1521 = vcvt.f32.s32 %v1515
        %v1522 = vshll.u32 %v1521, 16
        %v1523 = vadd.s32 %v1522, %v1520
        %vm1524 = vcmask 1024
        %1525 = vst.msk [vmem:[#allocation9] sm:$0x3] %vm1524, %v1523
        %1527 = vrot.lane.b32.xlu0 %v1124, 32
        %v1528 = vpop.permute.xlu0 %1527
        %vm1530 = vcmask 254976
        %1531 = vst.msk [vmem:[#allocation4] sm:$0x3] %vm1530, %v1528
        %1533 = vrot.lane.b32.xlu0 %v1118, 96
        %v1534 = vpop.permute.xlu0 %1533
        %1536 = vst.msk [vmem:[#allocation5] sm:$0x3] %vm1530, %v1534
        %1538 = vrot.lane.b32.xlu0 %v1241, 32
        %v1539 = vpop.permute.xlu0 %1538
        %1541 = vst.msk [vmem:[#allocation6] sm:$0x3] %vm1530, %v1539
        %1543 = vrot.lane.b32.xlu0 %v1235, 96
        %v1544 = vpop.permute.xlu0 %1543
        %1546 = vst.msk [vmem:[#allocation7] sm:$0x3] %vm1530, %v1544
        %v1549 = vsel %vm1302, %v1397, %v1390
        %1551 = vst.msk [vmem:[#allocation8] sm:$0x3] %vm1431, %v1549
        %s1552 = sand.u32 %s510, 1
        %s1553 = scalar_lea.sflag [#allocation12], %s1552
        %s1554 = sand.u32 %s510, 1
        %s1555 = scalar_lea.vmem [#allocation31], %s1554
        // Predicated region
        $region161: #{tpu_custom_call.1} parent=103 // pred_check
          %p1556 = pneg %p520
        $region162: #{tpu_custom_call.1} parent=103 // pred_check_branch
          %1558 = sbr.rel (%p1556) target = $region164
        $region163: #{tpu_custom_call.1} parent=103 // pred_region
          %1560 = vsyncadd %s1553, 0
          %s1561 = smul.addr %s46, 8
          %s1562 = sadd.s32 %s47, %s1561
          %s1563 = scalar_lea.hbm %s21, %s1562
          %s1565 = sshll.u32 %s1555, 4
          %s1566 = int_to_ptr.vmem [resolvable:$true] %s1565
          %s1567 = sshll.u32 %s1563, 4
          %s1568 = int_to_ptr.hbm [resolvable:$true] %s1567
          %1570 = dma.vmem_to_hbm [thread:$0]  %s1566, 16, %s1568, %s1553
        $region164: #{tpu_custom_call.1} parent=103 // pred_fallthru
          _
      $region104: #{tpu_custom_call.1} parent=5 // pred_fallthru
        _
      %p1571 = scmp.le.s32.totalorder 2, %s37
      // Predicated region
      $region165: #{tpu_custom_call.1} parent=5 // pred_check
        %p1572 = pneg %p1571
      $region166: #{tpu_custom_call.1} parent=5 // pred_check_branch
        %1574 = sbr.rel (%p1572) target = $region168
      $region167: #{tpu_custom_call.1} parent=5 // pred_region
        %s1575 = ssub.s32 %s37, 2
        // Predicated region
        $region169: #{tpu_custom_call.1} parent=167 // pred_check
          %p1576 = pneg %p526
        $region170: #{tpu_custom_call.1} parent=167 // pred_check_branch
          %1578 = sbr.rel (%p1576) target = $region172
        $region171: #{tpu_custom_call.1} parent=167 // pred_region
          %s1579 = sand.u32 %s511, 1
          %s1580 = scalar_lea.sflag [#allocation12], %s1579
          %s1581 = sand.u32 %s511, 1
          %s1582 = scalar_lea.vmem [#allocation31], %s1581
          %1584 = dma.done %s1580, 16
        $region172: #{tpu_custom_call.1} parent=167 // pred_fallthru
          _
      $region168: #{tpu_custom_call.1} parent=5 // pred_fallthru
        _
    $region6: #{tpu_custom_call.1} parent=1 // loop_footer
      %s41 = sadd.s32 1, %s37
    $region7: #{tpu_custom_call.1} parent=1 // loop_footer_branch
      %36 = sbr.rel target = $region3
    $region8: #{tpu_custom_call.1} parent=1 // loop_exit
      _
    %1585 = vsyncpa [#allocation11], 1
    %s1586 = scalar_lea.sflag [#allocation11], 1
    %1587 = vsyncpa %s1586, 1
    %1588 = vsyncpa [#allocation14], 1
    %1589 = vsyncpa [#allocation17], 1
    %1590 = vsyncpa [#allocation20], 1
    %1591 = vsyncpa [#allocation23], 1
    %1592 = vsyncpa [#allocation26], 1
    %1593 = vsyncpa [#allocation29], 1
    %1594 = vsyncpa [#allocation12], 1
    %s1595 = scalar_lea.sflag [#allocation12], 1
    %1596 = vsyncpa %s1595, 1

</llo_original>
